<compile_context>
chip_gen: v7x
topology: tpu7x:2x2x1
jax: 0.10.0
libtpu: 0.0.40
codegen_flags: <defaults>
</compile_context>

<pallas_src>
import jax
import jax.numpy as jnp
from jax.experimental import pallas as pl
from jax.experimental.pallas import tpu as pltpu

HIDDEN = 64
NUM_MESSAGE_LAYERS = 3


def _mxu_is_256_wide():
    """True on v6e/v7x-class parts (256-wide MXU); False on v2-v5 (128-wide)."""
    try:
        kind = jax.devices()[0].device_kind.lower()
    except Exception:
        return True
    return not any(g in kind for g in ("v2", "v3", "v4", "v5"))


def _pick_block_b(B, N, block_b=None, target_rows=512):
    """Graphs per grid step. Targets M = bB*N ~ target_rows; multiple of 8 and
    an even step count when the batch spans several grid steps."""
    if block_b is not None:
        bB = min(block_b, B)
        if -(-B // bB) > 1 and bB % 8 != 0:   # multi-step: keep out block legal
            bB = ((bB + 7) // 8) * 8
        return bB
    cap = max(1, target_rows // N)            # graphs/step so M <= target_rows
    if B <= cap:
        return B                              # whole batch in one big matmul
    bB = max(8, (cap // 8) * 8)
    steps = -(-B // bB)
    if steps % 2 == 1:                        # even grid -> both v7x TCs busy
        steps += 1
    per_step = -(-B // steps)
    bB = min(bB, max(8, ((per_step + 7) // 8) * 8))
    return bB


def _make_gnn_kernel(split_message_weights):
    def kernel(nodes_ref, adj_ref, g_off_ref, col_ref, pool_ref,
               w_enc_ref, b_enc_ref,
               w_cat_ref, b_msg_ref,
               w_out1_ref, b_out1_ref,
               w_out2_ref, b_out2_ref,
               out_ref):
        M, _ = nodes_ref.shape              # M = bB * N (graphs flattened host-side)
        K = adj_ref.shape[1]
        H = HIDDEN

        nodes = nodes_ref[...]                                      # (M, F)
        adj = adj_ref[...]                                          # (M, K)

        # ---- node encoder: Linear -> ReLU (Dropout = identity in eval) ----
        hidden = jnp.maximum(
            jnp.dot(nodes, w_enc_ref[...], preferred_element_type=jnp.float32)
            + b_enc_ref[...], 0.0)                                  # (M, H)

        # ---- block-local neighbor ids (graph offsets precomputed host-side)
        gadj = jnp.where(adj >= 0, adj + g_off_ref[...], -1)        # (M, K)
        valid = gadj >= 0
        cnt = jnp.sum(valid.astype(jnp.float32), axis=1, keepdims=True)  # (M,1)
        inv_cnt = jnp.where(cnt > 0.0, 1.0 / jnp.maximum(cnt, 1.0), 0.0)
        # hoisted no-neighbor mask (zeroes message + bias for isolated nodes)
        nb_mask = jnp.broadcast_to((cnt > 0.0).astype(jnp.float32), (M, H))

        # ---- block-diagonal aggregation matrix, K statically unrolled ------
        col = col_ref[...]                                          # (M, M) iota
        agg = (gadj[:, 0:1] == col).astype(jnp.float32)             # (M, M)
        for k in range(1, K):
            agg = agg + (gadj[:, k:k + 1] == col).astype(jnp.float32)
        agg = agg * inv_cnt                 # fold the mean normalization in once

        # ---- message passing: 3 layers -------------------------------------
        for layer in range(NUM_MESSAGE_LAYERS):
            neigh_mean = jnp.dot(agg, hidden,
                                 preferred_element_type=jnp.float32)  # (M, H)
            if split_message_weights:
                # v6e/v7x: avoid the (M,2H) concat relayout; two K=64 dots.
                msg = (jnp.dot(hidden, w_cat_ref[layer, 0:H, :],
                               preferred_element_type=jnp.float32)
                       + jnp.dot(neigh_mean, w_cat_ref[layer, H:2 * H, :],
                                 preferred_element_type=jnp.float32)
                       + b_msg_ref[layer])
            else:
                # v5: one fused K=2H=128 contraction exactly fills the MXU.
                cat = jnp.concatenate([hidden, neigh_mean], axis=-1)  # (M, 2H)
                msg = (jnp.dot(cat, w_cat_ref[layer],
                               preferred_element_type=jnp.float32)
                       + b_msg_ref[layer])                            # (M, H)
            msg = msg * nb_mask
            hidden = jnp.maximum(hidden + msg, 0.0)

        # ---- per-graph mean readout via precomputed pooling matmul ---------
        graph_emb = jnp.dot(pool_ref[...], hidden,
                            preferred_element_type=jnp.float32)     # (bB, H)

        # ---- output MLP -----------------------------------------------------
        x = jnp.maximum(
            jnp.dot(graph_emb, w_out1_ref[...],
                    preferred_element_type=jnp.float32) + b_out1_ref[...], 0.0)
        out_ref[...] = (jnp.dot(x, w_out2_ref[...],
                                preferred_element_type=jnp.float32)
                        + b_out2_ref[...])                           # (bB, 1)
    return kernel


def query_plan_gnn(nodes, adj, params, block_b=None, split_message_weights=None):
    B, N, F = nodes.shape
    K = adj.shape[2]
    H = HIDDEN

    if split_message_weights is None:
        split_message_weights = _mxu_is_256_wide()

    bB = _pick_block_b(B, N, block_b)
    B_pad = ((B + bB - 1) // bB) * bB
    if B_pad != B:
        nodes = jnp.concatenate(
            [nodes, jnp.zeros((B_pad - B, N, F), nodes.dtype)], axis=0)
        adj = jnp.concatenate(
            [adj, jnp.full((B_pad - B, N, K), -1, adj.dtype)], axis=0)

    # Flatten graphs into the matmul M dimension host-side (free XLA reshape)
    # so the kernel only ever sees 2-D operands.
    nodes2 = nodes.reshape(B_pad * N, F).astype(jnp.float32)
    adj2 = adj.reshape(B_pad * N, K).astype(jnp.int32)
    M = bB * N

    # ---- data-independent constants, hoisted out of the per-step path ------
    row = jnp.arange(M, dtype=jnp.int32)
    graph_of_row = row // N
    g_off = (graph_of_row * N)[:, None]                              # (M, 1)
    col_iota = jnp.broadcast_to(jnp.arange(M, dtype=jnp.int32)[None, :],
                                (M, M))                              # (M, M)
    pool = (jnp.arange(bB, dtype=jnp.int32)[:, None]
            == graph_of_row[None, :]).astype(jnp.float32) / float(N)  # (bB, M)

    (w_enc, b_enc, w_cat, b_msg, w_out1, b_out1, w_out2, b_out2) = params

    def full(shape):
        nd = len(shape)
        return pl.BlockSpec(shape, lambda b, _nd=nd: (0,) * _nd)

    grid_spec = pltpu.PrefetchScalarGridSpec(
        num_scalar_prefetch=0,
        grid=(B_pad // bB,),
        in_specs=[
            pl.BlockSpec((M, F), lambda b: (b, 0)),     # nodes, bB graphs/step
            pl.BlockSpec((M, K), lambda b: (b, 0)),     # adj,   bB graphs/step
            full((M, 1)),                               # graph row offsets
            full((M, M)),                               # column iota
            full((bB, M)),                              # mean-pool matrix
            full((F, H)), full((1, H)),                 # encoder
            full((NUM_MESSAGE_LAYERS, 2 * H, H)),       # fused message weights
            full((NUM_MESSAGE_LAYERS, 1, H)),           # message biases
            full((H, H)), full((1, H)),                 # output_layer1
            full((H, 1)), full((1, 1)),                 # output_layer2
        ],
        # Per-step output block (depends on b) -> batch axis can be parallel.
        # NOTE: last dim = 1 lowers to masked stores; negligible at ~bB*4 B/step.
        out_specs=pl.BlockSpec((bB, 1), lambda b: (b, 0)),
    )

    out = pl.pallas_call(
        _make_gnn_kernel(split_message_weights),
        out_shape=jax.ShapeDtypeStruct((B_pad, 1), jnp.float32),
        grid_spec=grid_spec,
        compiler_params=pltpu.CompilerParams(
            dimension_semantics=("parallel",)),
    )(nodes2, adj2, g_off, col_iota, pool,
      w_enc, b_enc, w_cat, b_msg, w_out1, b_out1, w_out2, b_out2)
    return out[:B]


def init_params(key, num_features, H=HIDDEN):
    """Deterministic synthetic parameters (PyTorch-style uniform bounds)."""
    ks = jax.random.split(key, 8)

    def lin(k, fan_in, shape):
        bound = 1.0 / (fan_in ** 0.5)
        return jax.random.uniform(k, shape, jnp.float32, -bound, bound)

    w_enc = lin(ks[0], num_features, (num_features, H))
    b_enc = lin(ks[1], num_features, (1, H))
    # Fused message weight (= PyTorch Linear(2H,H).weight.T): rows 0:H act on
    # the node itself, rows H:2H on the neighbor mean.
    w_cat = lin(ks[2], 2 * H, (NUM_MESSAGE_LAYERS, 2 * H, H))
    b_msg = lin(ks[3], 2 * H, (NUM_MESSAGE_LAYERS, 1, H))
    w_out1 = lin(ks[4], H, (H, H))
    b_out1 = lin(ks[5], H, (1, H))
    w_out2 = lin(ks[6], H, (H, 1))
    b_out2 = lin(ks[7], H, (1, 1))
    return (w_enc, b_enc, w_cat, b_msg, w_out1, b_out1, w_out2, b_out2)


def reference_forward(nodes, adj, params):
    """Pure-JAX reference reproducing the PyTorch forward (eval mode)."""
    (w_enc, b_enc, w_cat, b_msg, w_out1, b_out1, w_out2, b_out2) = params
    hidden = jax.nn.relu(nodes @ w_enc + b_enc[0])                  # (B,N,H)
    valid = adj >= 0                                                # (B,N,K)
    safe = jnp.where(valid, adj, 0)
    cnt = jnp.sum(valid, axis=-1, keepdims=True).astype(jnp.float32)  # (B,N,1)
    for layer in range(NUM_MESSAGE_LAYERS):
        gathered = jax.vmap(lambda h, a: h[a])(hidden, safe)        # (B,N,K,H)
        gathered = jnp.where(valid[..., None], gathered, 0.0)
        neigh_mean = jnp.sum(gathered, axis=2) / jnp.maximum(cnt, 1.0)
        cat = jnp.concatenate([hidden, neigh_mean], axis=-1)        # (B,N,2H)
        msg = cat @ w_cat[layer] + b_msg[layer]
        msg = jnp.where(cnt > 0, msg, 0.0)   # isolated nodes: zero message
        hidden = jax.nn.relu(hidden + msg)
    g = jnp.mean(hidden, axis=1)                                    # (B,H)
    x = jax.nn.relu(g @ w_out1 + b_out1[0])
    return x @ w_out2 + b_out2[0]                                   # (B,1)


if __name__ == "__main__":
    # batch, nodes-per-graph, num_features, max neighbors
    B, N, F, K = 12, 16, 8, 4

    key = jax.random.PRNGKey(0)
    k_nodes, k_adj, k_params = jax.random.split(key, 3)

    nodes = jax.random.normal(k_nodes, (B, N, F), dtype=jnp.float32)
    # adjacency lists: neighbor ids in [0, N); -1 marks a missing neighbor slot
    adj = jax.random.randint(k_adj, (B, N, K), minval=-1, maxval=N,
                             dtype=jnp.int32)
    params = init_params(k_params, F)

    ref = reference_forward(nodes, adj, params)

    # Auto block size (whole batch in one grid step here: M = 12*16 = 192 rows).
    out = query_plan_gnn(nodes, adj, params)
    out = jax.block_until_ready(out)
    assert out.shape == (B, 1), out.shape
    assert jnp.allclose(out, ref, atol=1e-4, rtol=1e-4), (out, ref)

    # Also exercise the multi-grid-step path (bB=8 -> grid of 2, batch padded).
    out2 = query_plan_gnn(nodes, adj, params, block_b=8)
    out2 = jax.block_until_ready(out2)
    assert jnp.allclose(out2, ref, atol=1e-4, rtol=1e-4), (out2, ref)

    print("KERNEL_OK")
</pallas_src>

<mosaic_0001>
module attributes {stable_mosaic.version = 11 : i64} {
  func.func @kernel(%arg0: i32, %arg1: memref<192x8xf32, #tpu.memory_space<vmem>>, %arg2: memref<192x4xi32, #tpu.memory_space<vmem>>, %arg3: memref<192x1xi32, #tpu.memory_space<vmem>>, %arg4: memref<192x192xi32, #tpu.memory_space<vmem>>, %arg5: memref<12x192xf32, #tpu.memory_space<vmem>>, %arg6: memref<8x64xf32, #tpu.memory_space<vmem>>, %arg7: memref<1x64xf32, #tpu.memory_space<vmem>>, %arg8: memref<3x128x64xf32, #tpu.memory_space<vmem>>, %arg9: memref<3x1x64xf32, #tpu.memory_space<vmem>>, %arg10: memref<64x64xf32, #tpu.memory_space<vmem>>, %arg11: memref<1x64xf32, #tpu.memory_space<vmem>>, %arg12: memref<64x1xf32, #tpu.memory_space<vmem>>, %arg13: memref<1x1xf32, #tpu.memory_space<vmem>>, %arg14: memref<12x1xf32, #tpu.memory_space<vmem>>) attributes {dimension_semantics = [#tpu.dimension_semantics<parallel>], iteration_bounds = array<i64: 1>, scalar_prefetch = 0 : i64, scratch_operands = 0 : i64, tpu.core_type = #tpu.core_type<tc>, window_params = [{transform_indices = @transform_0, window_bounds = array<i64: 192, 8>}, {transform_indices = @transform_1, window_bounds = array<i64: 192, 4>}, {pipeline_mode = #tpu.pipeline_mode<synchronous>, transform_indices = @transform_2, window_bounds = array<i64: 192, 1>}, {pipeline_mode = #tpu.pipeline_mode<synchronous>, transform_indices = @transform_3, window_bounds = array<i64: 192, 192>}, {pipeline_mode = #tpu.pipeline_mode<synchronous>, transform_indices = @transform_4, window_bounds = array<i64: 12, 192>}, {pipeline_mode = #tpu.pipeline_mode<synchronous>, transform_indices = @transform_5, window_bounds = array<i64: 8, 64>}, {pipeline_mode = #tpu.pipeline_mode<synchronous>, transform_indices = @transform_6, window_bounds = array<i64: 1, 64>}, {pipeline_mode = #tpu.pipeline_mode<synchronous>, transform_indices = @transform_7, window_bounds = array<i64: 3, 128, 64>}, {pipeline_mode = #tpu.pipeline_mode<synchronous>, transform_indices = @transform_8, window_bounds = array<i64: 3, 1, 64>}, {pipeline_mode = #tpu.pipeline_mode<synchronous>, transform_indices = @transform_9, window_bounds = array<i64: 64, 64>}, {pipeline_mode = #tpu.pipeline_mode<synchronous>, transform_indices = @transform_10, window_bounds = array<i64: 1, 64>}, {pipeline_mode = #tpu.pipeline_mode<synchronous>, transform_indices = @transform_11, window_bounds = array<i64: 64, 1>}, {pipeline_mode = #tpu.pipeline_mode<synchronous>, transform_indices = @transform_12, window_bounds = array<i64: 1, 1>}, {transform_indices = @transform_13, window_bounds = array<i64: 12, 1>}]} {
    %c0 = arith.constant 0 : index
    %c0_0 = arith.constant 0 : index
    %0 = vector.load %arg1[%c0, %c0_0] : memref<192x8xf32, #tpu.memory_space<vmem>>, vector<192x8xf32>
    %c0_1 = arith.constant 0 : index
    %c0_2 = arith.constant 0 : index
    %1 = vector.load %arg2[%c0_1, %c0_2] : memref<192x4xi32, #tpu.memory_space<vmem>>, vector<192x4xi32>
    %c0_3 = arith.constant 0 : index
    %c0_4 = arith.constant 0 : index
    %2 = vector.load %arg6[%c0_3, %c0_4] : memref<8x64xf32, #tpu.memory_space<vmem>>, vector<8x64xf32>
    %cst = arith.constant dense<0.000000e+00> : vector<192x64xf32>
    %3 = tpu.matmul %0, %2, %cst {dimension_numbers = #tpu.dot_dimension_numbers<[1], [0], [0], [1], [0, 0, 1, 1], [], []>} : vector<192x8xf32>, vector<8x64xf32>, vector<192x64xf32> -> vector<192x64xf32>
    %c0_5 = arith.constant 0 : index
    %c0_6 = arith.constant 0 : index
    %4 = vector.load %arg7[%c0_5, %c0_6] : memref<1x64xf32, #tpu.memory_space<vmem>>, vector<1x64xf32>
    %5 = vector.broadcast %4 : vector<1x64xf32> to vector<192x64xf32>
    %6 = arith.addf %3, %5 : vector<192x64xf32>
    %cst_7 = arith.constant 0.000000e+00 : f32
    %7 = vector.broadcast %cst_7 : f32 to vector<192x64xf32>
    %8 = arith.maximumf %6, %7 : vector<192x64xf32>
    %c0_i32 = arith.constant 0 : i32
    %9 = vector.broadcast %c0_i32 : i32 to vector<192x4xi32>
    %10 = arith.cmpi sge, %1, %9 : vector<192x4xi32>
    %c0_8 = arith.constant 0 : index
    %c0_9 = arith.constant 0 : index
    %11 = vector.load %arg3[%c0_8, %c0_9] : memref<192x1xi32, #tpu.memory_space<vmem>>, vector<192x1xi32>
    %12 = vector.broadcast %11 : vector<192x1xi32> to vector<192x4xi32>
    %13 = arith.addi %1, %12 : vector<192x4xi32>
    %c-1_i32 = arith.constant -1 : i32
    %14 = vector.broadcast %c-1_i32 : i32 to vector<192x4xi32>
    %15 = arith.select %10, %13, %14 : vector<192x4xi1>, vector<192x4xi32>
    %c0_i32_10 = arith.constant 0 : i32
    %16 = vector.broadcast %c0_i32_10 : i32 to vector<192x4xi32>
    %17 = arith.cmpi sge, %15, %16 : vector<192x4xi32>
    %18 = arith.extui %17 : vector<192x4xi1> to vector<192x4xi32>
    %19 = arith.sitofp %18 : vector<192x4xi32> to vector<192x4xf32>
    %cst_11 = arith.constant dense<0.000000e+00> : vector<192xf32>
    %20 = vector.multi_reduction <add>, %19, %cst_11 [1] : vector<192x4xf32> to vector<192xf32>
    %21 = vector.shape_cast %20 : vector<192xf32> to vector<192x1xf32>
    %cst_12 = arith.constant 0.000000e+00 : f32
    %22 = vector.broadcast %cst_12 : f32 to vector<192x1xf32>
    %23 = arith.cmpf ogt, %21, %22 : vector<192x1xf32>
    %cst_13 = arith.constant 1.000000e+00 : f32
    %24 = vector.broadcast %cst_13 : f32 to vector<192x1xf32>
    %25 = arith.maximumf %21, %24 : vector<192x1xf32>
    %cst_14 = arith.constant 1.000000e+00 : f32
    %26 = vector.broadcast %cst_14 : f32 to vector<192x1xf32>
    %27 = arith.divf %26, %25 : vector<192x1xf32>
    %cst_15 = arith.constant 0.000000e+00 : f32
    %28 = vector.broadcast %cst_15 : f32 to vector<192x1xf32>
    %29 = arith.select %23, %27, %28 : vector<192x1xi1>, vector<192x1xf32>
    %cst_16 = arith.constant 0.000000e+00 : f32
    %30 = vector.broadcast %cst_16 : f32 to vector<192x1xf32>
    %31 = arith.cmpf ogt, %21, %30 : vector<192x1xf32>
    %32 = arith.extui %31 : vector<192x1xi1> to vector<192x1xi32>
    %33 = arith.sitofp %32 : vector<192x1xi32> to vector<192x1xf32>
    %34 = vector.shape_cast %33 : vector<192x1xf32> to vector<192x1xf32>
    %35 = vector.broadcast %34 : vector<192x1xf32> to vector<192x64xf32>
    %c0_17 = arith.constant 0 : index
    %c0_18 = arith.constant 0 : index
    %36 = vector.load %arg4[%c0_17, %c0_18] : memref<192x192xi32, #tpu.memory_space<vmem>>, vector<192x192xi32>
    %37 = vector.extract_strided_slice %15 {offsets = [0, 0], sizes = [192, 1], strides = [1, 1]} : vector<192x4xi32> to vector<192x1xi32>
    %38 = vector.broadcast %37 : vector<192x1xi32> to vector<192x192xi32>
    %39 = arith.cmpi eq, %38, %36 : vector<192x192xi32>
    %40 = arith.extui %39 : vector<192x192xi1> to vector<192x192xi32>
    %41 = arith.sitofp %40 : vector<192x192xi32> to vector<192x192xf32>
    %42 = vector.extract_strided_slice %15 {offsets = [0, 1], sizes = [192, 1], strides = [1, 1]} : vector<192x4xi32> to vector<192x1xi32>
    %43 = vector.broadcast %42 : vector<192x1xi32> to vector<192x192xi32>
    %44 = arith.cmpi eq, %43, %36 : vector<192x192xi32>
    %45 = arith.extui %44 : vector<192x192xi1> to vector<192x192xi32>
    %46 = arith.sitofp %45 : vector<192x192xi32> to vector<192x192xf32>
    %47 = arith.addf %41, %46 : vector<192x192xf32>
    %48 = vector.extract_strided_slice %15 {offsets = [0, 2], sizes = [192, 1], strides = [1, 1]} : vector<192x4xi32> to vector<192x1xi32>
    %49 = vector.broadcast %48 : vector<192x1xi32> to vector<192x192xi32>
    %50 = arith.cmpi eq, %49, %36 : vector<192x192xi32>
    %51 = arith.extui %50 : vector<192x192xi1> to vector<192x192xi32>
    %52 = arith.sitofp %51 : vector<192x192xi32> to vector<192x192xf32>
    %53 = arith.addf %47, %52 : vector<192x192xf32>
    %54 = vector.extract_strided_slice %15 {offsets = [0, 3], sizes = [192, 1], strides = [1, 1]} : vector<192x4xi32> to vector<192x1xi32>
    %55 = vector.broadcast %54 : vector<192x1xi32> to vector<192x192xi32>
    %56 = arith.cmpi eq, %55, %36 : vector<192x192xi32>
    %57 = arith.extui %56 : vector<192x192xi1> to vector<192x192xi32>
    %58 = arith.sitofp %57 : vector<192x192xi32> to vector<192x192xf32>
    %59 = arith.addf %53, %58 : vector<192x192xf32>
    %60 = vector.broadcast %29 : vector<192x1xf32> to vector<192x192xf32>
    %61 = arith.mulf %59, %60 : vector<192x192xf32>
    %cst_19 = arith.constant dense<0.000000e+00> : vector<192x64xf32>
    %62 = tpu.matmul %61, %8, %cst_19 {dimension_numbers = #tpu.dot_dimension_numbers<[1], [0], [0], [1], [0, 0, 1, 1], [], []>} : vector<192x192xf32>, vector<192x64xf32>, vector<192x64xf32> -> vector<192x64xf32>
    %c0_20 = arith.constant 0 : index
    %c0_21 = arith.constant 0 : index
    %c0_22 = arith.constant 0 : index
    %63 = vector.load %arg8[%c0_20, %c0_21, %c0_22] : memref<3x128x64xf32, #tpu.memory_space<vmem>>, vector<1x64x64xf32>
    %64 = vector.shape_cast %63 : vector<1x64x64xf32> to vector<64x64xf32>
    %cst_23 = arith.constant dense<0.000000e+00> : vector<192x64xf32>
    %65 = tpu.matmul %8, %64, %cst_23 {dimension_numbers = #tpu.dot_dimension_numbers<[1], [0], [0], [1], [0, 0, 1, 1], [], []>} : vector<192x64xf32>, vector<64x64xf32>, vector<192x64xf32> -> vector<192x64xf32>
    %c0_24 = arith.constant 0 : index
    %c64 = arith.constant 64 : index
    %c0_25 = arith.constant 0 : index
    %66 = vector.load %arg8[%c0_24, %c64, %c0_25] : memref<3x128x64xf32, #tpu.memory_space<vmem>>, vector<1x64x64xf32>
    %67 = vector.shape_cast %66 : vector<1x64x64xf32> to vector<64x64xf32>
    %cst_26 = arith.constant dense<0.000000e+00> : vector<192x64xf32>
    %68 = tpu.matmul %62, %67, %cst_26 {dimension_numbers = #tpu.dot_dimension_numbers<[1], [0], [0], [1], [0, 0, 1, 1], [], []>} : vector<192x64xf32>, vector<64x64xf32>, vector<192x64xf32> -> vector<192x64xf32>
    %69 = arith.addf %65, %68 : vector<192x64xf32>
    %c0_27 = arith.constant 0 : index
    %c0_28 = arith.constant 0 : index
    %c0_29 = arith.constant 0 : index
    %70 = vector.load %arg9[%c0_27, %c0_28, %c0_29] : memref<3x1x64xf32, #tpu.memory_space<vmem>>, vector<1x1x64xf32>
    %71 = vector.shape_cast %70 : vector<1x1x64xf32> to vector<1x64xf32>
    %72 = vector.broadcast %71 : vector<1x64xf32> to vector<192x64xf32>
    %73 = arith.addf %69, %72 : vector<192x64xf32>
    %74 = arith.mulf %73, %35 : vector<192x64xf32>
    %75 = arith.addf %8, %74 : vector<192x64xf32>
    %cst_30 = arith.constant 0.000000e+00 : f32
    %76 = vector.broadcast %cst_30 : f32 to vector<192x64xf32>
    %77 = arith.maximumf %75, %76 : vector<192x64xf32>
    %cst_31 = arith.constant dense<0.000000e+00> : vector<192x64xf32>
    %78 = tpu.matmul %61, %77, %cst_31 {dimension_numbers = #tpu.dot_dimension_numbers<[1], [0], [0], [1], [0, 0, 1, 1], [], []>} : vector<192x192xf32>, vector<192x64xf32>, vector<192x64xf32> -> vector<192x64xf32>
    %c1 = arith.constant 1 : index
    %c0_32 = arith.constant 0 : index
    %c0_33 = arith.constant 0 : index
    %79 = vector.load %arg8[%c1, %c0_32, %c0_33] : memref<3x128x64xf32, #tpu.memory_space<vmem>>, vector<1x64x64xf32>
    %80 = vector.shape_cast %79 : vector<1x64x64xf32> to vector<64x64xf32>
    %cst_34 = arith.constant dense<0.000000e+00> : vector<192x64xf32>
    %81 = tpu.matmul %77, %80, %cst_34 {dimension_numbers = #tpu.dot_dimension_numbers<[1], [0], [0], [1], [0, 0, 1, 1], [], []>} : vector<192x64xf32>, vector<64x64xf32>, vector<192x64xf32> -> vector<192x64xf32>
    %c1_35 = arith.constant 1 : index
    %c64_36 = arith.constant 64 : index
    %c0_37 = arith.constant 0 : index
    %82 = vector.load %arg8[%c1_35, %c64_36, %c0_37] : memref<3x128x64xf32, #tpu.memory_space<vmem>>, vector<1x64x64xf32>
    %83 = vector.shape_cast %82 : vector<1x64x64xf32> to vector<64x64xf32>
    %cst_38 = arith.constant dense<0.000000e+00> : vector<192x64xf32>
    %84 = tpu.matmul %78, %83, %cst_38 {dimension_numbers = #tpu.dot_dimension_numbers<[1], [0], [0], [1], [0, 0, 1, 1], [], []>} : vector<192x64xf32>, vector<64x64xf32>, vector<192x64xf32> -> vector<192x64xf32>
    %85 = arith.addf %81, %84 : vector<192x64xf32>
    %c1_39 = arith.constant 1 : index
    %c0_40 = arith.constant 0 : index
    %c0_41 = arith.constant 0 : index
    %86 = vector.load %arg9[%c1_39, %c0_40, %c0_41] : memref<3x1x64xf32, #tpu.memory_space<vmem>>, vector<1x1x64xf32>
    %87 = vector.shape_cast %86 : vector<1x1x64xf32> to vector<1x64xf32>
    %88 = vector.broadcast %87 : vector<1x64xf32> to vector<192x64xf32>
    %89 = arith.addf %85, %88 : vector<192x64xf32>
    %90 = arith.mulf %89, %35 : vector<192x64xf32>
    %91 = arith.addf %77, %90 : vector<192x64xf32>
    %cst_42 = arith.constant 0.000000e+00 : f32
    %92 = vector.broadcast %cst_42 : f32 to vector<192x64xf32>
    %93 = arith.maximumf %91, %92 : vector<192x64xf32>
    %cst_43 = arith.constant dense<0.000000e+00> : vector<192x64xf32>
    %94 = tpu.matmul %61, %93, %cst_43 {dimension_numbers = #tpu.dot_dimension_numbers<[1], [0], [0], [1], [0, 0, 1, 1], [], []>} : vector<192x192xf32>, vector<192x64xf32>, vector<192x64xf32> -> vector<192x64xf32>
    %c2 = arith.constant 2 : index
    %c0_44 = arith.constant 0 : index
    %c0_45 = arith.constant 0 : index
    %95 = vector.load %arg8[%c2, %c0_44, %c0_45] : memref<3x128x64xf32, #tpu.memory_space<vmem>>, vector<1x64x64xf32>
    %96 = vector.shape_cast %95 : vector<1x64x64xf32> to vector<64x64xf32>
    %cst_46 = arith.constant dense<0.000000e+00> : vector<192x64xf32>
    %97 = tpu.matmul %93, %96, %cst_46 {dimension_numbers = #tpu.dot_dimension_numbers<[1], [0], [0], [1], [0, 0, 1, 1], [], []>} : vector<192x64xf32>, vector<64x64xf32>, vector<192x64xf32> -> vector<192x64xf32>
    %c2_47 = arith.constant 2 : index
    %c64_48 = arith.constant 64 : index
    %c0_49 = arith.constant 0 : index
    %98 = vector.load %arg8[%c2_47, %c64_48, %c0_49] : memref<3x128x64xf32, #tpu.memory_space<vmem>>, vector<1x64x64xf32>
    %99 = vector.shape_cast %98 : vector<1x64x64xf32> to vector<64x64xf32>
    %cst_50 = arith.constant dense<0.000000e+00> : vector<192x64xf32>
    %100 = tpu.matmul %94, %99, %cst_50 {dimension_numbers = #tpu.dot_dimension_numbers<[1], [0], [0], [1], [0, 0, 1, 1], [], []>} : vector<192x64xf32>, vector<64x64xf32>, vector<192x64xf32> -> vector<192x64xf32>
    %101 = arith.addf %97, %100 : vector<192x64xf32>
    %c2_51 = arith.constant 2 : index
    %c0_52 = arith.constant 0 : index
    %c0_53 = arith.constant 0 : index
    %102 = vector.load %arg9[%c2_51, %c0_52, %c0_53] : memref<3x1x64xf32, #tpu.memory_space<vmem>>, vector<1x1x64xf32>
    %103 = vector.shape_cast %102 : vector<1x1x64xf32> to vector<1x64xf32>
    %104 = vector.broadcast %103 : vector<1x64xf32> to vector<192x64xf32>
    %105 = arith.addf %101, %104 : vector<192x64xf32>
    %106 = arith.mulf %105, %35 : vector<192x64xf32>
    %107 = arith.addf %93, %106 : vector<192x64xf32>
    %cst_54 = arith.constant 0.000000e+00 : f32
    %108 = vector.broadcast %cst_54 : f32 to vector<192x64xf32>
    %109 = arith.maximumf %107, %108 : vector<192x64xf32>
    %c0_55 = arith.constant 0 : index
    %c0_56 = arith.constant 0 : index
    %110 = vector.load %arg5[%c0_55, %c0_56] : memref<12x192xf32, #tpu.memory_space<vmem>>, vector<12x192xf32>
    %cst_57 = arith.constant dense<0.000000e+00> : vector<12x64xf32>
    %111 = tpu.matmul %110, %109, %cst_57 {dimension_numbers = #tpu.dot_dimension_numbers<[1], [0], [0], [1], [0, 0, 1, 1], [], []>} : vector<12x192xf32>, vector<192x64xf32>, vector<12x64xf32> -> vector<12x64xf32>
    %c0_58 = arith.constant 0 : index
    %c0_59 = arith.constant 0 : index
    %112 = vector.load %arg10[%c0_58, %c0_59] : memref<64x64xf32, #tpu.memory_space<vmem>>, vector<64x64xf32>
    %cst_60 = arith.constant dense<0.000000e+00> : vector<12x64xf32>
    %113 = tpu.matmul %111, %112, %cst_60 {dimension_numbers = #tpu.dot_dimension_numbers<[1], [0], [0], [1], [0, 0, 1, 1], [], []>} : vector<12x64xf32>, vector<64x64xf32>, vector<12x64xf32> -> vector<12x64xf32>
    %c0_61 = arith.constant 0 : index
    %c0_62 = arith.constant 0 : index
    %114 = vector.load %arg11[%c0_61, %c0_62] : memref<1x64xf32, #tpu.memory_space<vmem>>, vector<1x64xf32>
    %115 = vector.broadcast %114 : vector<1x64xf32> to vector<12x64xf32>
    %116 = arith.addf %113, %115 : vector<12x64xf32>
    %cst_63 = arith.constant 0.000000e+00 : f32
    %117 = vector.broadcast %cst_63 : f32 to vector<12x64xf32>
    %118 = arith.maximumf %116, %117 : vector<12x64xf32>
    %c0_64 = arith.constant 0 : index
    %c0_65 = arith.constant 0 : index
    %119 = vector.load %arg12[%c0_64, %c0_65] : memref<64x1xf32, #tpu.memory_space<vmem>>, vector<64x1xf32>
    %cst_66 = arith.constant dense<0.000000e+00> : vector<12x1xf32>
    %120 = tpu.matmul %118, %119, %cst_66 {dimension_numbers = #tpu.dot_dimension_numbers<[1], [0], [0], [1], [0, 0, 1, 1], [], []>} : vector<12x64xf32>, vector<64x1xf32>, vector<12x1xf32> -> vector<12x1xf32>
    %c0_67 = arith.constant 0 : index
    %c0_68 = arith.constant 0 : index
    %121 = vector.load %arg13[%c0_67, %c0_68] : memref<1x1xf32, #tpu.memory_space<vmem>>, vector<1x1xf32>
    %122 = vector.broadcast %121 : vector<1x1xf32> to vector<12x1xf32>
    %123 = arith.addf %120, %122 : vector<12x1xf32>
    %c0_69 = arith.constant 0 : index
    %c0_70 = arith.constant 0 : index
    %124 = vector.load %arg14[%c0_69, %c0_70] : memref<12x1xf32, #tpu.memory_space<vmem>>, vector<12x1xf32>
    tpu.vector_store %arg14[%c0_69, %c0_70], %123 {strides = array<i32>} : memref<12x1xf32, #tpu.memory_space<vmem>>, vector<12x1xf32>,
    return
  }
  func.func @transform_0(%arg0: i32) -> (i32, i32) {
    %c0_i32 = arith.constant 0 : i32
    %c0_i32_0 = arith.constant 0 : i32
    return %arg0, %c0_i32 : i32, i32
  }
  func.func @transform_1(%arg0: i32) -> (i32, i32) {
    %c0_i32 = arith.constant 0 : i32
    %c0_i32_0 = arith.constant 0 : i32
    return %arg0, %c0_i32 : i32, i32
  }
  func.func @transform_2(%arg0: i32) -> (i32, i32) {
    %c0_i32 = arith.constant 0 : i32
    %c0_i32_0 = arith.constant 0 : i32
    %c0_i32_1 = arith.constant 0 : i32
    return %c0_i32, %c0_i32_0 : i32, i32
  }
  func.func @transform_3(%arg0: i32) -> (i32, i32) {
    %c0_i32 = arith.constant 0 : i32
    %c0_i32_0 = arith.constant 0 : i32
    %c0_i32_1 = arith.constant 0 : i32
    return %c0_i32, %c0_i32_0 : i32, i32
  }
  func.func @transform_4(%arg0: i32) -> (i32, i32) {
    %c0_i32 = arith.constant 0 : i32
    %c0_i32_0 = arith.constant 0 : i32
    %c0_i32_1 = arith.constant 0 : i32
    return %c0_i32, %c0_i32_0 : i32, i32
  }
  func.func @transform_5(%arg0: i32) -> (i32, i32) {
    %c0_i32 = arith.constant 0 : i32
    %c0_i32_0 = arith.constant 0 : i32
    %c0_i32_1 = arith.constant 0 : i32
    return %c0_i32, %c0_i32_0 : i32, i32
  }
  func.func @transform_6(%arg0: i32) -> (i32, i32) {
    %c0_i32 = arith.constant 0 : i32
    %c0_i32_0 = arith.constant 0 : i32
    %c0_i32_1 = arith.constant 0 : i32
    return %c0_i32, %c0_i32_0 : i32, i32
  }
  func.func @transform_7(%arg0: i32) -> (i32, i32, i32) {
    %c0_i32 = arith.constant 0 : i32
    %c0_i32_0 = arith.constant 0 : i32
    %c0_i32_1 = arith.constant 0 : i32
    %c0_i32_2 = arith.constant 0 : i32
    return %c0_i32, %c0_i32_0, %c0_i32_1 : i32, i32, i32
  }
  func.func @transform_8(%arg0: i32) -> (i32, i32, i32) {
    %c0_i32 = arith.constant 0 : i32
    %c0_i32_0 = arith.constant 0 : i32
    %c0_i32_1 = arith.constant 0 : i32
    %c0_i32_2 = arith.constant 0 : i32
    return %c0_i32, %c0_i32_0, %c0_i32_1 : i32, i32, i32
  }
  func.func @transform_9(%arg0: i32) -> (i32, i32) {
    %c0_i32 = arith.constant 0 : i32
    %c0_i32_0 = arith.constant 0 : i32
    %c0_i32_1 = arith.constant 0 : i32
    return %c0_i32, %c0_i32_0 : i32, i32
  }
  func.func @transform_10(%arg0: i32) -> (i32, i32) {
    %c0_i32 = arith.constant 0 : i32
    %c0_i32_0 = arith.constant 0 : i32
    %c0_i32_1 = arith.constant 0 : i32
    return %c0_i32, %c0_i32_0 : i32, i32
  }
  func.func @transform_11(%arg0: i32) -> (i32, i32) {
    %c0_i32 = arith.constant 0 : i32
    %c0_i32_0 = arith.constant 0 : i32
    %c0_i32_1 = arith.constant 0 : i32
    return %c0_i32, %c0_i32_0 : i32, i32
  }
  func.func @transform_12(%arg0: i32) -> (i32, i32) {
    %c0_i32 = arith.constant 0 : i32
    %c0_i32_0 = arith.constant 0 : i32
    %c0_i32_1 = arith.constant 0 : i32
    return %c0_i32, %c0_i32_0 : i32, i32
  }
  func.func @transform_13(%arg0: i32) -> (i32, i32) {
    %c0_i32 = arith.constant 0 : i32
    %c0_i32_0 = arith.constant 0 : i32
    return %arg0, %c0_i32 : i32, i32
  }
}

</mosaic_0001>

<llo_original>
// kernel: tpu_custom_call.1
$region0: #{tpu_custom_call.1}
  #allocation0 [shape = 'u32[]', space=smem, size = 0x4, offset = 0x4, fixed_abs, tag = 'smem constant byte address 0x4 - core index']
  #allocation1 [shape = 'u32[144,128]{1,0:T(1,128)}', space=vmem, size = 0x12000, scoped, tag = 'internal scratch']
  #allocation2 [shape = 'f32[1,1]{1,0:T(1,128)S(1)}', space=vmem, size = 0x200, scoped, tag = 'scoped memory for tpu_custom_call.1']
  %s0 = inlined_call_operand.vmem [shape: f32[192,8], index: 0, kind: input, shape index: {}]
  %s1 = inlined_call_operand.vmem [shape: s32[192,4], index: 1, kind: input, shape index: {}]
  %s2 = inlined_call_operand.vmem [shape: s32[192,1], index: 2, kind: input, shape index: {}]
  %s3 = inlined_call_operand.vmem [shape: s32[192,192], index: 3, kind: input, shape index: {}]
  %s4 = inlined_call_operand.vmem [shape: f32[12,192], index: 4, kind: input, shape index: {}]
  %s5 = inlined_call_operand.vmem [shape: f32[8,64], index: 5, kind: input, shape index: {}]
  %s6 = inlined_call_operand.vmem [shape: f32[1,64], index: 6, kind: input, shape index: {}]
  %s7 = inlined_call_operand.vmem [shape: f32[3,128,64], index: 7, kind: input, shape index: {}]
  %s8 = inlined_call_operand.vmem [shape: f32[3,1,64], index: 8, kind: input, shape index: {}]
  %s9 = inlined_call_operand.vmem [shape: f32[64,64], index: 9, kind: input, shape index: {}]
  %s10 = inlined_call_operand.vmem [shape: f32[1,64], index: 10, kind: input, shape index: {}]
  %s11 = inlined_call_operand.vmem [shape: f32[64,1], index: 11, kind: input, shape index: {}]
  %s12 = inlined_call_operand.<no memory space> [shape: f32[1,1], index: 12, kind: input, shape index: {}]
  %s13 = inlined_call_operand.vmem [shape: f32[12,1], index: 13, kind: output, shape index: {}]
  %s14 = sld [smem:[#allocation0]]
  $region62: #{tpu_custom_call.1} parent=0
    _
  %s16 = ssub.s32 1, %s14
  %s17 = scalar_select 0, %s16, %s14
  %v18 = vstv %s12
  %19 = vst [vmem:[#allocation2] sm:$0x1] %v18
  // Predicated region
  $region2: #{tpu_custom_call.1} parent=0 // pred_check
    _
  $region3: #{tpu_custom_call.1} parent=0 // pred_check_branch
    %21 = sbr.rel (0) target = $region5
  $region4: #{tpu_custom_call.1} parent=0 // pred_region
    _
  $region5: #{tpu_custom_call.1} parent=0 // pred_fallthru
    _
  // Predicated region
  $region6: #{tpu_custom_call.1} parent=0 // pred_check
    _
  $region7: #{tpu_custom_call.1} parent=0 // pred_check_branch
    %23 = sbr.rel (0) target = $region9
  $region8: #{tpu_custom_call.1} parent=0 // pred_region
    _
  $region9: #{tpu_custom_call.1} parent=0 // pred_fallthru
    _
  // Predicated region
  $region10: #{tpu_custom_call.1} parent=0 // pred_check
    _
  $region11: #{tpu_custom_call.1} parent=0 // pred_check_branch
    %25 = sbr.rel (0) target = $region13
  $region12: #{tpu_custom_call.1} parent=0 // pred_region
    _
  $region13: #{tpu_custom_call.1} parent=0 // pred_fallthru
    _
  // Predicated region
  $region14: #{tpu_custom_call.1} parent=0 // pred_check
    _
  $region15: #{tpu_custom_call.1} parent=0 // pred_check_branch
    %27 = sbr.rel (0) target = $region17
  $region16: #{tpu_custom_call.1} parent=0 // pred_region
    _
  $region17: #{tpu_custom_call.1} parent=0 // pred_fallthru
    _
  // Predicated region
  $region18: #{tpu_custom_call.1} parent=0 // pred_check
    _
  $region19: #{tpu_custom_call.1} parent=0 // pred_check_branch
    %29 = sbr.rel (0) target = $region21
  $region20: #{tpu_custom_call.1} parent=0 // pred_region
    _
  $region21: #{tpu_custom_call.1} parent=0 // pred_fallthru
    _
  // Predicated region
  $region22: #{tpu_custom_call.1} parent=0 // pred_check
    _
  $region23: #{tpu_custom_call.1} parent=0 // pred_check_branch
    %31 = sbr.rel (0) target = $region25
  $region24: #{tpu_custom_call.1} parent=0 // pred_region
    _
  $region25: #{tpu_custom_call.1} parent=0 // pred_fallthru
    _
  // Predicated region
  $region26: #{tpu_custom_call.1} parent=0 // pred_check
    _
  $region27: #{tpu_custom_call.1} parent=0 // pred_check_branch
    %33 = sbr.rel (0) target = $region29
  $region28: #{tpu_custom_call.1} parent=0 // pred_region
    _
  $region29: #{tpu_custom_call.1} parent=0 // pred_fallthru
    _
  // Predicated region
  $region30: #{tpu_custom_call.1} parent=0 // pred_check
    _
  $region31: #{tpu_custom_call.1} parent=0 // pred_check_branch
    %35 = sbr.rel (0) target = $region33
  $region32: #{tpu_custom_call.1} parent=0 // pred_region
    _
  $region33: #{tpu_custom_call.1} parent=0 // pred_fallthru
    _
  // Predicated region
  $region34: #{tpu_custom_call.1} parent=0 // pred_check
    _
  $region35: #{tpu_custom_call.1} parent=0 // pred_check_branch
    %37 = sbr.rel (0) target = $region37
  $region36: #{tpu_custom_call.1} parent=0 // pred_region
    _
  $region37: #{tpu_custom_call.1} parent=0 // pred_fallthru
    _
  // Predicated region
  $region38: #{tpu_custom_call.1} parent=0 // pred_check
    _
  $region39: #{tpu_custom_call.1} parent=0 // pred_check_branch
    %39 = sbr.rel (0) target = $region41
  $region40: #{tpu_custom_call.1} parent=0 // pred_region
    _
  $region41: #{tpu_custom_call.1} parent=0 // pred_fallthru
    _
  // Predicated region
  $region42: #{tpu_custom_call.1} parent=0 // pred_check
    _
  $region43: #{tpu_custom_call.1} parent=0 // pred_check_branch
    %41 = sbr.rel (0) target = $region45
  $region44: #{tpu_custom_call.1} parent=0 // pred_region
    _
  $region45: #{tpu_custom_call.1} parent=0 // pred_fallthru
    _
  // Predicated region
  $region46: #{tpu_custom_call.1} parent=0 // pred_check
    _
  $region47: #{tpu_custom_call.1} parent=0 // pred_check_branch
    %43 = sbr.rel (0) target = $region49
  $region48: #{tpu_custom_call.1} parent=0 // pred_region
    _
  $region49: #{tpu_custom_call.1} parent=0 // pred_fallthru
    _
  // Predicated region
  $region50: #{tpu_custom_call.1} parent=0 // pred_check
    _
  $region51: #{tpu_custom_call.1} parent=0 // pred_check_branch
    %45 = sbr.rel (0) target = $region53
  $region52: #{tpu_custom_call.1} parent=0 // pred_region
    _
  $region53: #{tpu_custom_call.1} parent=0 // pred_fallthru
    _
  %v46 = vld [vmem:[%s0] sm:$0xff]
  %v47 = vld [vmem:[%s0 + $0x8] sm:$0xff]
  %v48 = vld [vmem:[%s0 + $0x10] sm:$0xff]
  %v49 = vld [vmem:[%s0 + $0x18] sm:$0xff]
  %v50 = vld [vmem:[%s0 + $0x20] sm:$0xff]
  %v51 = vld [vmem:[%s0 + $0x28] sm:$0xff]
  %v52 = vld [vmem:[%s0 + $0x30] sm:$0xff]
  %v53 = vld [vmem:[%s0 + $0x38] sm:$0xff]
  %v54 = vld [vmem:[%s0 + $0x40] sm:$0xff]
  %v55 = vld [vmem:[%s0 + $0x48] sm:$0xff]
  %v56 = vld [vmem:[%s0 + $0x50] sm:$0xff]
  %v57 = vld [vmem:[%s0 + $0x58] sm:$0xff]
  %v58 = vld [vmem:[%s0 + $0x60] sm:$0xff]
  %v59 = vld [vmem:[%s0 + $0x68] sm:$0xff]
  %v60 = vld [vmem:[%s0 + $0x70] sm:$0xff]
  %v61 = vld [vmem:[%s0 + $0x78] sm:$0xff]
  %v62 = vld [vmem:[%s0 + $0x80] sm:$0xff]
  %v63 = vld [vmem:[%s0 + $0x88] sm:$0xff]
  %v64 = vld [vmem:[%s0 + $0x90] sm:$0xff]
  %v65 = vld [vmem:[%s0 + $0x98] sm:$0xff]
  %v66 = vld [vmem:[%s0 + $0xa0] sm:$0xff]
  %v67 = vld [vmem:[%s0 + $0xa8] sm:$0xff]
  %v68 = vld [vmem:[%s0 + $0xb0] sm:$0xff]
  %v69 = vld [vmem:[%s0 + $0xb8] sm:$0xff]
  %v70 = vld [vmem:[%s1] sm:$0xff]
  %v71 = vld [vmem:[%s1 + $0x8] sm:$0xff]
  %v72 = vld [vmem:[%s1 + $0x10] sm:$0xff]
  %v73 = vld [vmem:[%s1 + $0x18] sm:$0xff]
  %v74 = vld [vmem:[%s1 + $0x20] sm:$0xff]
  %v75 = vld [vmem:[%s1 + $0x28] sm:$0xff]
  %v76 = vld [vmem:[%s1 + $0x30] sm:$0xff]
  %v77 = vld [vmem:[%s1 + $0x38] sm:$0xff]
  %v78 = vld [vmem:[%s1 + $0x40] sm:$0xff]
  %v79 = vld [vmem:[%s1 + $0x48] sm:$0xff]
  %v80 = vld [vmem:[%s1 + $0x50] sm:$0xff]
  %v81 = vld [vmem:[%s1 + $0x58] sm:$0xff]
  %v82 = vld [vmem:[%s1 + $0x60] sm:$0xff]
  %v83 = vld [vmem:[%s1 + $0x68] sm:$0xff]
  %v84 = vld [vmem:[%s1 + $0x70] sm:$0xff]
  %v85 = vld [vmem:[%s1 + $0x78] sm:$0xff]
  %v86 = vld [vmem:[%s1 + $0x80] sm:$0xff]
  %v87 = vld [vmem:[%s1 + $0x88] sm:$0xff]
  %v88 = vld [vmem:[%s1 + $0x90] sm:$0xff]
  %v89 = vld [vmem:[%s1 + $0x98] sm:$0xff]
  %v90 = vld [vmem:[%s1 + $0xa0] sm:$0xff]
  %v91 = vld [vmem:[%s1 + $0xa8] sm:$0xff]
  %v92 = vld [vmem:[%s1 + $0xb0] sm:$0xff]
  %v93 = vld [vmem:[%s1 + $0xb8] sm:$0xff]
  %v94 = vld [vmem:[%s5] sm:$0xff]
  %v95 = vld [vmem:[%s6] sm:$0x1]
  %v97 = vlaneseq
  %v98 = vshrl.u32 %v97, 7
  %v99 = vsub.s32 0, %v98
  %v100 = vrot.slane %v95, %v99
  %vm102 = vcmask 64512
  %v104 = vsel %vm102, %v46, 0
  %v107 = vsel %vm102, %v47, 0
  %v110 = vsel %vm102, %v48, 0
  %v113 = vsel %vm102, %v49, 0
  %v116 = vsel %vm102, %v50, 0
  %v119 = vsel %vm102, %v51, 0
  %v122 = vsel %vm102, %v52, 0
  %v125 = vsel %vm102, %v53, 0
  %v128 = vsel %vm102, %v54, 0
  %v131 = vsel %vm102, %v55, 0
  %v134 = vsel %vm102, %v56, 0
  %v137 = vsel %vm102, %v57, 0
  %v140 = vsel %vm102, %v58, 0
  %v143 = vsel %vm102, %v59, 0
  %v146 = vsel %vm102, %v60, 0
  %v149 = vsel %vm102, %v61, 0
  %v152 = vsel %vm102, %v62, 0
  %v155 = vsel %vm102, %v63, 0
  %v158 = vsel %vm102, %v64, 0
  %v161 = vsel %vm102, %v65, 0
  %v164 = vsel %vm102, %v66, 0
  %v167 = vsel %vm102, %v67, 0
  %v170 = vsel %vm102, %v68, 0
  %v173 = vsel %vm102, %v69, 0
  %175 = vmatprep.subr.mxu0 0.0
  %176 = vmatpush1.msra.mxu0 %v94
  %177 = vmatprep.subr.mxu0 0.0
  %178 = vmatpush1.msra.mxu0 0.0
  %179 = vmatprep.subr.mxu0 0.0
  %180 = vmatpush1.msra.mxu0 0.0
  %181 = vmatprep.subr.mxu0 0.0
  %182 = vmatpush1.msra.mxu0 0.0
  %183 = vmatprep.subr.mxu0 0.0
  %184 = vmatpush1.msra.mxu0 0.0
  %185 = vmatprep.subr.mxu0 0.0
  %186 = vmatpush1.msra.mxu0 0.0
  %187 = vmatprep.subr.mxu0 0.0
  %188 = vmatpush1.msra.mxu0 0.0
  %189 = vmatprep.subr.mxu0 0.0
  %190 = vmatpush1.msra.mxu0 0.0
  %191 = vmatprep.subr.mxu0 0.0
  %192 = vmatpush1.msra.mxu0 0.0
  %193 = vmatprep.subr.mxu0 0.0
  %194 = vmatpush1.msra.mxu0 0.0
  %195 = vmatprep.subr.mxu0 0.0
  %196 = vmatpush1.msra.mxu0 0.0
  %197 = vmatprep.subr.mxu0 0.0
  %198 = vmatpush1.msra.mxu0 0.0
  %199 = vmatprep.subr.mxu0 0.0
  %200 = vmatpush1.msra.mxu0 0.0
  %201 = vmatprep.subr.mxu0 0.0
  %202 = vmatpush1.msra.mxu0 0.0
  %203 = vmatprep.subr.mxu0 0.0
  %204 = vmatpush1.msra.mxu0 0.0
  %205 = vmatprep.subr.mxu0 0.0
  %206 = vmatpush1.msra.mxu0 0.0
  %207 = vmatprep.subr.mxu0 0.0
  %208 = vmatpush1.msra.mxu0 0.0
  %209 = vmatprep.subr.mxu0 0.0
  %210 = vmatpush1.msra.mxu0 0.0
  %211 = vmatprep.subr.mxu0 0.0
  %212 = vmatpush1.msra.mxu0 0.0
  %213 = vmatprep.subr.mxu0 0.0
  %214 = vmatpush1.msra.mxu0 0.0
  %215 = vmatprep.subr.mxu0 0.0
  %216 = vmatpush1.msra.mxu0 0.0
  %217 = vmatprep.subr.mxu0 0.0
  %218 = vmatpush1.msra.mxu0 0.0
  %219 = vmatprep.subr.mxu0 0.0
  %220 = vmatpush1.msra.mxu0 0.0
  %221 = vmatprep.subr.mxu0 0.0
  %222 = vmatpush1.msra.mxu0 0.0
  %223 = vmatprep.subr.mxu0 0.0
  %224 = vmatpush1.msra.mxu0 0.0
  %225 = vmatprep.subr.mxu0 0.0
  %226 = vmatpush1.msra.mxu0 0.0
  %227 = vmatprep.subr.mxu0 0.0
  %228 = vmatpush1.msra.mxu0 0.0
  %229 = vmatprep.subr.mxu0 0.0
  %230 = vmatpush1.msra.mxu0 0.0
  %231 = vmatprep.subr.mxu0 0.0
  %232 = vmatpush1.msra.mxu0 0.0
  %233 = vmatprep.subr.mxu0 0.0
  %234 = vmatpush1.msra.mxu0 0.0
  %235 = vmatprep.subr.mxu0 0.0
  %236 = vmatpush1.msra.mxu0 0.0
  %237 = vmatprep.subr.mxu0 0.0
  %238 = vmatpush1.msra.mxu0 0.0
  %239 = vmatprep.mubr.f32.mxu0 0.0
  %240 = vmatmul.mubr.f32.gmra.mrb[0].mxu0 %v104
  %v241 = vpop.f32.mrb[0].mxu0
  %v242 = vadd.f32 %v100, %v241
  %v243 = vpop.f32.mrb[0].mxu0
  %244 = vmatprep.mubr.f32.mxu0 0.0
  %245 = vmatmul.mubr.f32.gmra.mrb[0].mxu0 %v107
  %v246 = vpop.f32.mrb[0].mxu0
  %v247 = vadd.f32 %v100, %v246
  %v248 = vpop.f32.mrb[0].mxu0
  %249 = vmatprep.mubr.f32.mxu0 0.0
  %250 = vmatmul.mubr.f32.gmra.mrb[0].mxu0 %v110
  %v251 = vpop.f32.mrb[0].mxu0
  %v252 = vadd.f32 %v100, %v251
  %v253 = vpop.f32.mrb[0].mxu0
  %254 = vmatprep.mubr.f32.mxu0 0.0
  %255 = vmatmul.mubr.f32.gmra.mrb[0].mxu0 %v113
  %v256 = vpop.f32.mrb[0].mxu0
  %v257 = vadd.f32 %v100, %v256
  %v258 = vpop.f32.mrb[0].mxu0
  %259 = vmatprep.mubr.f32.mxu0 0.0
  %260 = vmatmul.mubr.f32.gmra.mrb[0].mxu0 %v116
  %v261 = vpop.f32.mrb[0].mxu0
  %v262 = vadd.f32 %v100, %v261
  %v263 = vpop.f32.mrb[0].mxu0
  %264 = vmatprep.mubr.f32.mxu0 0.0
  %265 = vmatmul.mubr.f32.gmra.mrb[0].mxu0 %v119
  %v266 = vpop.f32.mrb[0].mxu0
  %v267 = vadd.f32 %v100, %v266
  %v268 = vpop.f32.mrb[0].mxu0
  %269 = vmatprep.mubr.f32.mxu0 0.0
  %270 = vmatmul.mubr.f32.gmra.mrb[0].mxu0 %v122
  %v271 = vpop.f32.mrb[0].mxu0
  %v272 = vadd.f32 %v100, %v271
  %v273 = vpop.f32.mrb[0].mxu0
  %274 = vmatprep.mubr.f32.mxu0 0.0
  %275 = vmatmul.mubr.f32.gmra.mrb[0].mxu0 %v125
  %v276 = vpop.f32.mrb[0].mxu0
  %v277 = vadd.f32 %v100, %v276
  %v278 = vpop.f32.mrb[0].mxu0
  %279 = vmatprep.mubr.f32.mxu0 0.0
  %280 = vmatmul.mubr.f32.gmra.mrb[0].mxu0 %v128
  %v281 = vpop.f32.mrb[0].mxu0
  %v282 = vadd.f32 %v100, %v281
  %v283 = vpop.f32.mrb[0].mxu0
  %284 = vmatprep.mubr.f32.mxu0 0.0
  %285 = vmatmul.mubr.f32.gmra.mrb[0].mxu0 %v131
  %v286 = vpop.f32.mrb[0].mxu0
  %v287 = vadd.f32 %v100, %v286
  %v288 = vpop.f32.mrb[0].mxu0
  %289 = vmatprep.mubr.f32.mxu0 0.0
  %290 = vmatmul.mubr.f32.gmra.mrb[0].mxu0 %v134
  %v291 = vpop.f32.mrb[0].mxu0
  %v292 = vadd.f32 %v100, %v291
  %v293 = vpop.f32.mrb[0].mxu0
  %294 = vmatprep.mubr.f32.mxu0 0.0
  %295 = vmatmul.mubr.f32.gmra.mrb[0].mxu0 %v137
  %v296 = vpop.f32.mrb[0].mxu0
  %v297 = vadd.f32 %v100, %v296
  %v298 = vpop.f32.mrb[0].mxu0
  %299 = vmatprep.mubr.f32.mxu0 0.0
  %300 = vmatmul.mubr.f32.gmra.mrb[0].mxu0 %v140
  %v301 = vpop.f32.mrb[0].mxu0
  %v302 = vadd.f32 %v100, %v301
  %v303 = vpop.f32.mrb[0].mxu0
  %304 = vmatprep.mubr.f32.mxu0 0.0
  %305 = vmatmul.mubr.f32.gmra.mrb[0].mxu0 %v143
  %v306 = vpop.f32.mrb[0].mxu0
  %v307 = vadd.f32 %v100, %v306
  %v308 = vpop.f32.mrb[0].mxu0
  %309 = vmatprep.mubr.f32.mxu0 0.0
  %310 = vmatmul.mubr.f32.gmra.mrb[0].mxu0 %v146
  %v311 = vpop.f32.mrb[0].mxu0
  %v312 = vadd.f32 %v100, %v311
  %v313 = vpop.f32.mrb[0].mxu0
  %314 = vmatprep.mubr.f32.mxu0 0.0
  %315 = vmatmul.mubr.f32.gmra.mrb[0].mxu0 %v149
  %v316 = vpop.f32.mrb[0].mxu0
  %v317 = vadd.f32 %v100, %v316
  %v318 = vpop.f32.mrb[0].mxu0
  %319 = vmatprep.mubr.f32.mxu0 0.0
  %320 = vmatmul.mubr.f32.gmra.mrb[0].mxu0 %v152
  %v321 = vpop.f32.mrb[0].mxu0
  %v322 = vadd.f32 %v100, %v321
  %v323 = vpop.f32.mrb[0].mxu0
  %324 = vmatprep.mubr.f32.mxu0 0.0
  %325 = vmatmul.mubr.f32.gmra.mrb[0].mxu0 %v155
  %v326 = vpop.f32.mrb[0].mxu0
  %v327 = vadd.f32 %v100, %v326
  %v328 = vpop.f32.mrb[0].mxu0
  %329 = vmatprep.mubr.f32.mxu0 0.0
  %330 = vmatmul.mubr.f32.gmra.mrb[0].mxu0 %v158
  %v331 = vpop.f32.mrb[0].mxu0
  %v332 = vadd.f32 %v100, %v331
  %v333 = vpop.f32.mrb[0].mxu0
  %334 = vmatprep.mubr.f32.mxu0 0.0
  %335 = vmatmul.mubr.f32.gmra.mrb[0].mxu0 %v161
  %v336 = vpop.f32.mrb[0].mxu0
  %v337 = vadd.f32 %v100, %v336
  %v338 = vpop.f32.mrb[0].mxu0
  %339 = vmatprep.mubr.f32.mxu0 0.0
  %340 = vmatmul.mubr.f32.gmra.mrb[0].mxu0 %v164
  %v341 = vpop.f32.mrb[0].mxu0
  %v342 = vadd.f32 %v100, %v341
  %v343 = vpop.f32.mrb[0].mxu0
  %344 = vmatprep.mubr.f32.mxu0 0.0
  %345 = vmatmul.mubr.f32.gmra.mrb[0].mxu0 %v167
  %v346 = vpop.f32.mrb[0].mxu0
  %v347 = vadd.f32 %v100, %v346
  %v348 = vpop.f32.mrb[0].mxu0
  %349 = vmatprep.mubr.f32.mxu0 0.0
  %350 = vmatmul.mubr.f32.gmra.mrb[0].mxu0 %v170
  %v351 = vpop.f32.mrb[0].mxu0
  %v352 = vadd.f32 %v100, %v351
  %v353 = vpop.f32.mrb[0].mxu0
  %354 = vmatprep.mubr.f32.mxu0 0.0
  %355 = vmatmul.mubr.f32.gmra.mrb[0].mxu0 %v173
  %v356 = vpop.f32.mrb[0].mxu0
  %v357 = vadd.f32 %v100, %v356
  %v358 = vpop.f32.mrb[0].mxu0
  %359 = vdwg.mxu0
  %v360 = vmax.f32 %v242, 0.0
  %v361 = vmax.f32 %v247, 0.0
  %v362 = vmax.f32 %v252, 0.0
  %v363 = vmax.f32 %v257, 0.0
  %v364 = vmax.f32 %v262, 0.0
  %v365 = vmax.f32 %v267, 0.0
  %v366 = vmax.f32 %v272, 0.0
  %v367 = vmax.f32 %v277, 0.0
  %v368 = vmax.f32 %v282, 0.0
  %v369 = vmax.f32 %v287, 0.0
  %v370 = vmax.f32 %v292, 0.0
  %v371 = vmax.f32 %v297, 0.0
  %v372 = vmax.f32 %v302, 0.0
  %v373 = vmax.f32 %v307, 0.0
  %v374 = vmax.f32 %v312, 0.0
  %v375 = vmax.f32 %v317, 0.0
  %v376 = vmax.f32 %v322, 0.0
  %v377 = vmax.f32 %v327, 0.0
  %v378 = vmax.f32 %v332, 0.0
  %v379 = vmax.f32 %v337, 0.0
  %v380 = vmax.f32 %v342, 0.0
  %v381 = vmax.f32 %v347, 0.0
  %v382 = vmax.f32 %v352, 0.0
  %v383 = vmax.f32 %v357, 0.0
  %vm384 = vcmp.ge.s32.totalorder %v70, 0
  %vm385 = vcmp.ge.s32.totalorder %v71, 0
  %vm386 = vcmp.ge.s32.totalorder %v72, 0
  %vm387 = vcmp.ge.s32.totalorder %v73, 0
  %vm388 = vcmp.ge.s32.totalorder %v74, 0
  %vm389 = vcmp.ge.s32.totalorder %v75, 0
  %vm390 = vcmp.ge.s32.totalorder %v76, 0
  %vm391 = vcmp.ge.s32.totalorder %v77, 0
  %vm392 = vcmp.ge.s32.totalorder %v78, 0
  %vm393 = vcmp.ge.s32.totalorder %v79, 0
  %vm394 = vcmp.ge.s32.totalorder %v80, 0
  %vm395 = vcmp.ge.s32.totalorder %v81, 0
  %vm396 = vcmp.ge.s32.totalorder %v82, 0
  %vm397 = vcmp.ge.s32.totalorder %v83, 0
  %vm398 = vcmp.ge.s32.totalorder %v84, 0
  %vm399 = vcmp.ge.s32.totalorder %v85, 0
  %vm400 = vcmp.ge.s32.totalorder %v86, 0
  %vm401 = vcmp.ge.s32.totalorder %v87, 0
  %vm402 = vcmp.ge.s32.totalorder %v88, 0
  %vm403 = vcmp.ge.s32.totalorder %v89, 0
  %vm404 = vcmp.ge.s32.totalorder %v90, 0
  %vm405 = vcmp.ge.s32.totalorder %v91, 0
  %vm406 = vcmp.ge.s32.totalorder %v92, 0
  %vm407 = vcmp.ge.s32.totalorder %v93, 0
  %v408 = vld [vmem:[%s2] sm:$0xff]
  %v409 = vld [vmem:[%s2 + $0x8] sm:$0xff]
  %v410 = vld [vmem:[%s2 + $0x10] sm:$0xff]
  %v411 = vld [vmem:[%s2 + $0x18] sm:$0xff]
  %v412 = vld [vmem:[%s2 + $0x20] sm:$0xff]
  %v413 = vld [vmem:[%s2 + $0x28] sm:$0xff]
  %v414 = vld [vmem:[%s2 + $0x30] sm:$0xff]
  %v415 = vld [vmem:[%s2 + $0x38] sm:$0xff]
  %v416 = vld [vmem:[%s2 + $0x40] sm:$0xff]
  %v417 = vld [vmem:[%s2 + $0x48] sm:$0xff]
  %v418 = vld [vmem:[%s2 + $0x50] sm:$0xff]
  %v419 = vld [vmem:[%s2 + $0x58] sm:$0xff]
  %v420 = vld [vmem:[%s2 + $0x60] sm:$0xff]
  %v421 = vld [vmem:[%s2 + $0x68] sm:$0xff]
  %v422 = vld [vmem:[%s2 + $0x70] sm:$0xff]
  %v423 = vld [vmem:[%s2 + $0x78] sm:$0xff]
  %v424 = vld [vmem:[%s2 + $0x80] sm:$0xff]
  %v425 = vld [vmem:[%s2 + $0x88] sm:$0xff]
  %v426 = vld [vmem:[%s2 + $0x90] sm:$0xff]
  %v427 = vld [vmem:[%s2 + $0x98] sm:$0xff]
  %v428 = vld [vmem:[%s2 + $0xa0] sm:$0xff]
  %v429 = vld [vmem:[%s2 + $0xa8] sm:$0xff]
  %v430 = vld [vmem:[%s2 + $0xb0] sm:$0xff]
  %v431 = vld [vmem:[%s2 + $0xb8] sm:$0xff]
  %432 = vset.pattern.permute.xlu0 0
  %433 = vperm.xlu0 %432, %v408
  %v434 = vpop.permute.xlu0 %433
  %435 = vset.pattern.permute.xlu0 0
  %436 = vperm.xlu0 %435, %v409
  %v437 = vpop.permute.xlu0 %436
  %438 = vset.pattern.permute.xlu0 0
  %439 = vperm.xlu0 %438, %v410
  %v440 = vpop.permute.xlu0 %439
  %441 = vset.pattern.permute.xlu0 0
  %442 = vperm.xlu0 %441, %v411
  %v443 = vpop.permute.xlu0 %442
  %444 = vset.pattern.permute.xlu0 0
  %445 = vperm.xlu0 %444, %v412
  %v446 = vpop.permute.xlu0 %445
  %447 = vset.pattern.permute.xlu0 0
  %448 = vperm.xlu0 %447, %v413
  %v449 = vpop.permute.xlu0 %448
  %450 = vset.pattern.permute.xlu0 0
  %451 = vperm.xlu0 %450, %v414
  %v452 = vpop.permute.xlu0 %451
  %453 = vset.pattern.permute.xlu0 0
  %454 = vperm.xlu0 %453, %v415
  %v455 = vpop.permute.xlu0 %454
  %456 = vset.pattern.permute.xlu0 0
  %457 = vperm.xlu0 %456, %v416
  %v458 = vpop.permute.xlu0 %457
  %459 = vset.pattern.permute.xlu0 0
  %460 = vperm.xlu0 %459, %v417
  %v461 = vpop.permute.xlu0 %460
  %462 = vset.pattern.permute.xlu0 0
  %463 = vperm.xlu0 %462, %v418
  %v464 = vpop.permute.xlu0 %463
  %465 = vset.pattern.permute.xlu0 0
  %466 = vperm.xlu0 %465, %v419
  %v467 = vpop.permute.xlu0 %466
  %468 = vset.pattern.permute.xlu0 0
  %469 = vperm.xlu0 %468, %v420
  %v470 = vpop.permute.xlu0 %469
  %471 = vset.pattern.permute.xlu0 0
  %472 = vperm.xlu0 %471, %v421
  %v473 = vpop.permute.xlu0 %472
  %474 = vset.pattern.permute.xlu0 0
  %475 = vperm.xlu0 %474, %v422
  %v476 = vpop.permute.xlu0 %475
  %477 = vset.pattern.permute.xlu0 0
  %478 = vperm.xlu0 %477, %v423
  %v479 = vpop.permute.xlu0 %478
  %480 = vset.pattern.permute.xlu0 0
  %481 = vperm.xlu0 %480, %v424
  %v482 = vpop.permute.xlu0 %481
  %483 = vset.pattern.permute.xlu0 0
  %484 = vperm.xlu0 %483, %v425
  %v485 = vpop.permute.xlu0 %484
  %486 = vset.pattern.permute.xlu0 0
  %487 = vperm.xlu0 %486, %v426
  %v488 = vpop.permute.xlu0 %487
  %489 = vset.pattern.permute.xlu0 0
  %490 = vperm.xlu0 %489, %v427
  %v491 = vpop.permute.xlu0 %490
  %492 = vset.pattern.permute.xlu0 0
  %493 = vperm.xlu0 %492, %v428
  %v494 = vpop.permute.xlu0 %493
  %495 = vset.pattern.permute.xlu0 0
  %496 = vperm.xlu0 %495, %v429
  %v497 = vpop.permute.xlu0 %496
  %498 = vset.pattern.permute.xlu0 0
  %499 = vperm.xlu0 %498, %v430
  %v500 = vpop.permute.xlu0 %499
  %501 = vset.pattern.permute.xlu0 0
  %502 = vperm.xlu0 %501, %v431
  %v503 = vpop.permute.xlu0 %502
  %v504 = vadd.s32 %v70, %v434
  %v505 = vadd.s32 %v71, %v437
  %v506 = vadd.s32 %v72, %v440
  %v507 = vadd.s32 %v73, %v443
  %v508 = vadd.s32 %v74, %v446
  %v509 = vadd.s32 %v75, %v449
  %v510 = vadd.s32 %v76, %v452
  %v511 = vadd.s32 %v77, %v455
  %v512 = vadd.s32 %v78, %v458
  %v513 = vadd.s32 %v79, %v461
  %v514 = vadd.s32 %v80, %v464
  %v515 = vadd.s32 %v81, %v467
  %v516 = vadd.s32 %v82, %v470
  %v517 = vadd.s32 %v83, %v473
  %v518 = vadd.s32 %v84, %v476
  %v519 = vadd.s32 %v85, %v479
  %v520 = vadd.s32 %v86, %v482
  %v521 = vadd.s32 %v87, %v485
  %v522 = vadd.s32 %v88, %v488
  %v523 = vadd.s32 %v89, %v491
  %v524 = vadd.s32 %v90, %v494
  %v525 = vadd.s32 %v91, %v497
  %v526 = vadd.s32 %v92, %v500
  %v527 = vadd.s32 %v93, %v503
  %v528 = vsel %vm384, %v504, 4294967295
  %v529 = vsel %vm385, %v505, 4294967295
  %v530 = vsel %vm386, %v506, 4294967295
  %v531 = vsel %vm387, %v507, 4294967295
  %v532 = vsel %vm388, %v508, 4294967295
  %v533 = vsel %vm389, %v509, 4294967295
  %v534 = vsel %vm390, %v510, 4294967295
  %v535 = vsel %vm391, %v511, 4294967295
  %v536 = vsel %vm392, %v512, 4294967295
  %v537 = vsel %vm393, %v513, 4294967295
  %v538 = vsel %vm394, %v514, 4294967295
  %v539 = vsel %vm395, %v515, 4294967295
  %v540 = vsel %vm396, %v516, 4294967295
  %v541 = vsel %vm397, %v517, 4294967295
  %v542 = vsel %vm398, %v518, 4294967295
  %v543 = vsel %vm399, %v519, 4294967295
  %v544 = vsel %vm400, %v520, 4294967295
  %v545 = vsel %vm401, %v521, 4294967295
  %v546 = vsel %vm402, %v522, 4294967295
  %v547 = vsel %vm403, %v523, 4294967295
  %v548 = vsel %vm404, %v524, 4294967295
  %v549 = vsel %vm405, %v525, 4294967295
  %v550 = vsel %vm406, %v526, 4294967295
  %v551 = vsel %vm407, %v527, 4294967295
  %vm552 = vcmp.ge.s32.totalorder %v528, 0
  %vm553 = vcmp.ge.s32.totalorder %v529, 0
  %vm554 = vcmp.ge.s32.totalorder %v530, 0
  %vm555 = vcmp.ge.s32.totalorder %v531, 0
  %vm556 = vcmp.ge.s32.totalorder %v532, 0
  %vm557 = vcmp.ge.s32.totalorder %v533, 0
  %vm558 = vcmp.ge.s32.totalorder %v534, 0
  %vm559 = vcmp.ge.s32.totalorder %v535, 0
  %vm560 = vcmp.ge.s32.totalorder %v536, 0
  %vm561 = vcmp.ge.s32.totalorder %v537, 0
  %vm562 = vcmp.ge.s32.totalorder %v538, 0
  %vm563 = vcmp.ge.s32.totalorder %v539, 0
  %vm564 = vcmp.ge.s32.totalorder %v540, 0
  %vm565 = vcmp.ge.s32.totalorder %v541, 0
  %vm566 = vcmp.ge.s32.totalorder %v542, 0
  %vm567 = vcmp.ge.s32.totalorder %v543, 0
  %vm568 = vcmp.ge.s32.totalorder %v544, 0
  %vm569 = vcmp.ge.s32.totalorder %v545, 0
  %vm570 = vcmp.ge.s32.totalorder %v546, 0
  %vm571 = vcmp.ge.s32.totalorder %v547, 0
  %vm572 = vcmp.ge.s32.totalorder %v548, 0
  %vm573 = vcmp.ge.s32.totalorder %v549, 0
  %vm574 = vcmp.ge.s32.totalorder %v550, 0
  %vm575 = vcmp.ge.s32.totalorder %v551, 0
  %v576 = vsel %vm552, 1, 0
  %v577 = vsel %vm553, 1, 0
  %v578 = vsel %vm554, 1, 0
  %v579 = vsel %vm555, 1, 0
  %v580 = vsel %vm556, 1, 0
  %v581 = vsel %vm557, 1, 0
  %v582 = vsel %vm558, 1, 0
  %v583 = vsel %vm559, 1, 0
  %v584 = vsel %vm560, 1, 0
  %v585 = vsel %vm561, 1, 0
  %v586 = vsel %vm562, 1, 0
  %v587 = vsel %vm563, 1, 0
  %v588 = vsel %vm564, 1, 0
  %v589 = vsel %vm565, 1, 0
  %v590 = vsel %vm566, 1, 0
  %v591 = vsel %vm567, 1, 0
  %v592 = vsel %vm568, 1, 0
  %v593 = vsel %vm569, 1, 0
  %v594 = vsel %vm570, 1, 0
  %v595 = vsel %vm571, 1, 0
  %v596 = vsel %vm572, 1, 0
  %v597 = vsel %vm573, 1, 0
  %v598 = vsel %vm574, 1, 0
  %v599 = vsel %vm575, 1, 0
  %v600 = vcvt.s32.f32 %v576
  %v601 = vcvt.s32.f32 %v577
  %v602 = vcvt.s32.f32 %v578
  %v603 = vcvt.s32.f32 %v579
  %v604 = vcvt.s32.f32 %v580
  %v605 = vcvt.s32.f32 %v581
  %v606 = vcvt.s32.f32 %v582
  %v607 = vcvt.s32.f32 %v583
  %v608 = vcvt.s32.f32 %v584
  %v609 = vcvt.s32.f32 %v585
  %v610 = vcvt.s32.f32 %v586
  %v611 = vcvt.s32.f32 %v587
  %v612 = vcvt.s32.f32 %v588
  %v613 = vcvt.s32.f32 %v589
  %v614 = vcvt.s32.f32 %v590
  %v615 = vcvt.s32.f32 %v591
  %v616 = vcvt.s32.f32 %v592
  %v617 = vcvt.s32.f32 %v593
  %v618 = vcvt.s32.f32 %v594
  %v619 = vcvt.s32.f32 %v595
  %v620 = vcvt.s32.f32 %v596
  %v621 = vcvt.s32.f32 %v597
  %v622 = vcvt.s32.f32 %v598
  %v623 = vcvt.s32.f32 %v599
  %vm624 = vcmask 31744
  %v625 = vsel %vm624, %v600, 0.0
  %626 = vadd.xlane.f32.xlu0 %v625
  %v627 = vpop.xlane.xlu0 %626
  %v628 = vsel %vm624, %v601, 0.0
  %629 = vadd.xlane.f32.xlu0 %v628
  %v630 = vpop.xlane.xlu0 %629
  %v631 = vsel %vm624, %v602, 0.0
  %632 = vadd.xlane.f32.xlu0 %v631
  %v633 = vpop.xlane.xlu0 %632
  %v634 = vsel %vm624, %v603, 0.0
  %635 = vadd.xlane.f32.xlu0 %v634
  %v636 = vpop.xlane.xlu0 %635
  %v637 = vsel %vm624, %v604, 0.0
  %638 = vadd.xlane.f32.xlu0 %v637
  %v639 = vpop.xlane.xlu0 %638
  %v640 = vsel %vm624, %v605, 0.0
  %641 = vadd.xlane.f32.xlu0 %v640
  %v642 = vpop.xlane.xlu0 %641
  %v643 = vsel %vm624, %v606, 0.0
  %644 = vadd.xlane.f32.xlu0 %v643
  %v645 = vpop.xlane.xlu0 %644
  %v646 = vsel %vm624, %v607, 0.0
  %647 = vadd.xlane.f32.xlu0 %v646
  %v648 = vpop.xlane.xlu0 %647
  %v649 = vsel %vm624, %v608, 0.0
  %650 = vadd.xlane.f32.xlu0 %v649
  %v651 = vpop.xlane.xlu0 %650
  %v652 = vsel %vm624, %v609, 0.0
  %653 = vadd.xlane.f32.xlu0 %v652
  %v654 = vpop.xlane.xlu0 %653
  %v655 = vsel %vm624, %v610, 0.0
  %656 = vadd.xlane.f32.xlu0 %v655
  %v657 = vpop.xlane.xlu0 %656
  %v658 = vsel %vm624, %v611, 0.0
  %659 = vadd.xlane.f32.xlu0 %v658
  %v660 = vpop.xlane.xlu0 %659
  %v661 = vsel %vm624, %v612, 0.0
  %662 = vadd.xlane.f32.xlu0 %v661
  %v663 = vpop.xlane.xlu0 %662
  %v664 = vsel %vm624, %v613, 0.0
  %665 = vadd.xlane.f32.xlu0 %v664
  %v666 = vpop.xlane.xlu0 %665
  %v667 = vsel %vm624, %v614, 0.0
  %668 = vadd.xlane.f32.xlu0 %v667
  %v669 = vpop.xlane.xlu0 %668
  %v670 = vsel %vm624, %v615, 0.0
  %671 = vadd.xlane.f32.xlu0 %v670
  %v672 = vpop.xlane.xlu0 %671
  %v673 = vsel %vm624, %v616, 0.0
  %674 = vadd.xlane.f32.xlu0 %v673
  %v675 = vpop.xlane.xlu0 %674
  %v676 = vsel %vm624, %v617, 0.0
  %677 = vadd.xlane.f32.xlu0 %v676
  %v678 = vpop.xlane.xlu0 %677
  %v679 = vsel %vm624, %v618, 0.0
  %680 = vadd.xlane.f32.xlu0 %v679
  %v681 = vpop.xlane.xlu0 %680
  %v682 = vsel %vm624, %v619, 0.0
  %683 = vadd.xlane.f32.xlu0 %v682
  %v684 = vpop.xlane.xlu0 %683
  %v685 = vsel %vm624, %v620, 0.0
  %686 = vadd.xlane.f32.xlu0 %v685
  %v687 = vpop.xlane.xlu0 %686
  %v688 = vsel %vm624, %v621, 0.0
  %689 = vadd.xlane.f32.xlu0 %v688
  %v690 = vpop.xlane.xlu0 %689
  %v691 = vsel %vm624, %v622, 0.0
  %692 = vadd.xlane.f32.xlu0 %v691
  %v693 = vpop.xlane.xlu0 %692
  %v694 = vsel %vm624, %v623, 0.0
  %695 = vadd.xlane.f32.xlu0 %v694
  %v696 = vpop.xlane.xlu0 %695
  %vm697 = vcmp.gt.f32.partialorder %v627, 0.0
  %vm698 = vcmp.gt.f32.partialorder %v630, 0.0
  %vm699 = vcmp.gt.f32.partialorder %v633, 0.0
  %vm700 = vcmp.gt.f32.partialorder %v636, 0.0
  %vm701 = vcmp.gt.f32.partialorder %v639, 0.0
  %vm702 = vcmp.gt.f32.partialorder %v642, 0.0
  %vm703 = vcmp.gt.f32.partialorder %v645, 0.0
  %vm704 = vcmp.gt.f32.partialorder %v648, 0.0
  %vm705 = vcmp.gt.f32.partialorder %v651, 0.0
  %vm706 = vcmp.gt.f32.partialorder %v654, 0.0
  %vm707 = vcmp.gt.f32.partialorder %v657, 0.0
  %vm708 = vcmp.gt.f32.partialorder %v660, 0.0
  %vm709 = vcmp.gt.f32.partialorder %v663, 0.0
  %vm710 = vcmp.gt.f32.partialorder %v666, 0.0
  %vm711 = vcmp.gt.f32.partialorder %v669, 0.0
  %vm712 = vcmp.gt.f32.partialorder %v672, 0.0
  %vm713 = vcmp.gt.f32.partialorder %v675, 0.0
  %vm714 = vcmp.gt.f32.partialorder %v678, 0.0
  %vm715 = vcmp.gt.f32.partialorder %v681, 0.0
  %vm716 = vcmp.gt.f32.partialorder %v684, 0.0
  %vm717 = vcmp.gt.f32.partialorder %v687, 0.0
  %vm718 = vcmp.gt.f32.partialorder %v690, 0.0
  %vm719 = vcmp.gt.f32.partialorder %v693, 0.0
  %vm720 = vcmp.gt.f32.partialorder %v696, 0.0
  %v721 = vmax.f32 %v627, 1.0
  %v722 = vmax.f32 %v630, 1.0
  %v723 = vmax.f32 %v633, 1.0
  %v724 = vmax.f32 %v636, 1.0
  %v725 = vmax.f32 %v639, 1.0
  %v726 = vmax.f32 %v642, 1.0
  %v727 = vmax.f32 %v645, 1.0
  %v728 = vmax.f32 %v648, 1.0
  %v729 = vmax.f32 %v651, 1.0
  %v730 = vmax.f32 %v654, 1.0
  %v731 = vmax.f32 %v657, 1.0
  %v732 = vmax.f32 %v660, 1.0
  %v733 = vmax.f32 %v663, 1.0
  %v734 = vmax.f32 %v666, 1.0
  %v735 = vmax.f32 %v669, 1.0
  %v736 = vmax.f32 %v672, 1.0
  %v737 = vmax.f32 %v675, 1.0
  %v738 = vmax.f32 %v678, 1.0
  %v739 = vmax.f32 %v681, 1.0
  %v740 = vmax.f32 %v684, 1.0
  %v741 = vmax.f32 %v687, 1.0
  %v742 = vmax.f32 %v690, 1.0
  %v743 = vmax.f32 %v693, 1.0
  %v744 = vmax.f32 %v696, 1.0
  %v745 = vrcp.pop %v721
  %v746 = vmul.f32 1.0, %v745
  %v747 = vrcp.pop %v722
  %v748 = vmul.f32 1.0, %v747
  %v749 = vrcp.pop %v723
  %v750 = vmul.f32 1.0, %v749
  %v751 = vrcp.pop %v724
  %v752 = vmul.f32 1.0, %v751
  %v753 = vrcp.pop %v725
  %v754 = vmul.f32 1.0, %v753
  %v755 = vrcp.pop %v726
  %v756 = vmul.f32 1.0, %v755
  %v757 = vrcp.pop %v727
  %v758 = vmul.f32 1.0, %v757
  %v759 = vrcp.pop %v728
  %v760 = vmul.f32 1.0, %v759
  %v761 = vrcp.pop %v729
  %v762 = vmul.f32 1.0, %v761
  %v763 = vrcp.pop %v730
  %v764 = vmul.f32 1.0, %v763
  %v765 = vrcp.pop %v731
  %v766 = vmul.f32 1.0, %v765
  %v767 = vrcp.pop %v732
  %v768 = vmul.f32 1.0, %v767
  %v769 = vrcp.pop %v733
  %v770 = vmul.f32 1.0, %v769
  %v771 = vrcp.pop %v734
  %v772 = vmul.f32 1.0, %v771
  %v773 = vrcp.pop %v735
  %v774 = vmul.f32 1.0, %v773
  %v775 = vrcp.pop %v736
  %v776 = vmul.f32 1.0, %v775
  %v777 = vrcp.pop %v737
  %v778 = vmul.f32 1.0, %v777
  %v779 = vrcp.pop %v738
  %v780 = vmul.f32 1.0, %v779
  %v781 = vrcp.pop %v739
  %v782 = vmul.f32 1.0, %v781
  %v783 = vrcp.pop %v740
  %v784 = vmul.f32 1.0, %v783
  %v785 = vrcp.pop %v741
  %v786 = vmul.f32 1.0, %v785
  %v787 = vrcp.pop %v742
  %v788 = vmul.f32 1.0, %v787
  %v789 = vrcp.pop %v743
  %v790 = vmul.f32 1.0, %v789
  %v791 = vrcp.pop %v744
  %v792 = vmul.f32 1.0, %v791
  %v793 = vsel %vm697, %v746, 0.0
  %v794 = vsel %vm698, %v748, 0.0
  %v795 = vsel %vm699, %v750, 0.0
  %v796 = vsel %vm700, %v752, 0.0
  %v797 = vsel %vm701, %v754, 0.0
  %v798 = vsel %vm702, %v756, 0.0
  %v799 = vsel %vm703, %v758, 0.0
  %v800 = vsel %vm704, %v760, 0.0
  %v801 = vsel %vm705, %v762, 0.0
  %v802 = vsel %vm706, %v764, 0.0
  %v803 = vsel %vm707, %v766, 0.0
  %v804 = vsel %vm708, %v768, 0.0
  %v805 = vsel %vm709, %v770, 0.0
  %v806 = vsel %vm710, %v772, 0.0
  %v807 = vsel %vm711, %v774, 0.0
  %v808 = vsel %vm712, %v776, 0.0
  %v809 = vsel %vm713, %v778, 0.0
  %v810 = vsel %vm714, %v780, 0.0
  %v811 = vsel %vm715, %v782, 0.0
  %v812 = vsel %vm716, %v784, 0.0
  %v813 = vsel %vm717, %v786, 0.0
  %v814 = vsel %vm718, %v788, 0.0
  %v815 = vsel %vm719, %v790, 0.0
  %v816 = vsel %vm720, %v792, 0.0
  %v817 = vsel %vm697, 1, 0
  %v818 = vsel %vm698, 1, 0
  %v819 = vsel %vm699, 1, 0
  %v820 = vsel %vm700, 1, 0
  %v821 = vsel %vm701, 1, 0
  %v822 = vsel %vm702, 1, 0
  %v823 = vsel %vm703, 1, 0
  %v824 = vsel %vm704, 1, 0
  %v825 = vsel %vm705, 1, 0
  %v826 = vsel %vm706, 1, 0
  %v827 = vsel %vm707, 1, 0
  %v828 = vsel %vm708, 1, 0
  %v829 = vsel %vm709, 1, 0
  %v830 = vsel %vm710, 1, 0
  %v831 = vsel %vm711, 1, 0
  %v832 = vsel %vm712, 1, 0
  %v833 = vsel %vm713, 1, 0
  %v834 = vsel %vm714, 1, 0
  %v835 = vsel %vm715, 1, 0
  %v836 = vsel %vm716, 1, 0
  %v837 = vsel %vm717, 1, 0
  %v838 = vsel %vm718, 1, 0
  %v839 = vsel %vm719, 1, 0
  %v840 = vsel %vm720, 1, 0
  %v841 = vcvt.s32.f32 %v817
  %v842 = vcvt.s32.f32 %v818
  %v843 = vcvt.s32.f32 %v819
  %v844 = vcvt.s32.f32 %v820
  %v845 = vcvt.s32.f32 %v821
  %v846 = vcvt.s32.f32 %v822
  %v847 = vcvt.s32.f32 %v823
  %v848 = vcvt.s32.f32 %v824
  %v849 = vcvt.s32.f32 %v825
  %v850 = vcvt.s32.f32 %v826
  %v851 = vcvt.s32.f32 %v827
  %v852 = vcvt.s32.f32 %v828
  %v853 = vcvt.s32.f32 %v829
  %v854 = vcvt.s32.f32 %v830
  %v855 = vcvt.s32.f32 %v831
  %v856 = vcvt.s32.f32 %v832
  %v857 = vcvt.s32.f32 %v833
  %v858 = vcvt.s32.f32 %v834
  %v859 = vcvt.s32.f32 %v835
  %v860 = vcvt.s32.f32 %v836
  %v861 = vcvt.s32.f32 %v837
  %v862 = vcvt.s32.f32 %v838
  %v863 = vcvt.s32.f32 %v839
  %v864 = vcvt.s32.f32 %v840
  %v865 = vld [vmem:[%s3] sm:$0xff]
  %v866 = vld [vmem:[%s3 + $0x8] sm:$0xff]
  %v867 = vld [vmem:[%s3 + $0x10] sm:$0xff]
  %v868 = vld [vmem:[%s3 + $0x18] sm:$0xff]
  %v869 = vld [vmem:[%s3 + $0x20] sm:$0xff]
  %v870 = vld [vmem:[%s3 + $0x28] sm:$0xff]
  %v871 = vld [vmem:[%s3 + $0x30] sm:$0xff]
  %v872 = vld [vmem:[%s3 + $0x38] sm:$0xff]
  %v873 = vld [vmem:[%s3 + $0x40] sm:$0xff]
  %v874 = vld [vmem:[%s3 + $0x48] sm:$0xff]
  %v875 = vld [vmem:[%s3 + $0x50] sm:$0xff]
  %v876 = vld [vmem:[%s3 + $0x58] sm:$0xff]
  %v877 = vld [vmem:[%s3 + $0x60] sm:$0xff]
  %v878 = vld [vmem:[%s3 + $0x68] sm:$0xff]
  %v879 = vld [vmem:[%s3 + $0x70] sm:$0xff]
  %v880 = vld [vmem:[%s3 + $0x78] sm:$0xff]
  %v881 = vld [vmem:[%s3 + $0x80] sm:$0xff]
  %v882 = vld [vmem:[%s3 + $0x88] sm:$0xff]
  %v883 = vld [vmem:[%s3 + $0x90] sm:$0xff]
  %v884 = vld [vmem:[%s3 + $0x98] sm:$0xff]
  %v885 = vld [vmem:[%s3 + $0xa0] sm:$0xff]
  %v886 = vld [vmem:[%s3 + $0xa8] sm:$0xff]
  %v887 = vld [vmem:[%s3 + $0xb0] sm:$0xff]
  %v888 = vld [vmem:[%s3 + $0xb8] sm:$0xff]
  %v889 = vld [vmem:[%s3 + $0xc0] sm:$0xff]
  %v890 = vld [vmem:[%s3 + $0xc8] sm:$0xff]
  %v891 = vld [vmem:[%s3 + $0xd0] sm:$0xff]
  %v892 = vld [vmem:[%s3 + $0xd8] sm:$0xff]
  %v893 = vld [vmem:[%s3 + $0xe0] sm:$0xff]
  %v894 = vld [vmem:[%s3 + $0xe8] sm:$0xff]
  %v895 = vld [vmem:[%s3 + $0xf0] sm:$0xff]
  %v896 = vld [vmem:[%s3 + $0xf8] sm:$0xff]
  %v897 = vld [vmem:[%s3 + $0x100] sm:$0xff]
  %v898 = vld [vmem:[%s3 + $0x108] sm:$0xff]
  %v899 = vld [vmem:[%s3 + $0x110] sm:$0xff]
  %v900 = vld [vmem:[%s3 + $0x118] sm:$0xff]
  %v901 = vld [vmem:[%s3 + $0x120] sm:$0xff]
  %v902 = vld [vmem:[%s3 + $0x128] sm:$0xff]
  %v903 = vld [vmem:[%s3 + $0x130] sm:$0xff]
  %v904 = vld [vmem:[%s3 + $0x138] sm:$0xff]
  %v905 = vld [vmem:[%s3 + $0x140] sm:$0xff]
  %v906 = vld [vmem:[%s3 + $0x148] sm:$0xff]
  %v907 = vld [vmem:[%s3 + $0x150] sm:$0xff]
  %v908 = vld [vmem:[%s3 + $0x158] sm:$0xff]
  %v909 = vld [vmem:[%s3 + $0x160] sm:$0xff]
  %v910 = vld [vmem:[%s3 + $0x168] sm:$0xff]
  %v911 = vld [vmem:[%s3 + $0x170] sm:$0xff]
  %v912 = vld [vmem:[%s3 + $0x178] sm:$0xff]
  %913 = vset.pattern.permute.xlu0 0
  %914 = vperm.xlu0 %913, %v528
  %v915 = vpop.permute.xlu0 %914
  %916 = vset.pattern.permute.xlu0 0
  %917 = vperm.xlu0 %916, %v529
  %v918 = vpop.permute.xlu0 %917
  %919 = vset.pattern.permute.xlu0 0
  %920 = vperm.xlu0 %919, %v530
  %v921 = vpop.permute.xlu0 %920
  %922 = vset.pattern.permute.xlu0 0
  %923 = vperm.xlu0 %922, %v531
  %v924 = vpop.permute.xlu0 %923
  %925 = vset.pattern.permute.xlu0 0
  %926 = vperm.xlu0 %925, %v532
  %v927 = vpop.permute.xlu0 %926
  %928 = vset.pattern.permute.xlu0 0
  %929 = vperm.xlu0 %928, %v533
  %v930 = vpop.permute.xlu0 %929
  %931 = vset.pattern.permute.xlu0 0
  %932 = vperm.xlu0 %931, %v534
  %v933 = vpop.permute.xlu0 %932
  %934 = vset.pattern.permute.xlu0 0
  %935 = vperm.xlu0 %934, %v535
  %v936 = vpop.permute.xlu0 %935
  %937 = vset.pattern.permute.xlu0 0
  %938 = vperm.xlu0 %937, %v536
  %v939 = vpop.permute.xlu0 %938
  %940 = vset.pattern.permute.xlu0 0
  %941 = vperm.xlu0 %940, %v537
  %v942 = vpop.permute.xlu0 %941
  %943 = vset.pattern.permute.xlu0 0
  %944 = vperm.xlu0 %943, %v538
  %v945 = vpop.permute.xlu0 %944
  %946 = vset.pattern.permute.xlu0 0
  %947 = vperm.xlu0 %946, %v539
  %v948 = vpop.permute.xlu0 %947
  %949 = vset.pattern.permute.xlu0 0
  %950 = vperm.xlu0 %949, %v540
  %v951 = vpop.permute.xlu0 %950
  %952 = vset.pattern.permute.xlu0 0
  %953 = vperm.xlu0 %952, %v541
  %v954 = vpop.permute.xlu0 %953
  %955 = vset.pattern.permute.xlu0 0
  %956 = vperm.xlu0 %955, %v542
  %v957 = vpop.permute.xlu0 %956
  %958 = vset.pattern.permute.xlu0 0
  %959 = vperm.xlu0 %958, %v543
  %v960 = vpop.permute.xlu0 %959
  %961 = vset.pattern.permute.xlu0 0
  %962 = vperm.xlu0 %961, %v544
  %v963 = vpop.permute.xlu0 %962
  %964 = vset.pattern.permute.xlu0 0
  %965 = vperm.xlu0 %964, %v545
  %v966 = vpop.permute.xlu0 %965
  %967 = vset.pattern.permute.xlu0 0
  %968 = vperm.xlu0 %967, %v546
  %v969 = vpop.permute.xlu0 %968
  %970 = vset.pattern.permute.xlu0 0
  %971 = vperm.xlu0 %970, %v547
  %v972 = vpop.permute.xlu0 %971
  %973 = vset.pattern.permute.xlu0 0
  %974 = vperm.xlu0 %973, %v548
  %v975 = vpop.permute.xlu0 %974
  %976 = vset.pattern.permute.xlu0 0
  %977 = vperm.xlu0 %976, %v549
  %v978 = vpop.permute.xlu0 %977
  %979 = vset.pattern.permute.xlu0 0
  %980 = vperm.xlu0 %979, %v550
  %v981 = vpop.permute.xlu0 %980
  %982 = vset.pattern.permute.xlu0 0
  %983 = vperm.xlu0 %982, %v551
  %v984 = vpop.permute.xlu0 %983
  %vm985 = vcmp.eq.s32.totalorder %v915, %v865
  %vm986 = vcmp.eq.s32.totalorder %v915, %v866
  %vm987 = vcmp.eq.s32.totalorder %v918, %v867
  %vm988 = vcmp.eq.s32.totalorder %v918, %v868
  %vm989 = vcmp.eq.s32.totalorder %v921, %v869
  %vm990 = vcmp.eq.s32.totalorder %v921, %v870
  %vm991 = vcmp.eq.s32.totalorder %v924, %v871
  %vm992 = vcmp.eq.s32.totalorder %v924, %v872
  %vm993 = vcmp.eq.s32.totalorder %v927, %v873
  %vm994 = vcmp.eq.s32.totalorder %v927, %v874
  %vm995 = vcmp.eq.s32.totalorder %v930, %v875
  %vm996 = vcmp.eq.s32.totalorder %v930, %v876
  %vm997 = vcmp.eq.s32.totalorder %v933, %v877
  %vm998 = vcmp.eq.s32.totalorder %v933, %v878
  %vm999 = vcmp.eq.s32.totalorder %v936, %v879
  %vm1000 = vcmp.eq.s32.totalorder %v936, %v880
  %vm1001 = vcmp.eq.s32.totalorder %v939, %v881
  %vm1002 = vcmp.eq.s32.totalorder %v939, %v882
  %vm1003 = vcmp.eq.s32.totalorder %v942, %v883
  %vm1004 = vcmp.eq.s32.totalorder %v942, %v884
  %vm1005 = vcmp.eq.s32.totalorder %v945, %v885
  %vm1006 = vcmp.eq.s32.totalorder %v945, %v886
  %vm1007 = vcmp.eq.s32.totalorder %v948, %v887
  %vm1008 = vcmp.eq.s32.totalorder %v948, %v888
  %vm1009 = vcmp.eq.s32.totalorder %v951, %v889
  %vm1010 = vcmp.eq.s32.totalorder %v951, %v890
  %vm1011 = vcmp.eq.s32.totalorder %v954, %v891
  %vm1012 = vcmp.eq.s32.totalorder %v954, %v892
  %vm1013 = vcmp.eq.s32.totalorder %v957, %v893
  %vm1014 = vcmp.eq.s32.totalorder %v957, %v894
  %vm1015 = vcmp.eq.s32.totalorder %v960, %v895
  %vm1016 = vcmp.eq.s32.totalorder %v960, %v896
  %vm1017 = vcmp.eq.s32.totalorder %v963, %v897
  %vm1018 = vcmp.eq.s32.totalorder %v963, %v898
  %vm1019 = vcmp.eq.s32.totalorder %v966, %v899
  %vm1020 = vcmp.eq.s32.totalorder %v966, %v900
  %vm1021 = vcmp.eq.s32.totalorder %v969, %v901
  %vm1022 = vcmp.eq.s32.totalorder %v969, %v902
  %vm1023 = vcmp.eq.s32.totalorder %v972, %v903
  %vm1024 = vcmp.eq.s32.totalorder %v972, %v904
  %vm1025 = vcmp.eq.s32.totalorder %v975, %v905
  %vm1026 = vcmp.eq.s32.totalorder %v975, %v906
  %vm1027 = vcmp.eq.s32.totalorder %v978, %v907
  %vm1028 = vcmp.eq.s32.totalorder %v978, %v908
  %vm1029 = vcmp.eq.s32.totalorder %v981, %v909
  %vm1030 = vcmp.eq.s32.totalorder %v981, %v910
  %vm1031 = vcmp.eq.s32.totalorder %v984, %v911
  %vm1032 = vcmp.eq.s32.totalorder %v984, %v912
  %v1033 = vsel %vm985, 1, 0
  %v1034 = vsel %vm986, 1, 0
  %v1035 = vsel %vm987, 1, 0
  %v1036 = vsel %vm988, 1, 0
  %v1037 = vsel %vm989, 1, 0
  %v1038 = vsel %vm990, 1, 0
  %v1039 = vsel %vm991, 1, 0
  %v1040 = vsel %vm992, 1, 0
  %v1041 = vsel %vm993, 1, 0
  %v1042 = vsel %vm994, 1, 0
  %v1043 = vsel %vm995, 1, 0
  %v1044 = vsel %vm996, 1, 0
  %v1045 = vsel %vm997, 1, 0
  %v1046 = vsel %vm998, 1, 0
  %v1047 = vsel %vm999, 1, 0
  %v1048 = vsel %vm1000, 1, 0
  %v1049 = vsel %vm1001, 1, 0
  %v1050 = vsel %vm1002, 1, 0
  %v1051 = vsel %vm1003, 1, 0
  %v1052 = vsel %vm1004, 1, 0
  %v1053 = vsel %vm1005, 1, 0
  %v1054 = vsel %vm1006, 1, 0
  %v1055 = vsel %vm1007, 1, 0
  %v1056 = vsel %vm1008, 1, 0
  %v1057 = vsel %vm1009, 1, 0
  %v1058 = vsel %vm1010, 1, 0
  %v1059 = vsel %vm1011, 1, 0
  %v1060 = vsel %vm1012, 1, 0
  %v1061 = vsel %vm1013, 1, 0
  %v1062 = vsel %vm1014, 1, 0
  %v1063 = vsel %vm1015, 1, 0
  %v1064 = vsel %vm1016, 1, 0
  %v1065 = vsel %vm1017, 1, 0
  %v1066 = vsel %vm1018, 1, 0
  %v1067 = vsel %vm1019, 1, 0
  %v1068 = vsel %vm1020, 1, 0
  %v1069 = vsel %vm1021, 1, 0
  %v1070 = vsel %vm1022, 1, 0
  %v1071 = vsel %vm1023, 1, 0
  %v1072 = vsel %vm1024, 1, 0
  %v1073 = vsel %vm1025, 1, 0
  %v1074 = vsel %vm1026, 1, 0
  %v1075 = vsel %vm1027, 1, 0
  %v1076 = vsel %vm1028, 1, 0
  %v1077 = vsel %vm1029, 1, 0
  %v1078 = vsel %vm1030, 1, 0
  %v1079 = vsel %vm1031, 1, 0
  %v1080 = vsel %vm1032, 1, 0
  %v1081 = vcvt.s32.f32 %v1033
  %v1082 = vcvt.s32.f32 %v1034
  %v1083 = vcvt.s32.f32 %v1035
  %v1084 = vcvt.s32.f32 %v1036
  %v1085 = vcvt.s32.f32 %v1037
  %v1086 = vcvt.s32.f32 %v1038
  %v1087 = vcvt.s32.f32 %v1039
  %v1088 = vcvt.s32.f32 %v1040
  %v1089 = vcvt.s32.f32 %v1041
  %v1090 = vcvt.s32.f32 %v1042
  %v1091 = vcvt.s32.f32 %v1043
  %v1092 = vcvt.s32.f32 %v1044
  %v1093 = vcvt.s32.f32 %v1045
  %v1094 = vcvt.s32.f32 %v1046
  %v1095 = vcvt.s32.f32 %v1047
  %v1096 = vcvt.s32.f32 %v1048
  %v1097 = vcvt.s32.f32 %v1049
  %v1098 = vcvt.s32.f32 %v1050
  %v1099 = vcvt.s32.f32 %v1051
  %v1100 = vcvt.s32.f32 %v1052
  %v1101 = vcvt.s32.f32 %v1053
  %v1102 = vcvt.s32.f32 %v1054
  %v1103 = vcvt.s32.f32 %v1055
  %v1104 = vcvt.s32.f32 %v1056
  %v1105 = vcvt.s32.f32 %v1057
  %v1106 = vcvt.s32.f32 %v1058
  %v1107 = vcvt.s32.f32 %v1059
  %v1108 = vcvt.s32.f32 %v1060
  %v1109 = vcvt.s32.f32 %v1061
  %v1110 = vcvt.s32.f32 %v1062
  %v1111 = vcvt.s32.f32 %v1063
  %v1112 = vcvt.s32.f32 %v1064
  %v1113 = vcvt.s32.f32 %v1065
  %v1114 = vcvt.s32.f32 %v1066
  %v1115 = vcvt.s32.f32 %v1067
  %v1116 = vcvt.s32.f32 %v1068
  %v1117 = vcvt.s32.f32 %v1069
  %v1118 = vcvt.s32.f32 %v1070
  %v1119 = vcvt.s32.f32 %v1071
  %v1120 = vcvt.s32.f32 %v1072
  %v1121 = vcvt.s32.f32 %v1073
  %v1122 = vcvt.s32.f32 %v1074
  %v1123 = vcvt.s32.f32 %v1075
  %v1124 = vcvt.s32.f32 %v1076
  %v1125 = vcvt.s32.f32 %v1077
  %v1126 = vcvt.s32.f32 %v1078
  %v1127 = vcvt.s32.f32 %v1079
  %v1128 = vcvt.s32.f32 %v1080
  %1129 = vset.pattern.permute.xlu0 1
  %1130 = vperm.xlu0 %1129, %v528
  %v1131 = vpop.permute.xlu0 %1130
  %1132 = vset.pattern.permute.xlu0 1
  %1133 = vperm.xlu0 %1132, %v529
  %v1134 = vpop.permute.xlu0 %1133
  %1135 = vset.pattern.permute.xlu0 1
  %1136 = vperm.xlu0 %1135, %v530
  %v1137 = vpop.permute.xlu0 %1136
  %1138 = vset.pattern.permute.xlu0 1
  %1139 = vperm.xlu0 %1138, %v531
  %v1140 = vpop.permute.xlu0 %1139
  %1141 = vset.pattern.permute.xlu0 1
  %1142 = vperm.xlu0 %1141, %v532
  %v1143 = vpop.permute.xlu0 %1142
  %1144 = vset.pattern.permute.xlu0 1
  %1145 = vperm.xlu0 %1144, %v533
  %v1146 = vpop.permute.xlu0 %1145
  %1147 = vset.pattern.permute.xlu0 1
  %1148 = vperm.xlu0 %1147, %v534
  %v1149 = vpop.permute.xlu0 %1148
  %1150 = vset.pattern.permute.xlu0 1
  %1151 = vperm.xlu0 %1150, %v535
  %v1152 = vpop.permute.xlu0 %1151
  %1153 = vset.pattern.permute.xlu0 1
  %1154 = vperm.xlu0 %1153, %v536
  %v1155 = vpop.permute.xlu0 %1154
  %1156 = vset.pattern.permute.xlu0 1
  %1157 = vperm.xlu0 %1156, %v537
  %v1158 = vpop.permute.xlu0 %1157
  %1159 = vset.pattern.permute.xlu0 1
  %1160 = vperm.xlu0 %1159, %v538
  %v1161 = vpop.permute.xlu0 %1160
  %1162 = vset.pattern.permute.xlu0 1
  %1163 = vperm.xlu0 %1162, %v539
  %v1164 = vpop.permute.xlu0 %1163
  %1165 = vset.pattern.permute.xlu0 1
  %1166 = vperm.xlu0 %1165, %v540
  %v1167 = vpop.permute.xlu0 %1166
  %1168 = vset.pattern.permute.xlu0 1
  %1169 = vperm.xlu0 %1168, %v541
  %v1170 = vpop.permute.xlu0 %1169
  %1171 = vset.pattern.permute.xlu0 1
  %1172 = vperm.xlu0 %1171, %v542
  %v1173 = vpop.permute.xlu0 %1172
  %1174 = vset.pattern.permute.xlu0 1
  %1175 = vperm.xlu0 %1174, %v543
  %v1176 = vpop.permute.xlu0 %1175
  %1177 = vset.pattern.permute.xlu0 1
  %1178 = vperm.xlu0 %1177, %v544
  %v1179 = vpop.permute.xlu0 %1178
  %1180 = vset.pattern.permute.xlu0 1
  %1181 = vperm.xlu0 %1180, %v545
  %v1182 = vpop.permute.xlu0 %1181
  %1183 = vset.pattern.permute.xlu0 1
  %1184 = vperm.xlu0 %1183, %v546
  %v1185 = vpop.permute.xlu0 %1184
  %1186 = vset.pattern.permute.xlu0 1
  %1187 = vperm.xlu0 %1186, %v547
  %v1188 = vpop.permute.xlu0 %1187
  %1189 = vset.pattern.permute.xlu0 1
  %1190 = vperm.xlu0 %1189, %v548
  %v1191 = vpop.permute.xlu0 %1190
  %1192 = vset.pattern.permute.xlu0 1
  %1193 = vperm.xlu0 %1192, %v549
  %v1194 = vpop.permute.xlu0 %1193
  %1195 = vset.pattern.permute.xlu0 1
  %1196 = vperm.xlu0 %1195, %v550
  %v1197 = vpop.permute.xlu0 %1196
  %1198 = vset.pattern.permute.xlu0 1
  %1199 = vperm.xlu0 %1198, %v551
  %v1200 = vpop.permute.xlu0 %1199
  %vm1201 = vcmp.eq.s32.totalorder %v1131, %v865
  %vm1202 = vcmp.eq.s32.totalorder %v1131, %v866
  %vm1203 = vcmp.eq.s32.totalorder %v1134, %v867
  %vm1204 = vcmp.eq.s32.totalorder %v1134, %v868
  %vm1205 = vcmp.eq.s32.totalorder %v1137, %v869
  %vm1206 = vcmp.eq.s32.totalorder %v1137, %v870
  %vm1207 = vcmp.eq.s32.totalorder %v1140, %v871
  %vm1208 = vcmp.eq.s32.totalorder %v1140, %v872
  %vm1209 = vcmp.eq.s32.totalorder %v1143, %v873
  %vm1210 = vcmp.eq.s32.totalorder %v1143, %v874
  %vm1211 = vcmp.eq.s32.totalorder %v1146, %v875
  %vm1212 = vcmp.eq.s32.totalorder %v1146, %v876
  %vm1213 = vcmp.eq.s32.totalorder %v1149, %v877
  %vm1214 = vcmp.eq.s32.totalorder %v1149, %v878
  %vm1215 = vcmp.eq.s32.totalorder %v1152, %v879
  %vm1216 = vcmp.eq.s32.totalorder %v1152, %v880
  %vm1217 = vcmp.eq.s32.totalorder %v1155, %v881
  %vm1218 = vcmp.eq.s32.totalorder %v1155, %v882
  %vm1219 = vcmp.eq.s32.totalorder %v1158, %v883
  %vm1220 = vcmp.eq.s32.totalorder %v1158, %v884
  %vm1221 = vcmp.eq.s32.totalorder %v1161, %v885
  %vm1222 = vcmp.eq.s32.totalorder %v1161, %v886
  %vm1223 = vcmp.eq.s32.totalorder %v1164, %v887
  %vm1224 = vcmp.eq.s32.totalorder %v1164, %v888
  %vm1225 = vcmp.eq.s32.totalorder %v1167, %v889
  %vm1226 = vcmp.eq.s32.totalorder %v1167, %v890
  %vm1227 = vcmp.eq.s32.totalorder %v1170, %v891
  %vm1228 = vcmp.eq.s32.totalorder %v1170, %v892
  %vm1229 = vcmp.eq.s32.totalorder %v1173, %v893
  %vm1230 = vcmp.eq.s32.totalorder %v1173, %v894
  %vm1231 = vcmp.eq.s32.totalorder %v1176, %v895
  %vm1232 = vcmp.eq.s32.totalorder %v1176, %v896
  %vm1233 = vcmp.eq.s32.totalorder %v1179, %v897
  %vm1234 = vcmp.eq.s32.totalorder %v1179, %v898
  %vm1235 = vcmp.eq.s32.totalorder %v1182, %v899
  %vm1236 = vcmp.eq.s32.totalorder %v1182, %v900
  %vm1237 = vcmp.eq.s32.totalorder %v1185, %v901
  %vm1238 = vcmp.eq.s32.totalorder %v1185, %v902
  %vm1239 = vcmp.eq.s32.totalorder %v1188, %v903
  %vm1240 = vcmp.eq.s32.totalorder %v1188, %v904
  %vm1241 = vcmp.eq.s32.totalorder %v1191, %v905
  %vm1242 = vcmp.eq.s32.totalorder %v1191, %v906
  %vm1243 = vcmp.eq.s32.totalorder %v1194, %v907
  %vm1244 = vcmp.eq.s32.totalorder %v1194, %v908
  %vm1245 = vcmp.eq.s32.totalorder %v1197, %v909
  %vm1246 = vcmp.eq.s32.totalorder %v1197, %v910
  %vm1247 = vcmp.eq.s32.totalorder %v1200, %v911
  %vm1248 = vcmp.eq.s32.totalorder %v1200, %v912
  %v1249 = vsel %vm1201, 1, 0
  %v1250 = vsel %vm1202, 1, 0
  %v1251 = vsel %vm1203, 1, 0
  %v1252 = vsel %vm1204, 1, 0
  %v1253 = vsel %vm1205, 1, 0
  %v1254 = vsel %vm1206, 1, 0
  %v1255 = vsel %vm1207, 1, 0
  %v1256 = vsel %vm1208, 1, 0
  %v1257 = vsel %vm1209, 1, 0
  %v1258 = vsel %vm1210, 1, 0
  %v1259 = vsel %vm1211, 1, 0
  %v1260 = vsel %vm1212, 1, 0
  %v1261 = vsel %vm1213, 1, 0
  %v1262 = vsel %vm1214, 1, 0
  %v1263 = vsel %vm1215, 1, 0
  %v1264 = vsel %vm1216, 1, 0
  %v1265 = vsel %vm1217, 1, 0
  %v1266 = vsel %vm1218, 1, 0
  %v1267 = vsel %vm1219, 1, 0
  %v1268 = vsel %vm1220, 1, 0
  %v1269 = vsel %vm1221, 1, 0
  %v1270 = vsel %vm1222, 1, 0
  %v1271 = vsel %vm1223, 1, 0
  %v1272 = vsel %vm1224, 1, 0
  %v1273 = vsel %vm1225, 1, 0
  %v1274 = vsel %vm1226, 1, 0
  %v1275 = vsel %vm1227, 1, 0
  %v1276 = vsel %vm1228, 1, 0
  %v1277 = vsel %vm1229, 1, 0
  %v1278 = vsel %vm1230, 1, 0
  %v1279 = vsel %vm1231, 1, 0
  %v1280 = vsel %vm1232, 1, 0
  %v1281 = vsel %vm1233, 1, 0
  %v1282 = vsel %vm1234, 1, 0
  %v1283 = vsel %vm1235, 1, 0
  %v1284 = vsel %vm1236, 1, 0
  %v1285 = vsel %vm1237, 1, 0
  %v1286 = vsel %vm1238, 1, 0
  %v1287 = vsel %vm1239, 1, 0
  %v1288 = vsel %vm1240, 1, 0
  %v1289 = vsel %vm1241, 1, 0
  %v1290 = vsel %vm1242, 1, 0
  %v1291 = vsel %vm1243, 1, 0
  %v1292 = vsel %vm1244, 1, 0
  %v1293 = vsel %vm1245, 1, 0
  %v1294 = vsel %vm1246, 1, 0
  %v1295 = vsel %vm1247, 1, 0
  %v1296 = vsel %vm1248, 1, 0
  %v1297 = vcvt.s32.f32 %v1249
  %v1298 = vcvt.s32.f32 %v1250
  %v1299 = vcvt.s32.f32 %v1251
  %v1300 = vcvt.s32.f32 %v1252
  %v1301 = vcvt.s32.f32 %v1253
  %v1302 = vcvt.s32.f32 %v1254
  %v1303 = vcvt.s32.f32 %v1255
  %v1304 = vcvt.s32.f32 %v1256
  %v1305 = vcvt.s32.f32 %v1257
  %v1306 = vcvt.s32.f32 %v1258
  %v1307 = vcvt.s32.f32 %v1259
  %v1308 = vcvt.s32.f32 %v1260
  %v1309 = vcvt.s32.f32 %v1261
  %v1310 = vcvt.s32.f32 %v1262
  %v1311 = vcvt.s32.f32 %v1263
  %v1312 = vcvt.s32.f32 %v1264
  %v1313 = vcvt.s32.f32 %v1265
  %v1314 = vcvt.s32.f32 %v1266
  %v1315 = vcvt.s32.f32 %v1267
  %v1316 = vcvt.s32.f32 %v1268
  %v1317 = vcvt.s32.f32 %v1269
  %v1318 = vcvt.s32.f32 %v1270
  %v1319 = vcvt.s32.f32 %v1271
  %v1320 = vcvt.s32.f32 %v1272
  %v1321 = vcvt.s32.f32 %v1273
  %v1322 = vcvt.s32.f32 %v1274
  %v1323 = vcvt.s32.f32 %v1275
  %v1324 = vcvt.s32.f32 %v1276
  %v1325 = vcvt.s32.f32 %v1277
  %v1326 = vcvt.s32.f32 %v1278
  %v1327 = vcvt.s32.f32 %v1279
  %v1328 = vcvt.s32.f32 %v1280
  %v1329 = vcvt.s32.f32 %v1281
  %v1330 = vcvt.s32.f32 %v1282
  %v1331 = vcvt.s32.f32 %v1283
  %v1332 = vcvt.s32.f32 %v1284
  %v1333 = vcvt.s32.f32 %v1285
  %v1334 = vcvt.s32.f32 %v1286
  %v1335 = vcvt.s32.f32 %v1287
  %v1336 = vcvt.s32.f32 %v1288
  %v1337 = vcvt.s32.f32 %v1289
  %v1338 = vcvt.s32.f32 %v1290
  %v1339 = vcvt.s32.f32 %v1291
  %v1340 = vcvt.s32.f32 %v1292
  %v1341 = vcvt.s32.f32 %v1293
  %v1342 = vcvt.s32.f32 %v1294
  %v1343 = vcvt.s32.f32 %v1295
  %v1344 = vcvt.s32.f32 %v1296
  %v1345 = vadd.f32 %v1081, %v1297
  %v1346 = vadd.f32 %v1082, %v1298
  %v1347 = vadd.f32 %v1083, %v1299
  %v1348 = vadd.f32 %v1084, %v1300
  %v1349 = vadd.f32 %v1085, %v1301
  %v1350 = vadd.f32 %v1086, %v1302
  %v1351 = vadd.f32 %v1087, %v1303
  %v1352 = vadd.f32 %v1088, %v1304
  %v1353 = vadd.f32 %v1089, %v1305
  %v1354 = vadd.f32 %v1090, %v1306
  %v1355 = vadd.f32 %v1091, %v1307
  %v1356 = vadd.f32 %v1092, %v1308
  %v1357 = vadd.f32 %v1093, %v1309
  %v1358 = vadd.f32 %v1094, %v1310
  %v1359 = vadd.f32 %v1095, %v1311
  %v1360 = vadd.f32 %v1096, %v1312
  %v1361 = vadd.f32 %v1097, %v1313
  %v1362 = vadd.f32 %v1098, %v1314
  %v1363 = vadd.f32 %v1099, %v1315
  %v1364 = vadd.f32 %v1100, %v1316
  %v1365 = vadd.f32 %v1101, %v1317
  %v1366 = vadd.f32 %v1102, %v1318
  %v1367 = vadd.f32 %v1103, %v1319
  %v1368 = vadd.f32 %v1104, %v1320
  %v1369 = vadd.f32 %v1105, %v1321
  %v1370 = vadd.f32 %v1106, %v1322
  %v1371 = vadd.f32 %v1107, %v1323
  %v1372 = vadd.f32 %v1108, %v1324
  %v1373 = vadd.f32 %v1109, %v1325
  %v1374 = vadd.f32 %v1110, %v1326
  %v1375 = vadd.f32 %v1111, %v1327
  %v1376 = vadd.f32 %v1112, %v1328
  %v1377 = vadd.f32 %v1113, %v1329
  %v1378 = vadd.f32 %v1114, %v1330
  %v1379 = vadd.f32 %v1115, %v1331
  %v1380 = vadd.f32 %v1116, %v1332
  %v1381 = vadd.f32 %v1117, %v1333
  %v1382 = vadd.f32 %v1118, %v1334
  %v1383 = vadd.f32 %v1119, %v1335
  %v1384 = vadd.f32 %v1120, %v1336
  %v1385 = vadd.f32 %v1121, %v1337
  %v1386 = vadd.f32 %v1122, %v1338
  %v1387 = vadd.f32 %v1123, %v1339
  %v1388 = vadd.f32 %v1124, %v1340
  %v1389 = vadd.f32 %v1125, %v1341
  %v1390 = vadd.f32 %v1126, %v1342
  %v1391 = vadd.f32 %v1127, %v1343
  %v1392 = vadd.f32 %v1128, %v1344
  %1393 = vset.pattern.permute.xlu0 2
  %1394 = vperm.xlu0 %1393, %v528
  %v1395 = vpop.permute.xlu0 %1394
  %1396 = vset.pattern.permute.xlu0 2
  %1397 = vperm.xlu0 %1396, %v529
  %v1398 = vpop.permute.xlu0 %1397
  %1399 = vset.pattern.permute.xlu0 2
  %1400 = vperm.xlu0 %1399, %v530
  %v1401 = vpop.permute.xlu0 %1400
  %1402 = vset.pattern.permute.xlu0 2
  %1403 = vperm.xlu0 %1402, %v531
  %v1404 = vpop.permute.xlu0 %1403
  %1405 = vset.pattern.permute.xlu0 2
  %1406 = vperm.xlu0 %1405, %v532
  %v1407 = vpop.permute.xlu0 %1406
  %1408 = vset.pattern.permute.xlu0 2
  %1409 = vperm.xlu0 %1408, %v533
  %v1410 = vpop.permute.xlu0 %1409
  %1411 = vset.pattern.permute.xlu0 2
  %1412 = vperm.xlu0 %1411, %v534
  %v1413 = vpop.permute.xlu0 %1412
  %1414 = vset.pattern.permute.xlu0 2
  %1415 = vperm.xlu0 %1414, %v535
  %v1416 = vpop.permute.xlu0 %1415
  %1417 = vset.pattern.permute.xlu0 2
  %1418 = vperm.xlu0 %1417, %v536
  %v1419 = vpop.permute.xlu0 %1418
  %1420 = vset.pattern.permute.xlu0 2
  %1421 = vperm.xlu0 %1420, %v537
  %v1422 = vpop.permute.xlu0 %1421
  %1423 = vset.pattern.permute.xlu0 2
  %1424 = vperm.xlu0 %1423, %v538
  %v1425 = vpop.permute.xlu0 %1424
  %1426 = vset.pattern.permute.xlu0 2
  %1427 = vperm.xlu0 %1426, %v539
  %v1428 = vpop.permute.xlu0 %1427
  %1429 = vset.pattern.permute.xlu0 2
  %1430 = vperm.xlu0 %1429, %v540
  %v1431 = vpop.permute.xlu0 %1430
  %1432 = vset.pattern.permute.xlu0 2
  %1433 = vperm.xlu0 %1432, %v541
  %v1434 = vpop.permute.xlu0 %1433
  %1435 = vset.pattern.permute.xlu0 2
  %1436 = vperm.xlu0 %1435, %v542
  %v1437 = vpop.permute.xlu0 %1436
  %1438 = vset.pattern.permute.xlu0 2
  %1439 = vperm.xlu0 %1438, %v543
  %v1440 = vpop.permute.xlu0 %1439
  %1441 = vset.pattern.permute.xlu0 2
  %1442 = vperm.xlu0 %1441, %v544
  %v1443 = vpop.permute.xlu0 %1442
  %1444 = vset.pattern.permute.xlu0 2
  %1445 = vperm.xlu0 %1444, %v545
  %v1446 = vpop.permute.xlu0 %1445
  %1447 = vset.pattern.permute.xlu0 2
  %1448 = vperm.xlu0 %1447, %v546
  %v1449 = vpop.permute.xlu0 %1448
  %1450 = vset.pattern.permute.xlu0 2
  %1451 = vperm.xlu0 %1450, %v547
  %v1452 = vpop.permute.xlu0 %1451
  %1453 = vset.pattern.permute.xlu0 2
  %1454 = vperm.xlu0 %1453, %v548
  %v1455 = vpop.permute.xlu0 %1454
  %1456 = vset.pattern.permute.xlu0 2
  %1457 = vperm.xlu0 %1456, %v549
  %v1458 = vpop.permute.xlu0 %1457
  %1459 = vset.pattern.permute.xlu0 2
  %1460 = vperm.xlu0 %1459, %v550
  %v1461 = vpop.permute.xlu0 %1460
  %1462 = vset.pattern.permute.xlu0 2
  %1463 = vperm.xlu0 %1462, %v551
  %v1464 = vpop.permute.xlu0 %1463
  %vm1465 = vcmp.eq.s32.totalorder %v1395, %v865
  %vm1466 = vcmp.eq.s32.totalorder %v1395, %v866
  %vm1467 = vcmp.eq.s32.totalorder %v1398, %v867
  %vm1468 = vcmp.eq.s32.totalorder %v1398, %v868
  %vm1469 = vcmp.eq.s32.totalorder %v1401, %v869
  %vm1470 = vcmp.eq.s32.totalorder %v1401, %v870
  %vm1471 = vcmp.eq.s32.totalorder %v1404, %v871
  %vm1472 = vcmp.eq.s32.totalorder %v1404, %v872
  %vm1473 = vcmp.eq.s32.totalorder %v1407, %v873
  %vm1474 = vcmp.eq.s32.totalorder %v1407, %v874
  %vm1475 = vcmp.eq.s32.totalorder %v1410, %v875
  %vm1476 = vcmp.eq.s32.totalorder %v1410, %v876
  %vm1477 = vcmp.eq.s32.totalorder %v1413, %v877
  %vm1478 = vcmp.eq.s32.totalorder %v1413, %v878
  %vm1479 = vcmp.eq.s32.totalorder %v1416, %v879
  %vm1480 = vcmp.eq.s32.totalorder %v1416, %v880
  %vm1481 = vcmp.eq.s32.totalorder %v1419, %v881
  %vm1482 = vcmp.eq.s32.totalorder %v1419, %v882
  %vm1483 = vcmp.eq.s32.totalorder %v1422, %v883
  %vm1484 = vcmp.eq.s32.totalorder %v1422, %v884
  %vm1485 = vcmp.eq.s32.totalorder %v1425, %v885
  %vm1486 = vcmp.eq.s32.totalorder %v1425, %v886
  %vm1487 = vcmp.eq.s32.totalorder %v1428, %v887
  %vm1488 = vcmp.eq.s32.totalorder %v1428, %v888
  %vm1489 = vcmp.eq.s32.totalorder %v1431, %v889
  %vm1490 = vcmp.eq.s32.totalorder %v1431, %v890
  %vm1491 = vcmp.eq.s32.totalorder %v1434, %v891
  %vm1492 = vcmp.eq.s32.totalorder %v1434, %v892
  %vm1493 = vcmp.eq.s32.totalorder %v1437, %v893
  %vm1494 = vcmp.eq.s32.totalorder %v1437, %v894
  %vm1495 = vcmp.eq.s32.totalorder %v1440, %v895
  %vm1496 = vcmp.eq.s32.totalorder %v1440, %v896
  %vm1497 = vcmp.eq.s32.totalorder %v1443, %v897
  %vm1498 = vcmp.eq.s32.totalorder %v1443, %v898
  %vm1499 = vcmp.eq.s32.totalorder %v1446, %v899
  %vm1500 = vcmp.eq.s32.totalorder %v1446, %v900
  %vm1501 = vcmp.eq.s32.totalorder %v1449, %v901
  %vm1502 = vcmp.eq.s32.totalorder %v1449, %v902
  %vm1503 = vcmp.eq.s32.totalorder %v1452, %v903
  %vm1504 = vcmp.eq.s32.totalorder %v1452, %v904
  %vm1505 = vcmp.eq.s32.totalorder %v1455, %v905
  %vm1506 = vcmp.eq.s32.totalorder %v1455, %v906
  %vm1507 = vcmp.eq.s32.totalorder %v1458, %v907
  %vm1508 = vcmp.eq.s32.totalorder %v1458, %v908
  %vm1509 = vcmp.eq.s32.totalorder %v1461, %v909
  %vm1510 = vcmp.eq.s32.totalorder %v1461, %v910
  %vm1511 = vcmp.eq.s32.totalorder %v1464, %v911
  %vm1512 = vcmp.eq.s32.totalorder %v1464, %v912
  %v1513 = vsel %vm1465, 1, 0
  %v1514 = vsel %vm1466, 1, 0
  %v1515 = vsel %vm1467, 1, 0
  %v1516 = vsel %vm1468, 1, 0
  %v1517 = vsel %vm1469, 1, 0
  %v1518 = vsel %vm1470, 1, 0
  %v1519 = vsel %vm1471, 1, 0
  %v1520 = vsel %vm1472, 1, 0
  %v1521 = vsel %vm1473, 1, 0
  %v1522 = vsel %vm1474, 1, 0
  %v1523 = vsel %vm1475, 1, 0
  %v1524 = vsel %vm1476, 1, 0
  %v1525 = vsel %vm1477, 1, 0
  %v1526 = vsel %vm1478, 1, 0
  %v1527 = vsel %vm1479, 1, 0
  %v1528 = vsel %vm1480, 1, 0
  %v1529 = vsel %vm1481, 1, 0
  %v1530 = vsel %vm1482, 1, 0
  %v1531 = vsel %vm1483, 1, 0
  %v1532 = vsel %vm1484, 1, 0
  %v1533 = vsel %vm1485, 1, 0
  %v1534 = vsel %vm1486, 1, 0
  %v1535 = vsel %vm1487, 1, 0
  %v1536 = vsel %vm1488, 1, 0
  %v1537 = vsel %vm1489, 1, 0
  %v1538 = vsel %vm1490, 1, 0
  %v1539 = vsel %vm1491, 1, 0
  %v1540 = vsel %vm1492, 1, 0
  %v1541 = vsel %vm1493, 1, 0
  %v1542 = vsel %vm1494, 1, 0
  %v1543 = vsel %vm1495, 1, 0
  %v1544 = vsel %vm1496, 1, 0
  %v1545 = vsel %vm1497, 1, 0
  %v1546 = vsel %vm1498, 1, 0
  %v1547 = vsel %vm1499, 1, 0
  %v1548 = vsel %vm1500, 1, 0
  %v1549 = vsel %vm1501, 1, 0
  %v1550 = vsel %vm1502, 1, 0
  %v1551 = vsel %vm1503, 1, 0
  %v1552 = vsel %vm1504, 1, 0
  %v1553 = vsel %vm1505, 1, 0
  %v1554 = vsel %vm1506, 1, 0
  %v1555 = vsel %vm1507, 1, 0
  %v1556 = vsel %vm1508, 1, 0
  %v1557 = vsel %vm1509, 1, 0
  %v1558 = vsel %vm1510, 1, 0
  %v1559 = vsel %vm1511, 1, 0
  %v1560 = vsel %vm1512, 1, 0
  %v1561 = vcvt.s32.f32 %v1513
  %v1562 = vcvt.s32.f32 %v1514
  %v1563 = vcvt.s32.f32 %v1515
  %v1564 = vcvt.s32.f32 %v1516
  %v1565 = vcvt.s32.f32 %v1517
  %v1566 = vcvt.s32.f32 %v1518
  %v1567 = vcvt.s32.f32 %v1519
  %v1568 = vcvt.s32.f32 %v1520
  %v1569 = vcvt.s32.f32 %v1521
  %v1570 = vcvt.s32.f32 %v1522
  %v1571 = vcvt.s32.f32 %v1523
  %v1572 = vcvt.s32.f32 %v1524
  %v1573 = vcvt.s32.f32 %v1525
  %v1574 = vcvt.s32.f32 %v1526
  %v1575 = vcvt.s32.f32 %v1527
  %v1576 = vcvt.s32.f32 %v1528
  %v1577 = vcvt.s32.f32 %v1529
  %v1578 = vcvt.s32.f32 %v1530
  %v1579 = vcvt.s32.f32 %v1531
  %v1580 = vcvt.s32.f32 %v1532
  %v1581 = vcvt.s32.f32 %v1533
  %v1582 = vcvt.s32.f32 %v1534
  %v1583 = vcvt.s32.f32 %v1535
  %v1584 = vcvt.s32.f32 %v1536
  %v1585 = vcvt.s32.f32 %v1537
  %v1586 = vcvt.s32.f32 %v1538
  %v1587 = vcvt.s32.f32 %v1539
  %v1588 = vcvt.s32.f32 %v1540
  %v1589 = vcvt.s32.f32 %v1541
  %v1590 = vcvt.s32.f32 %v1542
  %v1591 = vcvt.s32.f32 %v1543
  %v1592 = vcvt.s32.f32 %v1544
  %v1593 = vcvt.s32.f32 %v1545
  %v1594 = vcvt.s32.f32 %v1546
  %v1595 = vcvt.s32.f32 %v1547
  %v1596 = vcvt.s32.f32 %v1548
  %v1597 = vcvt.s32.f32 %v1549
  %v1598 = vcvt.s32.f32 %v1550
  %v1599 = vcvt.s32.f32 %v1551
  %v1600 = vcvt.s32.f32 %v1552
  %v1601 = vcvt.s32.f32 %v1553
  %v1602 = vcvt.s32.f32 %v1554
  %v1603 = vcvt.s32.f32 %v1555
  %v1604 = vcvt.s32.f32 %v1556
  %v1605 = vcvt.s32.f32 %v1557
  %v1606 = vcvt.s32.f32 %v1558
  %v1607 = vcvt.s32.f32 %v1559
  %v1608 = vcvt.s32.f32 %v1560
  %v1609 = vadd.f32 %v1345, %v1561
  %v1610 = vadd.f32 %v1346, %v1562
  %v1611 = vadd.f32 %v1347, %v1563
  %v1612 = vadd.f32 %v1348, %v1564
  %v1613 = vadd.f32 %v1349, %v1565
  %v1614 = vadd.f32 %v1350, %v1566
  %v1615 = vadd.f32 %v1351, %v1567
  %v1616 = vadd.f32 %v1352, %v1568
  %v1617 = vadd.f32 %v1353, %v1569
  %v1618 = vadd.f32 %v1354, %v1570
  %v1619 = vadd.f32 %v1355, %v1571
  %v1620 = vadd.f32 %v1356, %v1572
  %v1621 = vadd.f32 %v1357, %v1573
  %v1622 = vadd.f32 %v1358, %v1574
  %v1623 = vadd.f32 %v1359, %v1575
  %v1624 = vadd.f32 %v1360, %v1576
  %v1625 = vadd.f32 %v1361, %v1577
  %v1626 = vadd.f32 %v1362, %v1578
  %v1627 = vadd.f32 %v1363, %v1579
  %v1628 = vadd.f32 %v1364, %v1580
  %v1629 = vadd.f32 %v1365, %v1581
  %v1630 = vadd.f32 %v1366, %v1582
  %v1631 = vadd.f32 %v1367, %v1583
  %v1632 = vadd.f32 %v1368, %v1584
  %v1633 = vadd.f32 %v1369, %v1585
  %v1634 = vadd.f32 %v1370, %v1586
  %v1635 = vadd.f32 %v1371, %v1587
  %v1636 = vadd.f32 %v1372, %v1588
  %v1637 = vadd.f32 %v1373, %v1589
  %v1638 = vadd.f32 %v1374, %v1590
  %v1639 = vadd.f32 %v1375, %v1591
  %v1640 = vadd.f32 %v1376, %v1592
  %v1641 = vadd.f32 %v1377, %v1593
  %v1642 = vadd.f32 %v1378, %v1594
  %v1643 = vadd.f32 %v1379, %v1595
  %v1644 = vadd.f32 %v1380, %v1596
  %v1645 = vadd.f32 %v1381, %v1597
  %v1646 = vadd.f32 %v1382, %v1598
  %v1647 = vadd.f32 %v1383, %v1599
  %v1648 = vadd.f32 %v1384, %v1600
  %v1649 = vadd.f32 %v1385, %v1601
  %v1650 = vadd.f32 %v1386, %v1602
  %v1651 = vadd.f32 %v1387, %v1603
  %v1652 = vadd.f32 %v1388, %v1604
  %v1653 = vadd.f32 %v1389, %v1605
  %v1654 = vadd.f32 %v1390, %v1606
  %v1655 = vadd.f32 %v1391, %v1607
  %v1656 = vadd.f32 %v1392, %v1608
  %1657 = vset.pattern.permute.xlu0 3
  %1658 = vperm.xlu0 %1657, %v528
  %v1659 = vpop.permute.xlu0 %1658
  %1660 = vset.pattern.permute.xlu0 3
  %1661 = vperm.xlu0 %1660, %v529
  %v1662 = vpop.permute.xlu0 %1661
  %1663 = vset.pattern.permute.xlu0 3
  %1664 = vperm.xlu0 %1663, %v530
  %v1665 = vpop.permute.xlu0 %1664
  %1666 = vset.pattern.permute.xlu0 3
  %1667 = vperm.xlu0 %1666, %v531
  %v1668 = vpop.permute.xlu0 %1667
  %1669 = vset.pattern.permute.xlu0 3
  %1670 = vperm.xlu0 %1669, %v532
  %v1671 = vpop.permute.xlu0 %1670
  %1672 = vset.pattern.permute.xlu0 3
  %1673 = vperm.xlu0 %1672, %v533
  %v1674 = vpop.permute.xlu0 %1673
  %1675 = vset.pattern.permute.xlu0 3
  %1676 = vperm.xlu0 %1675, %v534
  %v1677 = vpop.permute.xlu0 %1676
  %1678 = vset.pattern.permute.xlu0 3
  %1679 = vperm.xlu0 %1678, %v535
  %v1680 = vpop.permute.xlu0 %1679
  %1681 = vset.pattern.permute.xlu0 3
  %1682 = vperm.xlu0 %1681, %v536
  %v1683 = vpop.permute.xlu0 %1682
  %1684 = vset.pattern.permute.xlu0 3
  %1685 = vperm.xlu0 %1684, %v537
  %v1686 = vpop.permute.xlu0 %1685
  %1687 = vset.pattern.permute.xlu0 3
  %1688 = vperm.xlu0 %1687, %v538
  %v1689 = vpop.permute.xlu0 %1688
  %1690 = vset.pattern.permute.xlu0 3
  %1691 = vperm.xlu0 %1690, %v539
  %v1692 = vpop.permute.xlu0 %1691
  %1693 = vset.pattern.permute.xlu0 3
  %1694 = vperm.xlu0 %1693, %v540
  %v1695 = vpop.permute.xlu0 %1694
  %1696 = vset.pattern.permute.xlu0 3
  %1697 = vperm.xlu0 %1696, %v541
  %v1698 = vpop.permute.xlu0 %1697
  %1699 = vset.pattern.permute.xlu0 3
  %1700 = vperm.xlu0 %1699, %v542
  %v1701 = vpop.permute.xlu0 %1700
  %1702 = vset.pattern.permute.xlu0 3
  %1703 = vperm.xlu0 %1702, %v543
  %v1704 = vpop.permute.xlu0 %1703
  %1705 = vset.pattern.permute.xlu0 3
  %1706 = vperm.xlu0 %1705, %v544
  %v1707 = vpop.permute.xlu0 %1706
  %1708 = vset.pattern.permute.xlu0 3
  %1709 = vperm.xlu0 %1708, %v545
  %v1710 = vpop.permute.xlu0 %1709
  %1711 = vset.pattern.permute.xlu0 3
  %1712 = vperm.xlu0 %1711, %v546
  %v1713 = vpop.permute.xlu0 %1712
  %1714 = vset.pattern.permute.xlu0 3
  %1715 = vperm.xlu0 %1714, %v547
  %v1716 = vpop.permute.xlu0 %1715
  %1717 = vset.pattern.permute.xlu0 3
  %1718 = vperm.xlu0 %1717, %v548
  %v1719 = vpop.permute.xlu0 %1718
  %1720 = vset.pattern.permute.xlu0 3
  %1721 = vperm.xlu0 %1720, %v549
  %v1722 = vpop.permute.xlu0 %1721
  %1723 = vset.pattern.permute.xlu0 3
  %1724 = vperm.xlu0 %1723, %v550
  %v1725 = vpop.permute.xlu0 %1724
  %1726 = vset.pattern.permute.xlu0 3
  %1727 = vperm.xlu0 %1726, %v551
  %v1728 = vpop.permute.xlu0 %1727
  %vm1729 = vcmp.eq.s32.totalorder %v1659, %v865
  %vm1730 = vcmp.eq.s32.totalorder %v1659, %v866
  %vm1731 = vcmp.eq.s32.totalorder %v1662, %v867
  %vm1732 = vcmp.eq.s32.totalorder %v1662, %v868
  %vm1733 = vcmp.eq.s32.totalorder %v1665, %v869
  %vm1734 = vcmp.eq.s32.totalorder %v1665, %v870
  %vm1735 = vcmp.eq.s32.totalorder %v1668, %v871
  %vm1736 = vcmp.eq.s32.totalorder %v1668, %v872
  %vm1737 = vcmp.eq.s32.totalorder %v1671, %v873
  %vm1738 = vcmp.eq.s32.totalorder %v1671, %v874
  %vm1739 = vcmp.eq.s32.totalorder %v1674, %v875
  %vm1740 = vcmp.eq.s32.totalorder %v1674, %v876
  %vm1741 = vcmp.eq.s32.totalorder %v1677, %v877
  %vm1742 = vcmp.eq.s32.totalorder %v1677, %v878
  %vm1743 = vcmp.eq.s32.totalorder %v1680, %v879
  %vm1744 = vcmp.eq.s32.totalorder %v1680, %v880
  %vm1745 = vcmp.eq.s32.totalorder %v1683, %v881
  %vm1746 = vcmp.eq.s32.totalorder %v1683, %v882
  %vm1747 = vcmp.eq.s32.totalorder %v1686, %v883
  %vm1748 = vcmp.eq.s32.totalorder %v1686, %v884
  %vm1749 = vcmp.eq.s32.totalorder %v1689, %v885
  %vm1750 = vcmp.eq.s32.totalorder %v1689, %v886
  %vm1751 = vcmp.eq.s32.totalorder %v1692, %v887
  %vm1752 = vcmp.eq.s32.totalorder %v1692, %v888
  %vm1753 = vcmp.eq.s32.totalorder %v1695, %v889
  %vm1754 = vcmp.eq.s32.totalorder %v1695, %v890
  %vm1755 = vcmp.eq.s32.totalorder %v1698, %v891
  %vm1756 = vcmp.eq.s32.totalorder %v1698, %v892
  %vm1757 = vcmp.eq.s32.totalorder %v1701, %v893
  %vm1758 = vcmp.eq.s32.totalorder %v1701, %v894
  %vm1759 = vcmp.eq.s32.totalorder %v1704, %v895
  %vm1760 = vcmp.eq.s32.totalorder %v1704, %v896
  %vm1761 = vcmp.eq.s32.totalorder %v1707, %v897
  %vm1762 = vcmp.eq.s32.totalorder %v1707, %v898
  %vm1763 = vcmp.eq.s32.totalorder %v1710, %v899
  %vm1764 = vcmp.eq.s32.totalorder %v1710, %v900
  %vm1765 = vcmp.eq.s32.totalorder %v1713, %v901
  %vm1766 = vcmp.eq.s32.totalorder %v1713, %v902
  %vm1767 = vcmp.eq.s32.totalorder %v1716, %v903
  %vm1768 = vcmp.eq.s32.totalorder %v1716, %v904
  %vm1769 = vcmp.eq.s32.totalorder %v1719, %v905
  %vm1770 = vcmp.eq.s32.totalorder %v1719, %v906
  %vm1771 = vcmp.eq.s32.totalorder %v1722, %v907
  %vm1772 = vcmp.eq.s32.totalorder %v1722, %v908
  %vm1773 = vcmp.eq.s32.totalorder %v1725, %v909
  %vm1774 = vcmp.eq.s32.totalorder %v1725, %v910
  %vm1775 = vcmp.eq.s32.totalorder %v1728, %v911
  %vm1776 = vcmp.eq.s32.totalorder %v1728, %v912
  %v1777 = vsel %vm1729, 1, 0
  %v1778 = vsel %vm1730, 1, 0
  %v1779 = vsel %vm1731, 1, 0
  %v1780 = vsel %vm1732, 1, 0
  %v1781 = vsel %vm1733, 1, 0
  %v1782 = vsel %vm1734, 1, 0
  %v1783 = vsel %vm1735, 1, 0
  %v1784 = vsel %vm1736, 1, 0
  %v1785 = vsel %vm1737, 1, 0
  %v1786 = vsel %vm1738, 1, 0
  %v1787 = vsel %vm1739, 1, 0
  %v1788 = vsel %vm1740, 1, 0
  %v1789 = vsel %vm1741, 1, 0
  %v1790 = vsel %vm1742, 1, 0
  %v1791 = vsel %vm1743, 1, 0
  %v1792 = vsel %vm1744, 1, 0
  %v1793 = vsel %vm1745, 1, 0
  %v1794 = vsel %vm1746, 1, 0
  %v1795 = vsel %vm1747, 1, 0
  %v1796 = vsel %vm1748, 1, 0
  %v1797 = vsel %vm1749, 1, 0
  %v1798 = vsel %vm1750, 1, 0
  %v1799 = vsel %vm1751, 1, 0
  %v1800 = vsel %vm1752, 1, 0
  %v1801 = vsel %vm1753, 1, 0
  %v1802 = vsel %vm1754, 1, 0
  %v1803 = vsel %vm1755, 1, 0
  %v1804 = vsel %vm1756, 1, 0
  %v1805 = vsel %vm1757, 1, 0
  %v1806 = vsel %vm1758, 1, 0
  %v1807 = vsel %vm1759, 1, 0
  %v1808 = vsel %vm1760, 1, 0
  %v1809 = vsel %vm1761, 1, 0
  %v1810 = vsel %vm1762, 1, 0
  %v1811 = vsel %vm1763, 1, 0
  %v1812 = vsel %vm1764, 1, 0
  %v1813 = vsel %vm1765, 1, 0
  %v1814 = vsel %vm1766, 1, 0
  %v1815 = vsel %vm1767, 1, 0
  %v1816 = vsel %vm1768, 1, 0
  %v1817 = vsel %vm1769, 1, 0
  %v1818 = vsel %vm1770, 1, 0
  %v1819 = vsel %vm1771, 1, 0
  %v1820 = vsel %vm1772, 1, 0
  %v1821 = vsel %vm1773, 1, 0
  %v1822 = vsel %vm1774, 1, 0
  %v1823 = vsel %vm1775, 1, 0
  %v1824 = vsel %vm1776, 1, 0
  %v1825 = vcvt.s32.f32 %v1777
  %v1826 = vcvt.s32.f32 %v1778
  %v1827 = vcvt.s32.f32 %v1779
  %v1828 = vcvt.s32.f32 %v1780
  %v1829 = vcvt.s32.f32 %v1781
  %v1830 = vcvt.s32.f32 %v1782
  %v1831 = vcvt.s32.f32 %v1783
  %v1832 = vcvt.s32.f32 %v1784
  %v1833 = vcvt.s32.f32 %v1785
  %v1834 = vcvt.s32.f32 %v1786
  %v1835 = vcvt.s32.f32 %v1787
  %v1836 = vcvt.s32.f32 %v1788
  %v1837 = vcvt.s32.f32 %v1789
  %v1838 = vcvt.s32.f32 %v1790
  %v1839 = vcvt.s32.f32 %v1791
  %v1840 = vcvt.s32.f32 %v1792
  %v1841 = vcvt.s32.f32 %v1793
  %v1842 = vcvt.s32.f32 %v1794
  %v1843 = vcvt.s32.f32 %v1795
  %v1844 = vcvt.s32.f32 %v1796
  %v1845 = vcvt.s32.f32 %v1797
  %v1846 = vcvt.s32.f32 %v1798
  %v1847 = vcvt.s32.f32 %v1799
  %v1848 = vcvt.s32.f32 %v1800
  %v1849 = vcvt.s32.f32 %v1801
  %v1850 = vcvt.s32.f32 %v1802
  %v1851 = vcvt.s32.f32 %v1803
  %v1852 = vcvt.s32.f32 %v1804
  %v1853 = vcvt.s32.f32 %v1805
  %v1854 = vcvt.s32.f32 %v1806
  %v1855 = vcvt.s32.f32 %v1807
  %v1856 = vcvt.s32.f32 %v1808
  %v1857 = vcvt.s32.f32 %v1809
  %v1858 = vcvt.s32.f32 %v1810
  %v1859 = vcvt.s32.f32 %v1811
  %v1860 = vcvt.s32.f32 %v1812
  %v1861 = vcvt.s32.f32 %v1813
  %v1862 = vcvt.s32.f32 %v1814
  %v1863 = vcvt.s32.f32 %v1815
  %v1864 = vcvt.s32.f32 %v1816
  %v1865 = vcvt.s32.f32 %v1817
  %v1866 = vcvt.s32.f32 %v1818
  %v1867 = vcvt.s32.f32 %v1819
  %v1868 = vcvt.s32.f32 %v1820
  %v1869 = vcvt.s32.f32 %v1821
  %v1870 = vcvt.s32.f32 %v1822
  %v1871 = vcvt.s32.f32 %v1823
  %v1872 = vcvt.s32.f32 %v1824
  %v1873 = vadd.f32 %v1609, %v1825
  %v1874 = vadd.f32 %v1610, %v1826
  %v1875 = vadd.f32 %v1611, %v1827
  %v1876 = vadd.f32 %v1612, %v1828
  %v1877 = vadd.f32 %v1613, %v1829
  %v1878 = vadd.f32 %v1614, %v1830
  %v1879 = vadd.f32 %v1615, %v1831
  %v1880 = vadd.f32 %v1616, %v1832
  %v1881 = vadd.f32 %v1617, %v1833
  %v1882 = vadd.f32 %v1618, %v1834
  %v1883 = vadd.f32 %v1619, %v1835
  %v1884 = vadd.f32 %v1620, %v1836
  %v1885 = vadd.f32 %v1621, %v1837
  %v1886 = vadd.f32 %v1622, %v1838
  %v1887 = vadd.f32 %v1623, %v1839
  %v1888 = vadd.f32 %v1624, %v1840
  %v1889 = vadd.f32 %v1625, %v1841
  %v1890 = vadd.f32 %v1626, %v1842
  %v1891 = vadd.f32 %v1627, %v1843
  %v1892 = vadd.f32 %v1628, %v1844
  %v1893 = vadd.f32 %v1629, %v1845
  %v1894 = vadd.f32 %v1630, %v1846
  %v1895 = vadd.f32 %v1631, %v1847
  %v1896 = vadd.f32 %v1632, %v1848
  %v1897 = vadd.f32 %v1633, %v1849
  %v1898 = vadd.f32 %v1634, %v1850
  %v1899 = vadd.f32 %v1635, %v1851
  %v1900 = vadd.f32 %v1636, %v1852
  %v1901 = vadd.f32 %v1637, %v1853
  %v1902 = vadd.f32 %v1638, %v1854
  %v1903 = vadd.f32 %v1639, %v1855
  %v1904 = vadd.f32 %v1640, %v1856
  %v1905 = vadd.f32 %v1641, %v1857
  %v1906 = vadd.f32 %v1642, %v1858
  %v1907 = vadd.f32 %v1643, %v1859
  %v1908 = vadd.f32 %v1644, %v1860
  %v1909 = vadd.f32 %v1645, %v1861
  %v1910 = vadd.f32 %v1646, %v1862
  %v1911 = vadd.f32 %v1647, %v1863
  %v1912 = vadd.f32 %v1648, %v1864
  %v1913 = vadd.f32 %v1649, %v1865
  %v1914 = vadd.f32 %v1650, %v1866
  %v1915 = vadd.f32 %v1651, %v1867
  %v1916 = vadd.f32 %v1652, %v1868
  %v1917 = vadd.f32 %v1653, %v1869
  %v1918 = vadd.f32 %v1654, %v1870
  %v1919 = vadd.f32 %v1655, %v1871
  %v1920 = vadd.f32 %v1656, %v1872
  %v1921 = vmul.f32 %v1873, %v793
  %v1922 = vmul.f32 %v1874, %v793
  %v1923 = vmul.f32 %v1875, %v794
  %v1924 = vmul.f32 %v1876, %v794
  %v1925 = vmul.f32 %v1877, %v795
  %v1926 = vmul.f32 %v1878, %v795
  %v1927 = vmul.f32 %v1879, %v796
  %v1928 = vmul.f32 %v1880, %v796
  %v1929 = vmul.f32 %v1881, %v797
  %v1930 = vmul.f32 %v1882, %v797
  %v1931 = vmul.f32 %v1883, %v798
  %v1932 = vmul.f32 %v1884, %v798
  %v1933 = vmul.f32 %v1885, %v799
  %v1934 = vmul.f32 %v1886, %v799
  %v1935 = vmul.f32 %v1887, %v800
  %v1936 = vmul.f32 %v1888, %v800
  %v1937 = vmul.f32 %v1889, %v801
  %v1938 = vmul.f32 %v1890, %v801
  %v1939 = vmul.f32 %v1891, %v802
  %v1940 = vmul.f32 %v1892, %v802
  %v1941 = vmul.f32 %v1893, %v803
  %v1942 = vmul.f32 %v1894, %v803
  %v1943 = vmul.f32 %v1895, %v804
  %v1944 = vmul.f32 %v1896, %v804
  %v1945 = vmul.f32 %v1897, %v805
  %v1946 = vmul.f32 %v1898, %v805
  %v1947 = vmul.f32 %v1899, %v806
  %v1948 = vmul.f32 %v1900, %v806
  %v1949 = vmul.f32 %v1901, %v807
  %v1950 = vmul.f32 %v1902, %v807
  %v1951 = vmul.f32 %v1903, %v808
  %v1952 = vmul.f32 %v1904, %v808
  %v1953 = vmul.f32 %v1905, %v809
  %v1954 = vmul.f32 %v1906, %v809
  %v1955 = vmul.f32 %v1907, %v810
  %v1956 = vmul.f32 %v1908, %v810
  %v1957 = vmul.f32 %v1909, %v811
  %v1958 = vmul.f32 %v1910, %v811
  %v1959 = vmul.f32 %v1911, %v812
  %v1960 = vmul.f32 %v1912, %v812
  %v1961 = vmul.f32 %v1913, %v813
  %v1962 = vmul.f32 %v1914, %v813
  %v1963 = vmul.f32 %v1915, %v814
  %v1964 = vmul.f32 %v1916, %v814
  %v1965 = vmul.f32 %v1917, %v815
  %v1966 = vmul.f32 %v1918, %v815
  %v1967 = vmul.f32 %v1919, %v816
  %v1968 = vmul.f32 %v1920, %v816
  %vm1969 = vcmask 523264
  %v1971 = vsel %vm1969, %v1922, 0
  %v1974 = vsel %vm1969, %v1924, 0
  %v1977 = vsel %vm1969, %v1926, 0
  %v1980 = vsel %vm1969, %v1928, 0
  %v1983 = vsel %vm1969, %v1930, 0
  %v1986 = vsel %vm1969, %v1932, 0
  %v1989 = vsel %vm1969, %v1934, 0
  %v1992 = vsel %vm1969, %v1936, 0
  %v1995 = vsel %vm1969, %v1938, 0
  %v1998 = vsel %vm1969, %v1940, 0
  %v2001 = vsel %vm1969, %v1942, 0
  %v2004 = vsel %vm1969, %v1944, 0
  %v2007 = vsel %vm1969, %v1946, 0
  %v2010 = vsel %vm1969, %v1948, 0
  %v2013 = vsel %vm1969, %v1950, 0
  %v2016 = vsel %vm1969, %v1952, 0
  %v2019 = vsel %vm1969, %v1954, 0
  %v2022 = vsel %vm1969, %v1956, 0
  %v2025 = vsel %vm1969, %v1958, 0
  %v2028 = vsel %vm1969, %v1960, 0
  %v2031 = vsel %vm1969, %v1962, 0
  %v2034 = vsel %vm1969, %v1964, 0
  %v2037 = vsel %vm1969, %v1966, 0
  %v2040 = vsel %vm1969, %v1968, 0
  %2042 = vmatprep.subr.mxu0 0.0
  %2043 = vmatpush1.msra.mxu0 %v360
  %2044 = vmatprep.subr.mxu0 0.0
  %2045 = vmatpush1.msra.mxu0 %v361
  %2046 = vmatprep.subr.mxu0 0.0
  %2047 = vmatpush1.msra.mxu0 %v362
  %2048 = vmatprep.subr.mxu0 0.0
  %2049 = vmatpush1.msra.mxu0 %v363
  %2050 = vmatprep.subr.mxu0 0.0
  %2051 = vmatpush1.msra.mxu0 %v364
  %2052 = vmatprep.subr.mxu0 0.0
  %2053 = vmatpush1.msra.mxu0 %v365
  %2054 = vmatprep.subr.mxu0 0.0
  %2055 = vmatpush1.msra.mxu0 %v366
  %2056 = vmatprep.subr.mxu0 0.0
  %2057 = vmatpush1.msra.mxu0 %v367
  %2058 = vmatprep.subr.mxu0 0.0
  %2059 = vmatpush1.msra.mxu0 %v368
  %2060 = vmatprep.subr.mxu0 0.0
  %2061 = vmatpush1.msra.mxu0 %v369
  %2062 = vmatprep.subr.mxu0 0.0
  %2063 = vmatpush1.msra.mxu0 %v370
  %2064 = vmatprep.subr.mxu0 0.0
  %2065 = vmatpush1.msra.mxu0 %v371
  %2066 = vmatprep.subr.mxu0 0.0
  %2067 = vmatpush1.msra.mxu0 %v372
  %2068 = vmatprep.subr.mxu0 0.0
  %2069 = vmatpush1.msra.mxu0 %v373
  %2070 = vmatprep.subr.mxu0 0.0
  %2071 = vmatpush1.msra.mxu0 %v374
  %2072 = vmatprep.subr.mxu0 0.0
  %2073 = vmatpush1.msra.mxu0 %v375
  %2074 = vmatprep.subr.mxu0 0.0
  %2075 = vmatpush1.msra.mxu0 %v376
  %2076 = vmatprep.subr.mxu0 0.0
  %2077 = vmatpush1.msra.mxu0 %v377
  %2078 = vmatprep.subr.mxu0 0.0
  %2079 = vmatpush1.msra.mxu0 %v378
  %2080 = vmatprep.subr.mxu0 0.0
  %2081 = vmatpush1.msra.mxu0 %v379
  %2082 = vmatprep.subr.mxu0 0.0
  %2083 = vmatpush1.msra.mxu0 %v380
  %2084 = vmatprep.subr.mxu0 0.0
  %2085 = vmatpush1.msra.mxu0 %v381
  %2086 = vmatprep.subr.mxu0 0.0
  %2087 = vmatpush1.msra.mxu0 %v382
  %2088 = vmatprep.subr.mxu0 0.0
  %2089 = vmatpush1.msra.mxu0 %v383
  %2090 = vmatprep.subr.mxu0 0.0
  %2091 = vmatpush1.msra.mxu0 0.0
  %2092 = vmatprep.subr.mxu0 0.0
  %2093 = vmatpush1.msra.mxu0 0.0
  %2094 = vmatprep.subr.mxu0 0.0
  %2095 = vmatpush1.msra.mxu0 0.0
  %2096 = vmatprep.subr.mxu0 0.0
  %2097 = vmatpush1.msra.mxu0 0.0
  %2098 = vmatprep.subr.mxu0 0.0
  %2099 = vmatpush1.msra.mxu0 0.0
  %2100 = vmatprep.subr.mxu0 0.0
  %2101 = vmatpush1.msra.mxu0 0.0
  %2102 = vmatprep.subr.mxu0 0.0
  %2103 = vmatpush1.msra.mxu0 0.0
  %2104 = vmatprep.subr.mxu0 0.0
  %2105 = vmatpush1.msra.mxu0 0.0
  %2106 = vmatprep.mubr.f32.mxu0 %v1971
  %2107 = vmatmul.mubr.f32.gmra.mrb[0].mxu0 %v1921
  %v2108 = vpop.f32.mrb[0].mxu0
  %v2109 = vadd.f32 0.0, %v2108
  %v2110 = vpop.f32.mrb[0].mxu0
  %2111 = vmatprep.mubr.f32.mxu0 %v1974
  %2112 = vmatmul.mubr.f32.gmra.mrb[0].mxu0 %v1923
  %v2113 = vpop.f32.mrb[0].mxu0
  %v2114 = vadd.f32 0.0, %v2113
  %v2115 = vpop.f32.mrb[0].mxu0
  %2116 = vmatprep.mubr.f32.mxu0 %v1977
  %2117 = vmatmul.mubr.f32.gmra.mrb[0].mxu0 %v1925
  %v2118 = vpop.f32.mrb[0].mxu0
  %v2119 = vadd.f32 0.0, %v2118
  %v2120 = vpop.f32.mrb[0].mxu0
  %2121 = vmatprep.mubr.f32.mxu0 %v1980
  %2122 = vmatmul.mubr.f32.gmra.mrb[0].mxu0 %v1927
  %v2123 = vpop.f32.mrb[0].mxu0
  %v2124 = vadd.f32 0.0, %v2123
  %v2125 = vpop.f32.mrb[0].mxu0
  %2126 = vmatprep.mubr.f32.mxu0 %v1983
  %2127 = vmatmul.mubr.f32.gmra.mrb[0].mxu0 %v1929
  %v2128 = vpop.f32.mrb[0].mxu0
  %v2129 = vadd.f32 0.0, %v2128
  %v2130 = vpop.f32.mrb[0].mxu0
  %2131 = vmatprep.mubr.f32.mxu0 %v1986
  %2132 = vmatmul.mubr.f32.gmra.mrb[0].mxu0 %v1931
  %v2133 = vpop.f32.mrb[0].mxu0
  %v2134 = vadd.f32 0.0, %v2133
  %v2135 = vpop.f32.mrb[0].mxu0
  %2136 = vmatprep.mubr.f32.mxu0 %v1989
  %2137 = vmatmul.mubr.f32.gmra.mrb[0].mxu0 %v1933
  %v2138 = vpop.f32.mrb[0].mxu0
  %v2139 = vadd.f32 0.0, %v2138
  %v2140 = vpop.f32.mrb[0].mxu0
  %2141 = vmatprep.mubr.f32.mxu0 %v1992
  %2142 = vmatmul.mubr.f32.gmra.mrb[0].mxu0 %v1935
  %v2143 = vpop.f32.mrb[0].mxu0
  %v2144 = vadd.f32 0.0, %v2143
  %v2145 = vpop.f32.mrb[0].mxu0
  %2146 = vmatprep.mubr.f32.mxu0 %v1995
  %2147 = vmatmul.mubr.f32.gmra.mrb[0].mxu0 %v1937
  %v2148 = vpop.f32.mrb[0].mxu0
  %v2149 = vadd.f32 0.0, %v2148
  %v2150 = vpop.f32.mrb[0].mxu0
  %2151 = vmatprep.mubr.f32.mxu0 %v1998
  %2152 = vmatmul.mubr.f32.gmra.mrb[0].mxu0 %v1939
  %v2153 = vpop.f32.mrb[0].mxu0
  %v2154 = vadd.f32 0.0, %v2153
  %v2155 = vpop.f32.mrb[0].mxu0
  %2156 = vmatprep.mubr.f32.mxu0 %v2001
  %2157 = vmatmul.mubr.f32.gmra.mrb[0].mxu0 %v1941
  %v2158 = vpop.f32.mrb[0].mxu0
  %v2159 = vadd.f32 0.0, %v2158
  %v2160 = vpop.f32.mrb[0].mxu0
  %2161 = vmatprep.mubr.f32.mxu0 %v2004
  %2162 = vmatmul.mubr.f32.gmra.mrb[0].mxu0 %v1943
  %v2163 = vpop.f32.mrb[0].mxu0
  %v2164 = vadd.f32 0.0, %v2163
  %v2165 = vpop.f32.mrb[0].mxu0
  %2166 = vmatprep.mubr.f32.mxu0 %v2007
  %2167 = vmatmul.mubr.f32.gmra.mrb[0].mxu0 %v1945
  %v2168 = vpop.f32.mrb[0].mxu0
  %v2169 = vadd.f32 0.0, %v2168
  %v2170 = vpop.f32.mrb[0].mxu0
  %2171 = vmatprep.mubr.f32.mxu0 %v2010
  %2172 = vmatmul.mubr.f32.gmra.mrb[0].mxu0 %v1947
  %v2173 = vpop.f32.mrb[0].mxu0
  %v2174 = vadd.f32 0.0, %v2173
  %v2175 = vpop.f32.mrb[0].mxu0
  %2176 = vmatprep.mubr.f32.mxu0 %v2013
  %2177 = vmatmul.mubr.f32.gmra.mrb[0].mxu0 %v1949
  %v2178 = vpop.f32.mrb[0].mxu0
  %v2179 = vadd.f32 0.0, %v2178
  %v2180 = vpop.f32.mrb[0].mxu0
  %2181 = vmatprep.mubr.f32.mxu0 %v2016
  %2182 = vmatmul.mubr.f32.gmra.mrb[0].mxu0 %v1951
  %v2183 = vpop.f32.mrb[0].mxu0
  %v2184 = vadd.f32 0.0, %v2183
  %v2185 = vpop.f32.mrb[0].mxu0
  %2186 = vmatprep.mubr.f32.mxu0 %v2019
  %2187 = vmatmul.mubr.f32.gmra.mrb[0].mxu0 %v1953
  %v2188 = vpop.f32.mrb[0].mxu0
  %v2189 = vadd.f32 0.0, %v2188
  %v2190 = vpop.f32.mrb[0].mxu0
  %2191 = vmatprep.mubr.f32.mxu0 %v2022
  %2192 = vmatmul.mubr.f32.gmra.mrb[0].mxu0 %v1955
  %v2193 = vpop.f32.mrb[0].mxu0
  %v2194 = vadd.f32 0.0, %v2193
  %v2195 = vpop.f32.mrb[0].mxu0
  %2196 = vmatprep.mubr.f32.mxu0 %v2025
  %2197 = vmatmul.mubr.f32.gmra.mrb[0].mxu0 %v1957
  %v2198 = vpop.f32.mrb[0].mxu0
  %v2199 = vadd.f32 0.0, %v2198
  %v2200 = vpop.f32.mrb[0].mxu0
  %2201 = vmatprep.mubr.f32.mxu0 %v2028
  %2202 = vmatmul.mubr.f32.gmra.mrb[0].mxu0 %v1959
  %v2203 = vpop.f32.mrb[0].mxu0
  %v2204 = vadd.f32 0.0, %v2203
  %v2205 = vpop.f32.mrb[0].mxu0
  %2206 = vmatprep.mubr.f32.mxu0 %v2031
  %2207 = vmatmul.mubr.f32.gmra.mrb[0].mxu0 %v1961
  %v2208 = vpop.f32.mrb[0].mxu0
  %v2209 = vadd.f32 0.0, %v2208
  %v2210 = vpop.f32.mrb[0].mxu0
  %2211 = vmatprep.mubr.f32.mxu0 %v2034
  %2212 = vmatmul.mubr.f32.gmra.mrb[0].mxu0 %v1963
  %v2213 = vpop.f32.mrb[0].mxu0
  %v2214 = vadd.f32 0.0, %v2213
  %v2215 = vpop.f32.mrb[0].mxu0
  %2216 = vmatprep.mubr.f32.mxu0 %v2037
  %2217 = vmatmul.mubr.f32.gmra.mrb[0].mxu0 %v1965
  %v2218 = vpop.f32.mrb[0].mxu0
  %v2219 = vadd.f32 0.0, %v2218
  %v2220 = vpop.f32.mrb[0].mxu0
  %2221 = vmatprep.mubr.f32.mxu0 %v2040
  %2222 = vmatmul.mubr.f32.gmra.mrb[0].mxu0 %v1967
  %v2223 = vpop.f32.mrb[0].mxu0
  %v2224 = vadd.f32 0.0, %v2223
  %v2225 = vpop.f32.mrb[0].mxu0
  %2226 = vdwg.mxu0
  %v2227 = vld [vmem:[%s7] sm:$0xff]
  %v2228 = vld [vmem:[%s7 + $0x8] sm:$0xff]
  %v2229 = vld [vmem:[%s7 + $0x10] sm:$0xff]
  %v2230 = vld [vmem:[%s7 + $0x18] sm:$0xff]
  %v2231 = vld [vmem:[%s7 + $0x20] sm:$0xff]
  %v2232 = vld [vmem:[%s7 + $0x28] sm:$0xff]
  %v2233 = vld [vmem:[%s7 + $0x30] sm:$0xff]
  %v2234 = vld [vmem:[%s7 + $0x38] sm:$0xff]
  %v2235 = vld [vmem:[%s7 + $0x40] sm:$0xff]
  %v2236 = vld [vmem:[%s7 + $0x48] sm:$0xff]
  %v2237 = vld [vmem:[%s7 + $0x50] sm:$0xff]
  %v2238 = vld [vmem:[%s7 + $0x58] sm:$0xff]
  %v2239 = vld [vmem:[%s7 + $0x60] sm:$0xff]
  %v2240 = vld [vmem:[%s7 + $0x68] sm:$0xff]
  %v2241 = vld [vmem:[%s7 + $0x70] sm:$0xff]
  %v2242 = vld [vmem:[%s7 + $0x78] sm:$0xff]
  %v2244 = vsel %vm1969, %v2109, 0
  %v2247 = vsel %vm1969, %v2114, 0
  %v2250 = vsel %vm1969, %v2119, 0
  %v2253 = vsel %vm1969, %v2124, 0
  %v2256 = vsel %vm1969, %v2129, 0
  %v2259 = vsel %vm1969, %v2134, 0
  %v2262 = vsel %vm1969, %v2139, 0
  %v2265 = vsel %vm1969, %v2144, 0
  %v2268 = vsel %vm1969, %v2149, 0
  %v2271 = vsel %vm1969, %v2154, 0
  %v2274 = vsel %vm1969, %v2159, 0
  %v2277 = vsel %vm1969, %v2164, 0
  %v2280 = vsel %vm1969, %v2169, 0
  %v2283 = vsel %vm1969, %v2174, 0
  %v2286 = vsel %vm1969, %v2179, 0
  %v2289 = vsel %vm1969, %v2184, 0
  %v2292 = vsel %vm1969, %v2189, 0
  %v2295 = vsel %vm1969, %v2194, 0
  %v2298 = vsel %vm1969, %v2199, 0
  %v2301 = vsel %vm1969, %v2204, 0
  %v2304 = vsel %vm1969, %v2209, 0
  %v2307 = vsel %vm1969, %v2214, 0
  %v2310 = vsel %vm1969, %v2219, 0
  %v2313 = vsel %vm1969, %v2224, 0
  %2315 = vmatprep.subr.mxu0 0.0
  %2316 = vmatpush1.msra.mxu0 %v2235
  %2317 = vmatprep.subr.mxu0 0.0
  %2318 = vmatpush1.msra.mxu0 %v2236
  %2319 = vmatprep.subr.mxu0 0.0
  %2320 = vmatpush1.msra.mxu0 %v2237
  %2321 = vmatprep.subr.mxu0 0.0
  %2322 = vmatpush1.msra.mxu0 %v2238
  %2323 = vmatprep.subr.mxu0 0.0
  %2324 = vmatpush1.msra.mxu0 %v2239
  %2325 = vmatprep.subr.mxu0 0.0
  %2326 = vmatpush1.msra.mxu0 %v2240
  %2327 = vmatprep.subr.mxu0 0.0
  %2328 = vmatpush1.msra.mxu0 %v2241
  %2329 = vmatprep.subr.mxu0 0.0
  %2330 = vmatpush1.msra.mxu0 %v2242
  %2331 = vmatprep.subr.mxu0 0.0
  %2332 = vmatpush1.msra.mxu0 0.0
  %2333 = vmatprep.subr.mxu0 0.0
  %2334 = vmatpush1.msra.mxu0 0.0
  %2335 = vmatprep.subr.mxu0 0.0
  %2336 = vmatpush1.msra.mxu0 0.0
  %2337 = vmatprep.subr.mxu0 0.0
  %2338 = vmatpush1.msra.mxu0 0.0
  %2339 = vmatprep.subr.mxu0 0.0
  %2340 = vmatpush1.msra.mxu0 0.0
  %2341 = vmatprep.subr.mxu0 0.0
  %2342 = vmatpush1.msra.mxu0 0.0
  %2343 = vmatprep.subr.mxu0 0.0
  %2344 = vmatpush1.msra.mxu0 0.0
  %2345 = vmatprep.subr.mxu0 0.0
  %2346 = vmatpush1.msra.mxu0 0.0
  %2347 = vmatprep.subr.mxu0 0.0
  %2348 = vmatpush1.msra.mxu0 0.0
  %2349 = vmatprep.subr.mxu0 0.0
  %2350 = vmatpush1.msra.mxu0 0.0
  %2351 = vmatprep.subr.mxu0 0.0
  %2352 = vmatpush1.msra.mxu0 0.0
  %2353 = vmatprep.subr.mxu0 0.0
  %2354 = vmatpush1.msra.mxu0 0.0
  %2355 = vmatprep.subr.mxu0 0.0
  %2356 = vmatpush1.msra.mxu0 0.0
  %2357 = vmatprep.subr.mxu0 0.0
  %2358 = vmatpush1.msra.mxu0 0.0
  %2359 = vmatprep.subr.mxu0 0.0
  %2360 = vmatpush1.msra.mxu0 0.0
  %2361 = vmatprep.subr.mxu0 0.0
  %2362 = vmatpush1.msra.mxu0 0.0
  %2363 = vmatprep.subr.mxu0 0.0
  %2364 = vmatpush1.msra.mxu0 0.0
  %2365 = vmatprep.subr.mxu0 0.0
  %2366 = vmatpush1.msra.mxu0 0.0
  %2367 = vmatprep.subr.mxu0 0.0
  %2368 = vmatpush1.msra.mxu0 0.0
  %2369 = vmatprep.subr.mxu0 0.0
  %2370 = vmatpush1.msra.mxu0 0.0
  %2371 = vmatprep.subr.mxu0 0.0
  %2372 = vmatpush1.msra.mxu0 0.0
  %2373 = vmatprep.subr.mxu0 0.0
  %2374 = vmatpush1.msra.mxu0 0.0
  %2375 = vmatprep.subr.mxu0 0.0
  %2376 = vmatpush1.msra.mxu0 0.0
  %2377 = vmatprep.subr.mxu0 0.0
  %2378 = vmatpush1.msra.mxu0 0.0
  %2379 = vmatprep.mubr.f32.mxu0 0.0
  %2380 = vmatmul.mubr.f32.gmra.mrb[0].mxu0 %v2244
  %v2381 = vpop.f32.mrb[0].mxu0
  %v2382 = vadd.f32 0.0, %v2381
  %v2383 = vpop.f32.mrb[0].mxu0
  %2384 = vmatprep.mubr.f32.mxu0 0.0
  %2385 = vmatmul.mubr.f32.gmra.mrb[0].mxu0 %v2247
  %v2386 = vpop.f32.mrb[0].mxu0
  %v2387 = vadd.f32 0.0, %v2386
  %v2388 = vpop.f32.mrb[0].mxu0
  %2389 = vmatprep.mubr.f32.mxu0 0.0
  %2390 = vmatmul.mubr.f32.gmra.mrb[0].mxu0 %v2250
  %v2391 = vpop.f32.mrb[0].mxu0
  %v2392 = vadd.f32 0.0, %v2391
  %v2393 = vpop.f32.mrb[0].mxu0
  %2394 = vmatprep.mubr.f32.mxu0 0.0
  %2395 = vmatmul.mubr.f32.gmra.mrb[0].mxu0 %v2253
  %v2396 = vpop.f32.mrb[0].mxu0
  %v2397 = vadd.f32 0.0, %v2396
  %v2398 = vpop.f32.mrb[0].mxu0
  %2399 = vmatprep.mubr.f32.mxu0 0.0
  %2400 = vmatmul.mubr.f32.gmra.mrb[0].mxu0 %v2256
  %v2401 = vpop.f32.mrb[0].mxu0
  %v2402 = vadd.f32 0.0, %v2401
  %v2403 = vpop.f32.mrb[0].mxu0
  %2404 = vmatprep.mubr.f32.mxu0 0.0
  %2405 = vmatmul.mubr.f32.gmra.mrb[0].mxu0 %v2259
  %v2406 = vpop.f32.mrb[0].mxu0
  %v2407 = vadd.f32 0.0, %v2406
  %v2408 = vpop.f32.mrb[0].mxu0
  %2409 = vmatprep.mubr.f32.mxu0 0.0
  %2410 = vmatmul.mubr.f32.gmra.mrb[0].mxu0 %v2262
  %v2411 = vpop.f32.mrb[0].mxu0
  %v2412 = vadd.f32 0.0, %v2411
  %v2413 = vpop.f32.mrb[0].mxu0
  %2414 = vmatprep.mubr.f32.mxu0 0.0
  %2415 = vmatmul.mubr.f32.gmra.mrb[0].mxu0 %v2265
  %v2416 = vpop.f32.mrb[0].mxu0
  %v2417 = vadd.f32 0.0, %v2416
  %v2418 = vpop.f32.mrb[0].mxu0
  %2419 = vmatprep.mubr.f32.mxu0 0.0
  %2420 = vmatmul.mubr.f32.gmra.mrb[0].mxu0 %v2268
  %v2421 = vpop.f32.mrb[0].mxu0
  %v2422 = vadd.f32 0.0, %v2421
  %v2423 = vpop.f32.mrb[0].mxu0
  %2424 = vmatprep.mubr.f32.mxu0 0.0
  %2425 = vmatmul.mubr.f32.gmra.mrb[0].mxu0 %v2271
  %v2426 = vpop.f32.mrb[0].mxu0
  %v2427 = vadd.f32 0.0, %v2426
  %v2428 = vpop.f32.mrb[0].mxu0
  %2429 = vmatprep.mubr.f32.mxu0 0.0
  %2430 = vmatmul.mubr.f32.gmra.mrb[0].mxu0 %v2274
  %v2431 = vpop.f32.mrb[0].mxu0
  %v2432 = vadd.f32 0.0, %v2431
  %v2433 = vpop.f32.mrb[0].mxu0
  %2434 = vmatprep.mubr.f32.mxu0 0.0
  %2435 = vmatmul.mubr.f32.gmra.mrb[0].mxu0 %v2277
  %v2436 = vpop.f32.mrb[0].mxu0
  %v2437 = vadd.f32 0.0, %v2436
  %v2438 = vpop.f32.mrb[0].mxu0
  %2439 = vmatprep.mubr.f32.mxu0 0.0
  %2440 = vmatmul.mubr.f32.gmra.mrb[0].mxu0 %v2280
  %v2441 = vpop.f32.mrb[0].mxu0
  %v2442 = vadd.f32 0.0, %v2441
  %v2443 = vpop.f32.mrb[0].mxu0
  %2444 = vmatprep.mubr.f32.mxu0 0.0
  %2445 = vmatmul.mubr.f32.gmra.mrb[0].mxu0 %v2283
  %v2446 = vpop.f32.mrb[0].mxu0
  %v2447 = vadd.f32 0.0, %v2446
  %v2448 = vpop.f32.mrb[0].mxu0
  %2449 = vmatprep.mubr.f32.mxu0 0.0
  %2450 = vmatmul.mubr.f32.gmra.mrb[0].mxu0 %v2286
  %v2451 = vpop.f32.mrb[0].mxu0
  %v2452 = vadd.f32 0.0, %v2451
  %v2453 = vpop.f32.mrb[0].mxu0
  %2454 = vmatprep.mubr.f32.mxu0 0.0
  %2455 = vmatmul.mubr.f32.gmra.mrb[0].mxu0 %v2289
  %v2456 = vpop.f32.mrb[0].mxu0
  %v2457 = vadd.f32 0.0, %v2456
  %v2458 = vpop.f32.mrb[0].mxu0
  %2459 = vmatprep.mubr.f32.mxu0 0.0
  %2460 = vmatmul.mubr.f32.gmra.mrb[0].mxu0 %v2292
  %v2461 = vpop.f32.mrb[0].mxu0
  %v2462 = vadd.f32 0.0, %v2461
  %v2463 = vpop.f32.mrb[0].mxu0
  %2464 = vmatprep.mubr.f32.mxu0 0.0
  %2465 = vmatmul.mubr.f32.gmra.mrb[0].mxu0 %v2295
  %v2466 = vpop.f32.mrb[0].mxu0
  %v2467 = vadd.f32 0.0, %v2466
  %v2468 = vpop.f32.mrb[0].mxu0
  %2469 = vmatprep.mubr.f32.mxu0 0.0
  %2470 = vmatmul.mubr.f32.gmra.mrb[0].mxu0 %v2298
  %v2471 = vpop.f32.mrb[0].mxu0
  %v2472 = vadd.f32 0.0, %v2471
  %v2473 = vpop.f32.mrb[0].mxu0
  %2474 = vmatprep.mubr.f32.mxu0 0.0
  %2475 = vmatmul.mubr.f32.gmra.mrb[0].mxu0 %v2301
  %v2476 = vpop.f32.mrb[0].mxu0
  %v2477 = vadd.f32 0.0, %v2476
  %v2478 = vpop.f32.mrb[0].mxu0
  %2479 = vmatprep.mubr.f32.mxu0 0.0
  %2480 = vmatmul.mubr.f32.gmra.mrb[0].mxu0 %v2304
  %v2481 = vpop.f32.mrb[0].mxu0
  %v2482 = vadd.f32 0.0, %v2481
  %v2483 = vpop.f32.mrb[0].mxu0
  %2484 = vmatprep.mubr.f32.mxu0 0.0
  %2485 = vmatmul.mubr.f32.gmra.mrb[0].mxu0 %v2307
  %v2486 = vpop.f32.mrb[0].mxu0
  %v2487 = vadd.f32 0.0, %v2486
  %v2488 = vpop.f32.mrb[0].mxu0
  %2489 = vmatprep.mubr.f32.mxu0 0.0
  %2490 = vmatmul.mubr.f32.gmra.mrb[0].mxu0 %v2310
  %v2491 = vpop.f32.mrb[0].mxu0
  %v2492 = vadd.f32 0.0, %v2491
  %v2493 = vpop.f32.mrb[0].mxu0
  %2494 = vmatprep.mubr.f32.mxu0 0.0
  %2495 = vmatmul.mubr.f32.gmra.mrb[0].mxu0 %v2313
  %v2496 = vpop.f32.mrb[0].mxu0
  %v2497 = vadd.f32 0.0, %v2496
  %v2498 = vpop.f32.mrb[0].mxu0
  %2499 = vdwg.mxu0
  %v2501 = vsel %vm1969, %v360, 0
  %v2504 = vsel %vm1969, %v361, 0
  %v2507 = vsel %vm1969, %v362, 0
  %v2510 = vsel %vm1969, %v363, 0
  %v2513 = vsel %vm1969, %v364, 0
  %v2516 = vsel %vm1969, %v365, 0
  %v2519 = vsel %vm1969, %v366, 0
  %v2522 = vsel %vm1969, %v367, 0
  %v2525 = vsel %vm1969, %v368, 0
  %v2528 = vsel %vm1969, %v369, 0
  %v2531 = vsel %vm1969, %v370, 0
  %v2534 = vsel %vm1969, %v371, 0
  %v2537 = vsel %vm1969, %v372, 0
  %v2540 = vsel %vm1969, %v373, 0
  %v2543 = vsel %vm1969, %v374, 0
  %v2546 = vsel %vm1969, %v375, 0
  %v2549 = vsel %vm1969, %v376, 0
  %v2552 = vsel %vm1969, %v377, 0
  %v2555 = vsel %vm1969, %v378, 0
  %v2558 = vsel %vm1969, %v379, 0
  %v2561 = vsel %vm1969, %v380, 0
  %v2564 = vsel %vm1969, %v381, 0
  %v2567 = vsel %vm1969, %v382, 0
  %v2570 = vsel %vm1969, %v383, 0
  %2572 = vmatprep.subr.mxu0 0.0
  %2573 = vmatpush1.msra.mxu0 %v2227
  %2574 = vmatprep.subr.mxu0 0.0
  %2575 = vmatpush1.msra.mxu0 %v2228
  %2576 = vmatprep.subr.mxu0 0.0
  %2577 = vmatpush1.msra.mxu0 %v2229
  %2578 = vmatprep.subr.mxu0 0.0
  %2579 = vmatpush1.msra.mxu0 %v2230
  %2580 = vmatprep.subr.mxu0 0.0
  %2581 = vmatpush1.msra.mxu0 %v2231
  %2582 = vmatprep.subr.mxu0 0.0
  %2583 = vmatpush1.msra.mxu0 %v2232
  %2584 = vmatprep.subr.mxu0 0.0
  %2585 = vmatpush1.msra.mxu0 %v2233
  %2586 = vmatprep.subr.mxu0 0.0
  %2587 = vmatpush1.msra.mxu0 %v2234
  %2588 = vmatprep.subr.mxu0 0.0
  %2589 = vmatpush1.msra.mxu0 0.0
  %2590 = vmatprep.subr.mxu0 0.0
  %2591 = vmatpush1.msra.mxu0 0.0
  %2592 = vmatprep.subr.mxu0 0.0
  %2593 = vmatpush1.msra.mxu0 0.0
  %2594 = vmatprep.subr.mxu0 0.0
  %2595 = vmatpush1.msra.mxu0 0.0
  %2596 = vmatprep.subr.mxu0 0.0
  %2597 = vmatpush1.msra.mxu0 0.0
  %2598 = vmatprep.subr.mxu0 0.0
  %2599 = vmatpush1.msra.mxu0 0.0
  %2600 = vmatprep.subr.mxu0 0.0
  %2601 = vmatpush1.msra.mxu0 0.0
  %2602 = vmatprep.subr.mxu0 0.0
  %2603 = vmatpush1.msra.mxu0 0.0
  %2604 = vmatprep.subr.mxu0 0.0
  %2605 = vmatpush1.msra.mxu0 0.0
  %2606 = vmatprep.subr.mxu0 0.0
  %2607 = vmatpush1.msra.mxu0 0.0
  %2608 = vmatprep.subr.mxu0 0.0
  %2609 = vmatpush1.msra.mxu0 0.0
  %2610 = vmatprep.subr.mxu0 0.0
  %2611 = vmatpush1.msra.mxu0 0.0
  %2612 = vmatprep.subr.mxu0 0.0
  %2613 = vmatpush1.msra.mxu0 0.0
  %2614 = vmatprep.subr.mxu0 0.0
  %2615 = vmatpush1.msra.mxu0 0.0
  %2616 = vmatprep.subr.mxu0 0.0
  %2617 = vmatpush1.msra.mxu0 0.0
  %2618 = vmatprep.subr.mxu0 0.0
  %2619 = vmatpush1.msra.mxu0 0.0
  %2620 = vmatprep.subr.mxu0 0.0
  %2621 = vmatpush1.msra.mxu0 0.0
  %2622 = vmatprep.subr.mxu0 0.0
  %2623 = vmatpush1.msra.mxu0 0.0
  %2624 = vmatprep.subr.mxu0 0.0
  %2625 = vmatpush1.msra.mxu0 0.0
  %2626 = vmatprep.subr.mxu0 0.0
  %2627 = vmatpush1.msra.mxu0 0.0
  %2628 = vmatprep.subr.mxu0 0.0
  %2629 = vmatpush1.msra.mxu0 0.0
  %2630 = vmatprep.subr.mxu0 0.0
  %2631 = vmatpush1.msra.mxu0 0.0
  %2632 = vmatprep.subr.mxu0 0.0
  %2633 = vmatpush1.msra.mxu0 0.0
  %2634 = vmatprep.subr.mxu0 0.0
  %2635 = vmatpush1.msra.mxu0 0.0
  %2636 = vmatprep.mubr.f32.mxu0 0.0
  %2637 = vmatmul.mubr.f32.gmra.mrb[0].mxu0 %v2501
  %v2638 = vpop.f32.mrb[0].mxu0
  %v2639 = vadd.f32 %v2382, %v2638
  %v2640 = vpop.f32.mrb[0].mxu0
  %2641 = vmatprep.mubr.f32.mxu0 0.0
  %2642 = vmatmul.mubr.f32.gmra.mrb[0].mxu0 %v2504
  %v2643 = vpop.f32.mrb[0].mxu0
  %v2644 = vadd.f32 %v2387, %v2643
  %v2645 = vpop.f32.mrb[0].mxu0
  %2646 = vmatprep.mubr.f32.mxu0 0.0
  %2647 = vmatmul.mubr.f32.gmra.mrb[0].mxu0 %v2507
  %v2648 = vpop.f32.mrb[0].mxu0
  %v2649 = vadd.f32 %v2392, %v2648
  %v2650 = vpop.f32.mrb[0].mxu0
  %2651 = vmatprep.mubr.f32.mxu0 0.0
  %2652 = vmatmul.mubr.f32.gmra.mrb[0].mxu0 %v2510
  %v2653 = vpop.f32.mrb[0].mxu0
  %v2654 = vadd.f32 %v2397, %v2653
  %v2655 = vpop.f32.mrb[0].mxu0
  %2656 = vmatprep.mubr.f32.mxu0 0.0
  %2657 = vmatmul.mubr.f32.gmra.mrb[0].mxu0 %v2513
  %v2658 = vpop.f32.mrb[0].mxu0
  %v2659 = vadd.f32 %v2402, %v2658
  %v2660 = vpop.f32.mrb[0].mxu0
  %2661 = vmatprep.mubr.f32.mxu0 0.0
  %2662 = vmatmul.mubr.f32.gmra.mrb[0].mxu0 %v2516
  %v2663 = vpop.f32.mrb[0].mxu0
  %v2664 = vadd.f32 %v2407, %v2663
  %v2665 = vpop.f32.mrb[0].mxu0
  %2666 = vmatprep.mubr.f32.mxu0 0.0
  %2667 = vmatmul.mubr.f32.gmra.mrb[0].mxu0 %v2519
  %v2668 = vpop.f32.mrb[0].mxu0
  %v2669 = vadd.f32 %v2412, %v2668
  %v2670 = vpop.f32.mrb[0].mxu0
  %2671 = vmatprep.mubr.f32.mxu0 0.0
  %2672 = vmatmul.mubr.f32.gmra.mrb[0].mxu0 %v2522
  %v2673 = vpop.f32.mrb[0].mxu0
  %v2674 = vadd.f32 %v2417, %v2673
  %v2675 = vpop.f32.mrb[0].mxu0
  %2676 = vmatprep.mubr.f32.mxu0 0.0
  %2677 = vmatmul.mubr.f32.gmra.mrb[0].mxu0 %v2525
  %v2678 = vpop.f32.mrb[0].mxu0
  %v2679 = vadd.f32 %v2422, %v2678
  %v2680 = vpop.f32.mrb[0].mxu0
  %2681 = vmatprep.mubr.f32.mxu0 0.0
  %2682 = vmatmul.mubr.f32.gmra.mrb[0].mxu0 %v2528
  %v2683 = vpop.f32.mrb[0].mxu0
  %v2684 = vadd.f32 %v2427, %v2683
  %v2685 = vpop.f32.mrb[0].mxu0
  %2686 = vmatprep.mubr.f32.mxu0 0.0
  %2687 = vmatmul.mubr.f32.gmra.mrb[0].mxu0 %v2531
  %v2688 = vpop.f32.mrb[0].mxu0
  %v2689 = vadd.f32 %v2432, %v2688
  %v2690 = vpop.f32.mrb[0].mxu0
  %2691 = vmatprep.mubr.f32.mxu0 0.0
  %2692 = vmatmul.mubr.f32.gmra.mrb[0].mxu0 %v2534
  %v2693 = vpop.f32.mrb[0].mxu0
  %v2694 = vadd.f32 %v2437, %v2693
  %v2695 = vpop.f32.mrb[0].mxu0
  %2696 = vmatprep.mubr.f32.mxu0 0.0
  %2697 = vmatmul.mubr.f32.gmra.mrb[0].mxu0 %v2537
  %v2698 = vpop.f32.mrb[0].mxu0
  %v2699 = vadd.f32 %v2442, %v2698
  %v2700 = vpop.f32.mrb[0].mxu0
  %2701 = vmatprep.mubr.f32.mxu0 0.0
  %2702 = vmatmul.mubr.f32.gmra.mrb[0].mxu0 %v2540
  %v2703 = vpop.f32.mrb[0].mxu0
  %v2704 = vadd.f32 %v2447, %v2703
  %v2705 = vpop.f32.mrb[0].mxu0
  %2706 = vmatprep.mubr.f32.mxu0 0.0
  %2707 = vmatmul.mubr.f32.gmra.mrb[0].mxu0 %v2543
  %v2708 = vpop.f32.mrb[0].mxu0
  %v2709 = vadd.f32 %v2452, %v2708
  %v2710 = vpop.f32.mrb[0].mxu0
  %2711 = vmatprep.mubr.f32.mxu0 0.0
  %2712 = vmatmul.mubr.f32.gmra.mrb[0].mxu0 %v2546
  %v2713 = vpop.f32.mrb[0].mxu0
  %v2714 = vadd.f32 %v2457, %v2713
  %v2715 = vpop.f32.mrb[0].mxu0
  %2716 = vmatprep.mubr.f32.mxu0 0.0
  %2717 = vmatmul.mubr.f32.gmra.mrb[0].mxu0 %v2549
  %v2718 = vpop.f32.mrb[0].mxu0
  %v2719 = vadd.f32 %v2462, %v2718
  %v2720 = vpop.f32.mrb[0].mxu0
  %2721 = vmatprep.mubr.f32.mxu0 0.0
  %2722 = vmatmul.mubr.f32.gmra.mrb[0].mxu0 %v2552
  %v2723 = vpop.f32.mrb[0].mxu0
  %v2724 = vadd.f32 %v2467, %v2723
  %v2725 = vpop.f32.mrb[0].mxu0
  %2726 = vmatprep.mubr.f32.mxu0 0.0
  %2727 = vmatmul.mubr.f32.gmra.mrb[0].mxu0 %v2555
  %v2728 = vpop.f32.mrb[0].mxu0
  %v2729 = vadd.f32 %v2472, %v2728
  %v2730 = vpop.f32.mrb[0].mxu0
  %2731 = vmatprep.mubr.f32.mxu0 0.0
  %2732 = vmatmul.mubr.f32.gmra.mrb[0].mxu0 %v2558
  %v2733 = vpop.f32.mrb[0].mxu0
  %v2734 = vadd.f32 %v2477, %v2733
  %v2735 = vpop.f32.mrb[0].mxu0
  %2736 = vmatprep.mubr.f32.mxu0 0.0
  %2737 = vmatmul.mubr.f32.gmra.mrb[0].mxu0 %v2561
  %v2738 = vpop.f32.mrb[0].mxu0
  %v2739 = vadd.f32 %v2482, %v2738
  %v2740 = vpop.f32.mrb[0].mxu0
  %2741 = vmatprep.mubr.f32.mxu0 0.0
  %2742 = vmatmul.mubr.f32.gmra.mrb[0].mxu0 %v2564
  %v2743 = vpop.f32.mrb[0].mxu0
  %v2744 = vadd.f32 %v2487, %v2743
  %v2745 = vpop.f32.mrb[0].mxu0
  %2746 = vmatprep.mubr.f32.mxu0 0.0
  %2747 = vmatmul.mubr.f32.gmra.mrb[0].mxu0 %v2567
  %v2748 = vpop.f32.mrb[0].mxu0
  %v2749 = vadd.f32 %v2492, %v2748
  %v2750 = vpop.f32.mrb[0].mxu0
  %2751 = vmatprep.mubr.f32.mxu0 0.0
  %2752 = vmatmul.mubr.f32.gmra.mrb[0].mxu0 %v2570
  %v2753 = vpop.f32.mrb[0].mxu0
  %v2754 = vadd.f32 %v2497, %v2753
  %v2755 = vpop.f32.mrb[0].mxu0
  %2756 = vdwg.mxu0
  %v2757 = vld [vmem:[%s8] sm:$0x1]
  %v2759 = vlaneseq
  %v2760 = vshrl.u32 %v2759, 7
  %v2761 = vsub.s32 0, %v2760
  %v2762 = vrot.slane %v2757, %v2761
  %v2764 = vadd.f32 %v2639, %v2762
  %v2765 = vadd.f32 %v2644, %v2762
  %v2766 = vadd.f32 %v2649, %v2762
  %v2767 = vadd.f32 %v2654, %v2762
  %v2768 = vadd.f32 %v2659, %v2762
  %v2769 = vadd.f32 %v2664, %v2762
  %v2770 = vadd.f32 %v2669, %v2762
  %v2771 = vadd.f32 %v2674, %v2762
  %v2772 = vadd.f32 %v2679, %v2762
  %v2773 = vadd.f32 %v2684, %v2762
  %v2774 = vadd.f32 %v2689, %v2762
  %v2775 = vadd.f32 %v2694, %v2762
  %v2776 = vadd.f32 %v2699, %v2762
  %v2777 = vadd.f32 %v2704, %v2762
  %v2778 = vadd.f32 %v2709, %v2762
  %v2779 = vadd.f32 %v2714, %v2762
  %v2780 = vadd.f32 %v2719, %v2762
  %v2781 = vadd.f32 %v2724, %v2762
  %v2782 = vadd.f32 %v2729, %v2762
  %v2783 = vadd.f32 %v2734, %v2762
  %v2784 = vadd.f32 %v2739, %v2762
  %v2785 = vadd.f32 %v2744, %v2762
  %v2786 = vadd.f32 %v2749, %v2762
  %v2787 = vadd.f32 %v2754, %v2762
  %v2788 = vmul.f32 %v2764, %v841
  %v2789 = vmul.f32 %v2765, %v842
  %v2790 = vmul.f32 %v2766, %v843
  %v2791 = vmul.f32 %v2767, %v844
  %v2792 = vmul.f32 %v2768, %v845
  %v2793 = vmul.f32 %v2769, %v846
  %v2794 = vmul.f32 %v2770, %v847
  %v2795 = vmul.f32 %v2771, %v848
  %v2796 = vmul.f32 %v2772, %v849
  %v2797 = vmul.f32 %v2773, %v850
  %v2798 = vmul.f32 %v2774, %v851
  %v2799 = vmul.f32 %v2775, %v852
  %v2800 = vmul.f32 %v2776, %v853
  %v2801 = vmul.f32 %v2777, %v854
  %v2802 = vmul.f32 %v2778, %v855
  %v2803 = vmul.f32 %v2779, %v856
  %v2804 = vmul.f32 %v2780, %v857
  %v2805 = vmul.f32 %v2781, %v858
  %v2806 = vmul.f32 %v2782, %v859
  %v2807 = vmul.f32 %v2783, %v860
  %v2808 = vmul.f32 %v2784, %v861
  %v2809 = vmul.f32 %v2785, %v862
  %v2810 = vmul.f32 %v2786, %v863
  %v2811 = vmul.f32 %v2787, %v864
  %v2812 = vadd.f32 %v360, %v2788
  %v2813 = vadd.f32 %v361, %v2789
  %v2814 = vadd.f32 %v362, %v2790
  %v2815 = vadd.f32 %v363, %v2791
  %v2816 = vadd.f32 %v364, %v2792
  %v2817 = vadd.f32 %v365, %v2793
  %v2818 = vadd.f32 %v366, %v2794
  %v2819 = vadd.f32 %v367, %v2795
  %v2820 = vadd.f32 %v368, %v2796
  %v2821 = vadd.f32 %v369, %v2797
  %v2822 = vadd.f32 %v370, %v2798
  %v2823 = vadd.f32 %v371, %v2799
  %v2824 = vadd.f32 %v372, %v2800
  %v2825 = vadd.f32 %v373, %v2801
  %v2826 = vadd.f32 %v374, %v2802
  %v2827 = vadd.f32 %v375, %v2803
  %v2828 = vadd.f32 %v376, %v2804
  %v2829 = vadd.f32 %v377, %v2805
  %v2830 = vadd.f32 %v378, %v2806
  %v2831 = vadd.f32 %v379, %v2807
  %v2832 = vadd.f32 %v380, %v2808
  %v2833 = vadd.f32 %v381, %v2809
  %v2834 = vadd.f32 %v382, %v2810
  %v2835 = vadd.f32 %v383, %v2811
  %v2836 = vmax.f32 %v2812, 0.0
  %v2837 = vmax.f32 %v2813, 0.0
  %v2838 = vmax.f32 %v2814, 0.0
  %v2839 = vmax.f32 %v2815, 0.0
  %v2840 = vmax.f32 %v2816, 0.0
  %v2841 = vmax.f32 %v2817, 0.0
  %v2842 = vmax.f32 %v2818, 0.0
  %v2843 = vmax.f32 %v2819, 0.0
  %v2844 = vmax.f32 %v2820, 0.0
  %v2845 = vmax.f32 %v2821, 0.0
  %v2846 = vmax.f32 %v2822, 0.0
  %v2847 = vmax.f32 %v2823, 0.0
  %v2848 = vmax.f32 %v2824, 0.0
  %v2849 = vmax.f32 %v2825, 0.0
  %v2850 = vmax.f32 %v2826, 0.0
  %v2851 = vmax.f32 %v2827, 0.0
  %v2852 = vmax.f32 %v2828, 0.0
  %v2853 = vmax.f32 %v2829, 0.0
  %v2854 = vmax.f32 %v2830, 0.0
  %v2855 = vmax.f32 %v2831, 0.0
  %v2856 = vmax.f32 %v2832, 0.0
  %v2857 = vmax.f32 %v2833, 0.0
  %v2858 = vmax.f32 %v2834, 0.0
  %v2859 = vmax.f32 %v2835, 0.0
  %2860 = vmatprep.subr.mxu0 0.0
  %2861 = vmatpush1.msra.mxu0 %v2836
  %2862 = vmatprep.subr.mxu0 0.0
  %2863 = vmatpush1.msra.mxu0 %v2837
  %2864 = vmatprep.subr.mxu0 0.0
  %2865 = vmatpush1.msra.mxu0 %v2838
  %2866 = vmatprep.subr.mxu0 0.0
  %2867 = vmatpush1.msra.mxu0 %v2839
  %2868 = vmatprep.subr.mxu0 0.0
  %2869 = vmatpush1.msra.mxu0 %v2840
  %2870 = vmatprep.subr.mxu0 0.0
  %2871 = vmatpush1.msra.mxu0 %v2841
  %2872 = vmatprep.subr.mxu0 0.0
  %2873 = vmatpush1.msra.mxu0 %v2842
  %2874 = vmatprep.subr.mxu0 0.0
  %2875 = vmatpush1.msra.mxu0 %v2843
  %2876 = vmatprep.subr.mxu0 0.0
  %2877 = vmatpush1.msra.mxu0 %v2844
  %2878 = vmatprep.subr.mxu0 0.0
  %2879 = vmatpush1.msra.mxu0 %v2845
  %2880 = vmatprep.subr.mxu0 0.0
  %2881 = vmatpush1.msra.mxu0 %v2846
  %2882 = vmatprep.subr.mxu0 0.0
  %2883 = vmatpush1.msra.mxu0 %v2847
  %2884 = vmatprep.subr.mxu0 0.0
  %2885 = vmatpush1.msra.mxu0 %v2848
  %2886 = vmatprep.subr.mxu0 0.0
  %2887 = vmatpush1.msra.mxu0 %v2849
  %2888 = vmatprep.subr.mxu0 0.0
  %2889 = vmatpush1.msra.mxu0 %v2850
  %2890 = vmatprep.subr.mxu0 0.0
  %2891 = vmatpush1.msra.mxu0 %v2851
  %2892 = vmatprep.subr.mxu0 0.0
  %2893 = vmatpush1.msra.mxu0 %v2852
  %2894 = vmatprep.subr.mxu0 0.0
  %2895 = vmatpush1.msra.mxu0 %v2853
  %2896 = vmatprep.subr.mxu0 0.0
  %2897 = vmatpush1.msra.mxu0 %v2854
  %2898 = vmatprep.subr.mxu0 0.0
  %2899 = vmatpush1.msra.mxu0 %v2855
  %2900 = vmatprep.subr.mxu0 0.0
  %2901 = vmatpush1.msra.mxu0 %v2856
  %2902 = vmatprep.subr.mxu0 0.0
  %2903 = vmatpush1.msra.mxu0 %v2857
  %2904 = vmatprep.subr.mxu0 0.0
  %2905 = vmatpush1.msra.mxu0 %v2858
  %2906 = vmatprep.subr.mxu0 0.0
  %2907 = vmatpush1.msra.mxu0 %v2859
  %2908 = vmatprep.subr.mxu0 0.0
  %2909 = vmatpush1.msra.mxu0 0.0
  %2910 = vmatprep.subr.mxu0 0.0
  %2911 = vmatpush1.msra.mxu0 0.0
  %2912 = vmatprep.subr.mxu0 0.0
  %2913 = vmatpush1.msra.mxu0 0.0
  %2914 = vmatprep.subr.mxu0 0.0
  %2915 = vmatpush1.msra.mxu0 0.0
  %2916 = vmatprep.subr.mxu0 0.0
  %2917 = vmatpush1.msra.mxu0 0.0
  %2918 = vmatprep.subr.mxu0 0.0
  %2919 = vmatpush1.msra.mxu0 0.0
  %2920 = vmatprep.subr.mxu0 0.0
  %2921 = vmatpush1.msra.mxu0 0.0
  %2922 = vmatprep.subr.mxu0 0.0
  %2923 = vmatpush1.msra.mxu0 0.0
  %2924 = vmatprep.mubr.f32.mxu0 %v1971
  %2925 = vmatmul.mubr.f32.gmra.mrb[0].mxu0 %v1921
  %v2926 = vpop.f32.mrb[0].mxu0
  %v2927 = vadd.f32 0.0, %v2926
  %v2928 = vpop.f32.mrb[0].mxu0
  %2929 = vmatprep.mubr.f32.mxu0 %v1974
  %2930 = vmatmul.mubr.f32.gmra.mrb[0].mxu0 %v1923
  %v2931 = vpop.f32.mrb[0].mxu0
  %v2932 = vadd.f32 0.0, %v2931
  %v2933 = vpop.f32.mrb[0].mxu0
  %2934 = vmatprep.mubr.f32.mxu0 %v1977
  %2935 = vmatmul.mubr.f32.gmra.mrb[0].mxu0 %v1925
  %v2936 = vpop.f32.mrb[0].mxu0
  %v2937 = vadd.f32 0.0, %v2936
  %v2938 = vpop.f32.mrb[0].mxu0
  %2939 = vmatprep.mubr.f32.mxu0 %v1980
  %2940 = vmatmul.mubr.f32.gmra.mrb[0].mxu0 %v1927
  %v2941 = vpop.f32.mrb[0].mxu0
  %v2942 = vadd.f32 0.0, %v2941
  %v2943 = vpop.f32.mrb[0].mxu0
  %2944 = vmatprep.mubr.f32.mxu0 %v1983
  %2945 = vmatmul.mubr.f32.gmra.mrb[0].mxu0 %v1929
  %v2946 = vpop.f32.mrb[0].mxu0
  %v2947 = vadd.f32 0.0, %v2946
  %v2948 = vpop.f32.mrb[0].mxu0
  %2949 = vmatprep.mubr.f32.mxu0 %v1986
  %2950 = vmatmul.mubr.f32.gmra.mrb[0].mxu0 %v1931
  %v2951 = vpop.f32.mrb[0].mxu0
  %v2952 = vadd.f32 0.0, %v2951
  %v2953 = vpop.f32.mrb[0].mxu0
  %2954 = vmatprep.mubr.f32.mxu0 %v1989
  %2955 = vmatmul.mubr.f32.gmra.mrb[0].mxu0 %v1933
  %v2956 = vpop.f32.mrb[0].mxu0
  %v2957 = vadd.f32 0.0, %v2956
  %v2958 = vpop.f32.mrb[0].mxu0
  %2959 = vmatprep.mubr.f32.mxu0 %v1992
  %2960 = vmatmul.mubr.f32.gmra.mrb[0].mxu0 %v1935
  %v2961 = vpop.f32.mrb[0].mxu0
  %v2962 = vadd.f32 0.0, %v2961
  %v2963 = vpop.f32.mrb[0].mxu0
  %2964 = vmatprep.mubr.f32.mxu0 %v1995
  %2965 = vmatmul.mubr.f32.gmra.mrb[0].mxu0 %v1937
  %v2966 = vpop.f32.mrb[0].mxu0
  %v2967 = vadd.f32 0.0, %v2966
  %v2968 = vpop.f32.mrb[0].mxu0
  %2969 = vmatprep.mubr.f32.mxu0 %v1998
  %2970 = vmatmul.mubr.f32.gmra.mrb[0].mxu0 %v1939
  %v2971 = vpop.f32.mrb[0].mxu0
  %v2972 = vadd.f32 0.0, %v2971
  %v2973 = vpop.f32.mrb[0].mxu0
  %2974 = vmatprep.mubr.f32.mxu0 %v2001
  %2975 = vmatmul.mubr.f32.gmra.mrb[0].mxu0 %v1941
  %v2976 = vpop.f32.mrb[0].mxu0
  %v2977 = vadd.f32 0.0, %v2976
  %v2978 = vpop.f32.mrb[0].mxu0
  %2979 = vmatprep.mubr.f32.mxu0 %v2004
  %2980 = vmatmul.mubr.f32.gmra.mrb[0].mxu0 %v1943
  %v2981 = vpop.f32.mrb[0].mxu0
  %v2982 = vadd.f32 0.0, %v2981
  %v2983 = vpop.f32.mrb[0].mxu0
  %2984 = vmatprep.mubr.f32.mxu0 %v2007
  %2985 = vmatmul.mubr.f32.gmra.mrb[0].mxu0 %v1945
  %v2986 = vpop.f32.mrb[0].mxu0
  %v2987 = vadd.f32 0.0, %v2986
  %v2988 = vpop.f32.mrb[0].mxu0
  %2989 = vmatprep.mubr.f32.mxu0 %v2010
  %2990 = vmatmul.mubr.f32.gmra.mrb[0].mxu0 %v1947
  %v2991 = vpop.f32.mrb[0].mxu0
  %v2992 = vadd.f32 0.0, %v2991
  %v2993 = vpop.f32.mrb[0].mxu0
  %2994 = vmatprep.mubr.f32.mxu0 %v2013
  %2995 = vmatmul.mubr.f32.gmra.mrb[0].mxu0 %v1949
  %v2996 = vpop.f32.mrb[0].mxu0
  %v2997 = vadd.f32 0.0, %v2996
  %v2998 = vpop.f32.mrb[0].mxu0
  %2999 = vmatprep.mubr.f32.mxu0 %v2016
  %3000 = vmatmul.mubr.f32.gmra.mrb[0].mxu0 %v1951
  %v3001 = vpop.f32.mrb[0].mxu0
  %v3002 = vadd.f32 0.0, %v3001
  %v3003 = vpop.f32.mrb[0].mxu0
  %3004 = vmatprep.mubr.f32.mxu0 %v2019
  %3005 = vmatmul.mubr.f32.gmra.mrb[0].mxu0 %v1953
  %v3006 = vpop.f32.mrb[0].mxu0
  %v3007 = vadd.f32 0.0, %v3006
  %v3008 = vpop.f32.mrb[0].mxu0
  %3009 = vmatprep.mubr.f32.mxu0 %v2022
  %3010 = vmatmul.mubr.f32.gmra.mrb[0].mxu0 %v1955
  %v3011 = vpop.f32.mrb[0].mxu0
  %v3012 = vadd.f32 0.0, %v3011
  %v3013 = vpop.f32.mrb[0].mxu0
  %3014 = vmatprep.mubr.f32.mxu0 %v2025
  %3015 = vmatmul.mubr.f32.gmra.mrb[0].mxu0 %v1957
  %v3016 = vpop.f32.mrb[0].mxu0
  %v3017 = vadd.f32 0.0, %v3016
  %v3018 = vpop.f32.mrb[0].mxu0
  %3019 = vmatprep.mubr.f32.mxu0 %v2028
  %3020 = vmatmul.mubr.f32.gmra.mrb[0].mxu0 %v1959
  %v3021 = vpop.f32.mrb[0].mxu0
  %v3022 = vadd.f32 0.0, %v3021
  %v3023 = vpop.f32.mrb[0].mxu0
  %3024 = vmatprep.mubr.f32.mxu0 %v2031
  %3025 = vmatmul.mubr.f32.gmra.mrb[0].mxu0 %v1961
  %v3026 = vpop.f32.mrb[0].mxu0
  %v3027 = vadd.f32 0.0, %v3026
  %v3028 = vpop.f32.mrb[0].mxu0
  %3029 = vmatprep.mubr.f32.mxu0 %v2034
  %3030 = vmatmul.mubr.f32.gmra.mrb[0].mxu0 %v1963
  %v3031 = vpop.f32.mrb[0].mxu0
  %v3032 = vadd.f32 0.0, %v3031
  %v3033 = vpop.f32.mrb[0].mxu0
  %3034 = vmatprep.mubr.f32.mxu0 %v2037
  %3035 = vmatmul.mubr.f32.gmra.mrb[0].mxu0 %v1965
  %v3036 = vpop.f32.mrb[0].mxu0
  %v3037 = vadd.f32 0.0, %v3036
  %v3038 = vpop.f32.mrb[0].mxu0
  %3039 = vmatprep.mubr.f32.mxu0 %v2040
  %3040 = vmatmul.mubr.f32.gmra.mrb[0].mxu0 %v1967
  %v3041 = vpop.f32.mrb[0].mxu0
  %v3042 = vadd.f32 0.0, %v3041
  %v3043 = vpop.f32.mrb[0].mxu0
  %3044 = vdwg.mxu0
  %s3045 = scalar_lea.vmem %s7, 128
  %v3046 = vld [vmem:[%s3045] sm:$0xff]
  %v3047 = vld [vmem:[%s3045 + $0x8] sm:$0xff]
  %v3048 = vld [vmem:[%s3045 + $0x10] sm:$0xff]
  %v3049 = vld [vmem:[%s3045 + $0x18] sm:$0xff]
  %v3050 = vld [vmem:[%s3045 + $0x20] sm:$0xff]
  %v3051 = vld [vmem:[%s3045 + $0x28] sm:$0xff]
  %v3052 = vld [vmem:[%s3045 + $0x30] sm:$0xff]
  %v3053 = vld [vmem:[%s3045 + $0x38] sm:$0xff]
  %v3054 = vld [vmem:[%s3045 + $0x40] sm:$0xff]
  %v3055 = vld [vmem:[%s3045 + $0x48] sm:$0xff]
  %v3056 = vld [vmem:[%s3045 + $0x50] sm:$0xff]
  %v3057 = vld [vmem:[%s3045 + $0x58] sm:$0xff]
  %v3058 = vld [vmem:[%s3045 + $0x60] sm:$0xff]
  %v3059 = vld [vmem:[%s3045 + $0x68] sm:$0xff]
  %v3060 = vld [vmem:[%s3045 + $0x70] sm:$0xff]
  %v3061 = vld [vmem:[%s3045 + $0x78] sm:$0xff]
  %v3063 = vsel %vm1969, %v2927, 0
  %v3066 = vsel %vm1969, %v2932, 0
  %v3069 = vsel %vm1969, %v2937, 0
  %v3072 = vsel %vm1969, %v2942, 0
  %v3075 = vsel %vm1969, %v2947, 0
  %v3078 = vsel %vm1969, %v2952, 0
  %v3081 = vsel %vm1969, %v2957, 0
  %v3084 = vsel %vm1969, %v2962, 0
  %v3087 = vsel %vm1969, %v2967, 0
  %v3090 = vsel %vm1969, %v2972, 0
  %v3093 = vsel %vm1969, %v2977, 0
  %v3096 = vsel %vm1969, %v2982, 0
  %v3099 = vsel %vm1969, %v2987, 0
  %v3102 = vsel %vm1969, %v2992, 0
  %v3105 = vsel %vm1969, %v2997, 0
  %v3108 = vsel %vm1969, %v3002, 0
  %v3111 = vsel %vm1969, %v3007, 0
  %v3114 = vsel %vm1969, %v3012, 0
  %v3117 = vsel %vm1969, %v3017, 0
  %v3120 = vsel %vm1969, %v3022, 0
  %v3123 = vsel %vm1969, %v3027, 0
  %v3126 = vsel %vm1969, %v3032, 0
  %v3129 = vsel %vm1969, %v3037, 0
  %v3132 = vsel %vm1969, %v3042, 0
  %3134 = vmatprep.subr.mxu0 0.0
  %3135 = vmatpush1.msra.mxu0 %v3054
  %3136 = vmatprep.subr.mxu0 0.0
  %3137 = vmatpush1.msra.mxu0 %v3055
  %3138 = vmatprep.subr.mxu0 0.0
  %3139 = vmatpush1.msra.mxu0 %v3056
  %3140 = vmatprep.subr.mxu0 0.0
  %3141 = vmatpush1.msra.mxu0 %v3057
  %3142 = vmatprep.subr.mxu0 0.0
  %3143 = vmatpush1.msra.mxu0 %v3058
  %3144 = vmatprep.subr.mxu0 0.0
  %3145 = vmatpush1.msra.mxu0 %v3059
  %3146 = vmatprep.subr.mxu0 0.0
  %3147 = vmatpush1.msra.mxu0 %v3060
  %3148 = vmatprep.subr.mxu0 0.0
  %3149 = vmatpush1.msra.mxu0 %v3061
  %3150 = vmatprep.subr.mxu0 0.0
  %3151 = vmatpush1.msra.mxu0 0.0
  %3152 = vmatprep.subr.mxu0 0.0
  %3153 = vmatpush1.msra.mxu0 0.0
  %3154 = vmatprep.subr.mxu0 0.0
  %3155 = vmatpush1.msra.mxu0 0.0
  %3156 = vmatprep.subr.mxu0 0.0
  %3157 = vmatpush1.msra.mxu0 0.0
  %3158 = vmatprep.subr.mxu0 0.0
  %3159 = vmatpush1.msra.mxu0 0.0
  %3160 = vmatprep.subr.mxu0 0.0
  %3161 = vmatpush1.msra.mxu0 0.0
  %3162 = vmatprep.subr.mxu0 0.0
  %3163 = vmatpush1.msra.mxu0 0.0
  %3164 = vmatprep.subr.mxu0 0.0
  %3165 = vmatpush1.msra.mxu0 0.0
  %3166 = vmatprep.subr.mxu0 0.0
  %3167 = vmatpush1.msra.mxu0 0.0
  %3168 = vmatprep.subr.mxu0 0.0
  %3169 = vmatpush1.msra.mxu0 0.0
  %3170 = vmatprep.subr.mxu0 0.0
  %3171 = vmatpush1.msra.mxu0 0.0
  %3172 = vmatprep.subr.mxu0 0.0
  %3173 = vmatpush1.msra.mxu0 0.0
  %3174 = vmatprep.subr.mxu0 0.0
  %3175 = vmatpush1.msra.mxu0 0.0
  %3176 = vmatprep.subr.mxu0 0.0
  %3177 = vmatpush1.msra.mxu0 0.0
  %3178 = vmatprep.subr.mxu0 0.0
  %3179 = vmatpush1.msra.mxu0 0.0
  %3180 = vmatprep.subr.mxu0 0.0
  %3181 = vmatpush1.msra.mxu0 0.0
  %3182 = vmatprep.subr.mxu0 0.0
  %3183 = vmatpush1.msra.mxu0 0.0
  %3184 = vmatprep.subr.mxu0 0.0
  %3185 = vmatpush1.msra.mxu0 0.0
  %3186 = vmatprep.subr.mxu0 0.0
  %3187 = vmatpush1.msra.mxu0 0.0
  %3188 = vmatprep.subr.mxu0 0.0
  %3189 = vmatpush1.msra.mxu0 0.0
  %3190 = vmatprep.subr.mxu0 0.0
  %3191 = vmatpush1.msra.mxu0 0.0
  %3192 = vmatprep.subr.mxu0 0.0
  %3193 = vmatpush1.msra.mxu0 0.0
  %3194 = vmatprep.subr.mxu0 0.0
  %3195 = vmatpush1.msra.mxu0 0.0
  %3196 = vmatprep.subr.mxu0 0.0
  %3197 = vmatpush1.msra.mxu0 0.0
  %3198 = vmatprep.mubr.f32.mxu0 0.0
  %3199 = vmatmul.mubr.f32.gmra.mrb[0].mxu0 %v3063
  %v3200 = vpop.f32.mrb[0].mxu0
  %v3201 = vadd.f32 0.0, %v3200
  %v3202 = vpop.f32.mrb[0].mxu0
  %3203 = vmatprep.mubr.f32.mxu0 0.0
  %3204 = vmatmul.mubr.f32.gmra.mrb[0].mxu0 %v3066
  %v3205 = vpop.f32.mrb[0].mxu0
  %v3206 = vadd.f32 0.0, %v3205
  %v3207 = vpop.f32.mrb[0].mxu0
  %3208 = vmatprep.mubr.f32.mxu0 0.0
  %3209 = vmatmul.mubr.f32.gmra.mrb[0].mxu0 %v3069
  %v3210 = vpop.f32.mrb[0].mxu0
  %v3211 = vadd.f32 0.0, %v3210
  %v3212 = vpop.f32.mrb[0].mxu0
  %3213 = vmatprep.mubr.f32.mxu0 0.0
  %3214 = vmatmul.mubr.f32.gmra.mrb[0].mxu0 %v3072
  %v3215 = vpop.f32.mrb[0].mxu0
  %v3216 = vadd.f32 0.0, %v3215
  %v3217 = vpop.f32.mrb[0].mxu0
  %3218 = vmatprep.mubr.f32.mxu0 0.0
  %3219 = vmatmul.mubr.f32.gmra.mrb[0].mxu0 %v3075
  %v3220 = vpop.f32.mrb[0].mxu0
  %v3221 = vadd.f32 0.0, %v3220
  %v3222 = vpop.f32.mrb[0].mxu0
  %3223 = vmatprep.mubr.f32.mxu0 0.0
  %3224 = vmatmul.mubr.f32.gmra.mrb[0].mxu0 %v3078
  %v3225 = vpop.f32.mrb[0].mxu0
  %v3226 = vadd.f32 0.0, %v3225
  %v3227 = vpop.f32.mrb[0].mxu0
  %3228 = vmatprep.mubr.f32.mxu0 0.0
  %3229 = vmatmul.mubr.f32.gmra.mrb[0].mxu0 %v3081
  %v3230 = vpop.f32.mrb[0].mxu0
  %v3231 = vadd.f32 0.0, %v3230
  %v3232 = vpop.f32.mrb[0].mxu0
  %3233 = vmatprep.mubr.f32.mxu0 0.0
  %3234 = vmatmul.mubr.f32.gmra.mrb[0].mxu0 %v3084
  %v3235 = vpop.f32.mrb[0].mxu0
  %v3236 = vadd.f32 0.0, %v3235
  %v3237 = vpop.f32.mrb[0].mxu0
  %3238 = vmatprep.mubr.f32.mxu0 0.0
  %3239 = vmatmul.mubr.f32.gmra.mrb[0].mxu0 %v3087
  %v3240 = vpop.f32.mrb[0].mxu0
  %v3241 = vadd.f32 0.0, %v3240
  %v3242 = vpop.f32.mrb[0].mxu0
  %3243 = vmatprep.mubr.f32.mxu0 0.0
  %3244 = vmatmul.mubr.f32.gmra.mrb[0].mxu0 %v3090
  %v3245 = vpop.f32.mrb[0].mxu0
  %v3246 = vadd.f32 0.0, %v3245
  %v3247 = vpop.f32.mrb[0].mxu0
  %3248 = vmatprep.mubr.f32.mxu0 0.0
  %3249 = vmatmul.mubr.f32.gmra.mrb[0].mxu0 %v3093
  %v3250 = vpop.f32.mrb[0].mxu0
  %v3251 = vadd.f32 0.0, %v3250
  %v3252 = vpop.f32.mrb[0].mxu0
  %3253 = vmatprep.mubr.f32.mxu0 0.0
  %3254 = vmatmul.mubr.f32.gmra.mrb[0].mxu0 %v3096
  %v3255 = vpop.f32.mrb[0].mxu0
  %v3256 = vadd.f32 0.0, %v3255
  %v3257 = vpop.f32.mrb[0].mxu0
  %3258 = vmatprep.mubr.f32.mxu0 0.0
  %3259 = vmatmul.mubr.f32.gmra.mrb[0].mxu0 %v3099
  %v3260 = vpop.f32.mrb[0].mxu0
  %v3261 = vadd.f32 0.0, %v3260
  %v3262 = vpop.f32.mrb[0].mxu0
  %3263 = vmatprep.mubr.f32.mxu0 0.0
  %3264 = vmatmul.mubr.f32.gmra.mrb[0].mxu0 %v3102
  %v3265 = vpop.f32.mrb[0].mxu0
  %v3266 = vadd.f32 0.0, %v3265
  %v3267 = vpop.f32.mrb[0].mxu0
  %3268 = vmatprep.mubr.f32.mxu0 0.0
  %3269 = vmatmul.mubr.f32.gmra.mrb[0].mxu0 %v3105
  %v3270 = vpop.f32.mrb[0].mxu0
  %v3271 = vadd.f32 0.0, %v3270
  %v3272 = vpop.f32.mrb[0].mxu0
  %3273 = vmatprep.mubr.f32.mxu0 0.0
  %3274 = vmatmul.mubr.f32.gmra.mrb[0].mxu0 %v3108
  %v3275 = vpop.f32.mrb[0].mxu0
  %v3276 = vadd.f32 0.0, %v3275
  %v3277 = vpop.f32.mrb[0].mxu0
  %3278 = vmatprep.mubr.f32.mxu0 0.0
  %3279 = vmatmul.mubr.f32.gmra.mrb[0].mxu0 %v3111
  %v3280 = vpop.f32.mrb[0].mxu0
  %v3281 = vadd.f32 0.0, %v3280
  %v3282 = vpop.f32.mrb[0].mxu0
  %3283 = vmatprep.mubr.f32.mxu0 0.0
  %3284 = vmatmul.mubr.f32.gmra.mrb[0].mxu0 %v3114
  %v3285 = vpop.f32.mrb[0].mxu0
  %v3286 = vadd.f32 0.0, %v3285
  %v3287 = vpop.f32.mrb[0].mxu0
  %3288 = vmatprep.mubr.f32.mxu0 0.0
  %3289 = vmatmul.mubr.f32.gmra.mrb[0].mxu0 %v3117
  %v3290 = vpop.f32.mrb[0].mxu0
  %v3291 = vadd.f32 0.0, %v3290
  %v3292 = vpop.f32.mrb[0].mxu0
  %3293 = vmatprep.mubr.f32.mxu0 0.0
  %3294 = vmatmul.mubr.f32.gmra.mrb[0].mxu0 %v3120
  %v3295 = vpop.f32.mrb[0].mxu0
  %v3296 = vadd.f32 0.0, %v3295
  %v3297 = vpop.f32.mrb[0].mxu0
  %3298 = vmatprep.mubr.f32.mxu0 0.0
  %3299 = vmatmul.mubr.f32.gmra.mrb[0].mxu0 %v3123
  %v3300 = vpop.f32.mrb[0].mxu0
  %v3301 = vadd.f32 0.0, %v3300
  %v3302 = vpop.f32.mrb[0].mxu0
  %3303 = vmatprep.mubr.f32.mxu0 0.0
  %3304 = vmatmul.mubr.f32.gmra.mrb[0].mxu0 %v3126
  %v3305 = vpop.f32.mrb[0].mxu0
  %v3306 = vadd.f32 0.0, %v3305
  %v3307 = vpop.f32.mrb[0].mxu0
  %3308 = vmatprep.mubr.f32.mxu0 0.0
  %3309 = vmatmul.mubr.f32.gmra.mrb[0].mxu0 %v3129
  %v3310 = vpop.f32.mrb[0].mxu0
  %v3311 = vadd.f32 0.0, %v3310
  %v3312 = vpop.f32.mrb[0].mxu0
  %3313 = vmatprep.mubr.f32.mxu0 0.0
  %3314 = vmatmul.mubr.f32.gmra.mrb[0].mxu0 %v3132
  %v3315 = vpop.f32.mrb[0].mxu0
  %v3316 = vadd.f32 0.0, %v3315
  %v3317 = vpop.f32.mrb[0].mxu0
  %3318 = vdwg.mxu0
  %v3320 = vsel %vm1969, %v2836, 0
  %v3323 = vsel %vm1969, %v2837, 0
  %v3326 = vsel %vm1969, %v2838, 0
  %v3329 = vsel %vm1969, %v2839, 0
  %v3332 = vsel %vm1969, %v2840, 0
  %v3335 = vsel %vm1969, %v2841, 0
  %v3338 = vsel %vm1969, %v2842, 0
  %v3341 = vsel %vm1969, %v2843, 0
  %v3344 = vsel %vm1969, %v2844, 0
  %v3347 = vsel %vm1969, %v2845, 0
  %v3350 = vsel %vm1969, %v2846, 0
  %v3353 = vsel %vm1969, %v2847, 0
  %v3356 = vsel %vm1969, %v2848, 0
  %v3359 = vsel %vm1969, %v2849, 0
  %v3362 = vsel %vm1969, %v2850, 0
  %v3365 = vsel %vm1969, %v2851, 0
  %v3368 = vsel %vm1969, %v2852, 0
  %v3371 = vsel %vm1969, %v2853, 0
  %v3374 = vsel %vm1969, %v2854, 0
  %v3377 = vsel %vm1969, %v2855, 0
  %v3380 = vsel %vm1969, %v2856, 0
  %v3383 = vsel %vm1969, %v2857, 0
  %v3386 = vsel %vm1969, %v2858, 0
  %v3389 = vsel %vm1969, %v2859, 0
  %3391 = vmatprep.subr.mxu0 0.0
  %3392 = vmatpush1.msra.mxu0 %v3046
  %3393 = vmatprep.subr.mxu0 0.0
  %3394 = vmatpush1.msra.mxu0 %v3047
  %3395 = vmatprep.subr.mxu0 0.0
  %3396 = vmatpush1.msra.mxu0 %v3048
  %3397 = vmatprep.subr.mxu0 0.0
  %3398 = vmatpush1.msra.mxu0 %v3049
  %3399 = vmatprep.subr.mxu0 0.0
  %3400 = vmatpush1.msra.mxu0 %v3050
  %3401 = vmatprep.subr.mxu0 0.0
  %3402 = vmatpush1.msra.mxu0 %v3051
  %3403 = vmatprep.subr.mxu0 0.0
  %3404 = vmatpush1.msra.mxu0 %v3052
  %3405 = vmatprep.subr.mxu0 0.0
  %3406 = vmatpush1.msra.mxu0 %v3053
  %3407 = vmatprep.subr.mxu0 0.0
  %3408 = vmatpush1.msra.mxu0 0.0
  %3409 = vmatprep.subr.mxu0 0.0
  %3410 = vmatpush1.msra.mxu0 0.0
  %3411 = vmatprep.subr.mxu0 0.0
  %3412 = vmatpush1.msra.mxu0 0.0
  %3413 = vmatprep.subr.mxu0 0.0
  %3414 = vmatpush1.msra.mxu0 0.0
  %3415 = vmatprep.subr.mxu0 0.0
  %3416 = vmatpush1.msra.mxu0 0.0
  %3417 = vmatprep.subr.mxu0 0.0
  %3418 = vmatpush1.msra.mxu0 0.0
  %3419 = vmatprep.subr.mxu0 0.0
  %3420 = vmatpush1.msra.mxu0 0.0
  %3421 = vmatprep.subr.mxu0 0.0
  %3422 = vmatpush1.msra.mxu0 0.0
  %3423 = vmatprep.subr.mxu0 0.0
  %3424 = vmatpush1.msra.mxu0 0.0
  %3425 = vmatprep.subr.mxu0 0.0
  %3426 = vmatpush1.msra.mxu0 0.0
  %3427 = vmatprep.subr.mxu0 0.0
  %3428 = vmatpush1.msra.mxu0 0.0
  %3429 = vmatprep.subr.mxu0 0.0
  %3430 = vmatpush1.msra.mxu0 0.0
  %3431 = vmatprep.subr.mxu0 0.0
  %3432 = vmatpush1.msra.mxu0 0.0
  %3433 = vmatprep.subr.mxu0 0.0
  %3434 = vmatpush1.msra.mxu0 0.0
  %3435 = vmatprep.subr.mxu0 0.0
  %3436 = vmatpush1.msra.mxu0 0.0
  %3437 = vmatprep.subr.mxu0 0.0
  %3438 = vmatpush1.msra.mxu0 0.0
  %3439 = vmatprep.subr.mxu0 0.0
  %3440 = vmatpush1.msra.mxu0 0.0
  %3441 = vmatprep.subr.mxu0 0.0
  %3442 = vmatpush1.msra.mxu0 0.0
  %3443 = vmatprep.subr.mxu0 0.0
  %3444 = vmatpush1.msra.mxu0 0.0
  %3445 = vmatprep.subr.mxu0 0.0
  %3446 = vmatpush1.msra.mxu0 0.0
  %3447 = vmatprep.subr.mxu0 0.0
  %3448 = vmatpush1.msra.mxu0 0.0
  %3449 = vmatprep.subr.mxu0 0.0
  %3450 = vmatpush1.msra.mxu0 0.0
  %3451 = vmatprep.subr.mxu0 0.0
  %3452 = vmatpush1.msra.mxu0 0.0
  %3453 = vmatprep.subr.mxu0 0.0
  %3454 = vmatpush1.msra.mxu0 0.0
  %3455 = vmatprep.mubr.f32.mxu0 0.0
  %3456 = vmatmul.mubr.f32.gmra.mrb[0].mxu0 %v3320
  %v3457 = vpop.f32.mrb[0].mxu0
  %v3458 = vadd.f32 %v3201, %v3457
  %v3459 = vpop.f32.mrb[0].mxu0
  %3460 = vmatprep.mubr.f32.mxu0 0.0
  %3461 = vmatmul.mubr.f32.gmra.mrb[0].mxu0 %v3323
  %v3462 = vpop.f32.mrb[0].mxu0
  %v3463 = vadd.f32 %v3206, %v3462
  %v3464 = vpop.f32.mrb[0].mxu0
  %3465 = vmatprep.mubr.f32.mxu0 0.0
  %3466 = vmatmul.mubr.f32.gmra.mrb[0].mxu0 %v3326
  %v3467 = vpop.f32.mrb[0].mxu0
  %v3468 = vadd.f32 %v3211, %v3467
  %v3469 = vpop.f32.mrb[0].mxu0
  %3470 = vmatprep.mubr.f32.mxu0 0.0
  %3471 = vmatmul.mubr.f32.gmra.mrb[0].mxu0 %v3329
  %v3472 = vpop.f32.mrb[0].mxu0
  %v3473 = vadd.f32 %v3216, %v3472
  %v3474 = vpop.f32.mrb[0].mxu0
  %3475 = vmatprep.mubr.f32.mxu0 0.0
  %3476 = vmatmul.mubr.f32.gmra.mrb[0].mxu0 %v3332
  %v3477 = vpop.f32.mrb[0].mxu0
  %v3478 = vadd.f32 %v3221, %v3477
  %v3479 = vpop.f32.mrb[0].mxu0
  %3480 = vmatprep.mubr.f32.mxu0 0.0
  %3481 = vmatmul.mubr.f32.gmra.mrb[0].mxu0 %v3335
  %v3482 = vpop.f32.mrb[0].mxu0
  %v3483 = vadd.f32 %v3226, %v3482
  %v3484 = vpop.f32.mrb[0].mxu0
  %3485 = vmatprep.mubr.f32.mxu0 0.0
  %3486 = vmatmul.mubr.f32.gmra.mrb[0].mxu0 %v3338
  %v3487 = vpop.f32.mrb[0].mxu0
  %v3488 = vadd.f32 %v3231, %v3487
  %v3489 = vpop.f32.mrb[0].mxu0
  %3490 = vmatprep.mubr.f32.mxu0 0.0
  %3491 = vmatmul.mubr.f32.gmra.mrb[0].mxu0 %v3341
  %v3492 = vpop.f32.mrb[0].mxu0
  %v3493 = vadd.f32 %v3236, %v3492
  %v3494 = vpop.f32.mrb[0].mxu0
  %3495 = vmatprep.mubr.f32.mxu0 0.0
  %3496 = vmatmul.mubr.f32.gmra.mrb[0].mxu0 %v3344
  %v3497 = vpop.f32.mrb[0].mxu0
  %v3498 = vadd.f32 %v3241, %v3497
  %v3499 = vpop.f32.mrb[0].mxu0
  %3500 = vmatprep.mubr.f32.mxu0 0.0
  %3501 = vmatmul.mubr.f32.gmra.mrb[0].mxu0 %v3347
  %v3502 = vpop.f32.mrb[0].mxu0
  %v3503 = vadd.f32 %v3246, %v3502
  %v3504 = vpop.f32.mrb[0].mxu0
  %3505 = vmatprep.mubr.f32.mxu0 0.0
  %3506 = vmatmul.mubr.f32.gmra.mrb[0].mxu0 %v3350
  %v3507 = vpop.f32.mrb[0].mxu0
  %v3508 = vadd.f32 %v3251, %v3507
  %v3509 = vpop.f32.mrb[0].mxu0
  %3510 = vmatprep.mubr.f32.mxu0 0.0
  %3511 = vmatmul.mubr.f32.gmra.mrb[0].mxu0 %v3353
  %v3512 = vpop.f32.mrb[0].mxu0
  %v3513 = vadd.f32 %v3256, %v3512
  %v3514 = vpop.f32.mrb[0].mxu0
  %3515 = vmatprep.mubr.f32.mxu0 0.0
  %3516 = vmatmul.mubr.f32.gmra.mrb[0].mxu0 %v3356
  %v3517 = vpop.f32.mrb[0].mxu0
  %v3518 = vadd.f32 %v3261, %v3517
  %v3519 = vpop.f32.mrb[0].mxu0
  %3520 = vmatprep.mubr.f32.mxu0 0.0
  %3521 = vmatmul.mubr.f32.gmra.mrb[0].mxu0 %v3359
  %v3522 = vpop.f32.mrb[0].mxu0
  %v3523 = vadd.f32 %v3266, %v3522
  %v3524 = vpop.f32.mrb[0].mxu0
  %3525 = vmatprep.mubr.f32.mxu0 0.0
  %3526 = vmatmul.mubr.f32.gmra.mrb[0].mxu0 %v3362
  %v3527 = vpop.f32.mrb[0].mxu0
  %v3528 = vadd.f32 %v3271, %v3527
  %v3529 = vpop.f32.mrb[0].mxu0
  %3530 = vmatprep.mubr.f32.mxu0 0.0
  %3531 = vmatmul.mubr.f32.gmra.mrb[0].mxu0 %v3365
  %v3532 = vpop.f32.mrb[0].mxu0
  %v3533 = vadd.f32 %v3276, %v3532
  %v3534 = vpop.f32.mrb[0].mxu0
  %3535 = vmatprep.mubr.f32.mxu0 0.0
  %3536 = vmatmul.mubr.f32.gmra.mrb[0].mxu0 %v3368
  %v3537 = vpop.f32.mrb[0].mxu0
  %v3538 = vadd.f32 %v3281, %v3537
  %v3539 = vpop.f32.mrb[0].mxu0
  %3540 = vmatprep.mubr.f32.mxu0 0.0
  %3541 = vmatmul.mubr.f32.gmra.mrb[0].mxu0 %v3371
  %v3542 = vpop.f32.mrb[0].mxu0
  %v3543 = vadd.f32 %v3286, %v3542
  %v3544 = vpop.f32.mrb[0].mxu0
  %3545 = vmatprep.mubr.f32.mxu0 0.0
  %3546 = vmatmul.mubr.f32.gmra.mrb[0].mxu0 %v3374
  %v3547 = vpop.f32.mrb[0].mxu0
  %v3548 = vadd.f32 %v3291, %v3547
  %v3549 = vpop.f32.mrb[0].mxu0
  %3550 = vmatprep.mubr.f32.mxu0 0.0
  %3551 = vmatmul.mubr.f32.gmra.mrb[0].mxu0 %v3377
  %v3552 = vpop.f32.mrb[0].mxu0
  %v3553 = vadd.f32 %v3296, %v3552
  %v3554 = vpop.f32.mrb[0].mxu0
  %3555 = vmatprep.mubr.f32.mxu0 0.0
  %3556 = vmatmul.mubr.f32.gmra.mrb[0].mxu0 %v3380
  %v3557 = vpop.f32.mrb[0].mxu0
  %v3558 = vadd.f32 %v3301, %v3557
  %v3559 = vpop.f32.mrb[0].mxu0
  %3560 = vmatprep.mubr.f32.mxu0 0.0
  %3561 = vmatmul.mubr.f32.gmra.mrb[0].mxu0 %v3383
  %v3562 = vpop.f32.mrb[0].mxu0
  %v3563 = vadd.f32 %v3306, %v3562
  %v3564 = vpop.f32.mrb[0].mxu0
  %3565 = vmatprep.mubr.f32.mxu0 0.0
  %3566 = vmatmul.mubr.f32.gmra.mrb[0].mxu0 %v3386
  %v3567 = vpop.f32.mrb[0].mxu0
  %v3568 = vadd.f32 %v3311, %v3567
  %v3569 = vpop.f32.mrb[0].mxu0
  %3570 = vmatprep.mubr.f32.mxu0 0.0
  %3571 = vmatmul.mubr.f32.gmra.mrb[0].mxu0 %v3389
  %v3572 = vpop.f32.mrb[0].mxu0
  %v3573 = vadd.f32 %v3316, %v3572
  %v3574 = vpop.f32.mrb[0].mxu0
  %3575 = vdwg.mxu0
  %s3576 = scalar_lea.vmem %s8, 1
  %v3577 = vld [vmem:[%s3576] sm:$0x1]
  %v3579 = vlaneseq
  %v3580 = vshrl.u32 %v3579, 7
  %v3581 = vsub.s32 0, %v3580
  %v3582 = vrot.slane %v3577, %v3581
  %v3584 = vadd.f32 %v3458, %v3582
  %v3585 = vadd.f32 %v3463, %v3582
  %v3586 = vadd.f32 %v3468, %v3582
  %v3587 = vadd.f32 %v3473, %v3582
  %v3588 = vadd.f32 %v3478, %v3582
  %v3589 = vadd.f32 %v3483, %v3582
  %v3590 = vadd.f32 %v3488, %v3582
  %v3591 = vadd.f32 %v3493, %v3582
  %v3592 = vadd.f32 %v3498, %v3582
  %v3593 = vadd.f32 %v3503, %v3582
  %v3594 = vadd.f32 %v3508, %v3582
  %v3595 = vadd.f32 %v3513, %v3582
  %v3596 = vadd.f32 %v3518, %v3582
  %v3597 = vadd.f32 %v3523, %v3582
  %v3598 = vadd.f32 %v3528, %v3582
  %v3599 = vadd.f32 %v3533, %v3582
  %v3600 = vadd.f32 %v3538, %v3582
  %v3601 = vadd.f32 %v3543, %v3582
  %v3602 = vadd.f32 %v3548, %v3582
  %v3603 = vadd.f32 %v3553, %v3582
  %v3604 = vadd.f32 %v3558, %v3582
  %v3605 = vadd.f32 %v3563, %v3582
  %v3606 = vadd.f32 %v3568, %v3582
  %v3607 = vadd.f32 %v3573, %v3582
  %v3608 = vmul.f32 %v3584, %v841
  %v3609 = vmul.f32 %v3585, %v842
  %v3610 = vmul.f32 %v3586, %v843
  %v3611 = vmul.f32 %v3587, %v844
  %v3612 = vmul.f32 %v3588, %v845
  %v3613 = vmul.f32 %v3589, %v846
  %v3614 = vmul.f32 %v3590, %v847
  %v3615 = vmul.f32 %v3591, %v848
  %v3616 = vmul.f32 %v3592, %v849
  %v3617 = vmul.f32 %v3593, %v850
  %v3618 = vmul.f32 %v3594, %v851
  %v3619 = vmul.f32 %v3595, %v852
  %v3620 = vmul.f32 %v3596, %v853
  %v3621 = vmul.f32 %v3597, %v854
  %v3622 = vmul.f32 %v3598, %v855
  %v3623 = vmul.f32 %v3599, %v856
  %v3624 = vmul.f32 %v3600, %v857
  %v3625 = vmul.f32 %v3601, %v858
  %v3626 = vmul.f32 %v3602, %v859
  %v3627 = vmul.f32 %v3603, %v860
  %v3628 = vmul.f32 %v3604, %v861
  %v3629 = vmul.f32 %v3605, %v862
  %v3630 = vmul.f32 %v3606, %v863
  %v3631 = vmul.f32 %v3607, %v864
  %v3632 = vadd.f32 %v2836, %v3608
  %v3633 = vadd.f32 %v2837, %v3609
  %v3634 = vadd.f32 %v2838, %v3610
  %v3635 = vadd.f32 %v2839, %v3611
  %v3636 = vadd.f32 %v2840, %v3612
  %v3637 = vadd.f32 %v2841, %v3613
  %v3638 = vadd.f32 %v2842, %v3614
  %v3639 = vadd.f32 %v2843, %v3615
  %v3640 = vadd.f32 %v2844, %v3616
  %v3641 = vadd.f32 %v2845, %v3617
  %v3642 = vadd.f32 %v2846, %v3618
  %v3643 = vadd.f32 %v2847, %v3619
  %v3644 = vadd.f32 %v2848, %v3620
  %v3645 = vadd.f32 %v2849, %v3621
  %v3646 = vadd.f32 %v2850, %v3622
  %v3647 = vadd.f32 %v2851, %v3623
  %v3648 = vadd.f32 %v2852, %v3624
  %v3649 = vadd.f32 %v2853, %v3625
  %v3650 = vadd.f32 %v2854, %v3626
  %v3651 = vadd.f32 %v2855, %v3627
  %v3652 = vadd.f32 %v2856, %v3628
  %v3653 = vadd.f32 %v2857, %v3629
  %v3654 = vadd.f32 %v2858, %v3630
  %v3655 = vadd.f32 %v2859, %v3631
  %v3656 = vmax.f32 %v3632, 0.0
  %v3657 = vmax.f32 %v3633, 0.0
  %v3658 = vmax.f32 %v3634, 0.0
  %v3659 = vmax.f32 %v3635, 0.0
  %v3660 = vmax.f32 %v3636, 0.0
  %v3661 = vmax.f32 %v3637, 0.0
  %v3662 = vmax.f32 %v3638, 0.0
  %v3663 = vmax.f32 %v3639, 0.0
  %v3664 = vmax.f32 %v3640, 0.0
  %v3665 = vmax.f32 %v3641, 0.0
  %v3666 = vmax.f32 %v3642, 0.0
  %v3667 = vmax.f32 %v3643, 0.0
  %v3668 = vmax.f32 %v3644, 0.0
  %v3669 = vmax.f32 %v3645, 0.0
  %v3670 = vmax.f32 %v3646, 0.0
  %v3671 = vmax.f32 %v3647, 0.0
  %v3672 = vmax.f32 %v3648, 0.0
  %v3673 = vmax.f32 %v3649, 0.0
  %v3674 = vmax.f32 %v3650, 0.0
  %v3675 = vmax.f32 %v3651, 0.0
  %v3676 = vmax.f32 %v3652, 0.0
  %v3677 = vmax.f32 %v3653, 0.0
  %v3678 = vmax.f32 %v3654, 0.0
  %v3679 = vmax.f32 %v3655, 0.0
  %3680 = vmatprep.subr.mxu0 0.0
  %3681 = vmatpush1.msra.mxu0 %v3656
  %3682 = vmatprep.subr.mxu0 0.0
  %3683 = vmatpush1.msra.mxu0 %v3657
  %3684 = vmatprep.subr.mxu0 0.0
  %3685 = vmatpush1.msra.mxu0 %v3658
  %3686 = vmatprep.subr.mxu0 0.0
  %3687 = vmatpush1.msra.mxu0 %v3659
  %3688 = vmatprep.subr.mxu0 0.0
  %3689 = vmatpush1.msra.mxu0 %v3660
  %3690 = vmatprep.subr.mxu0 0.0
  %3691 = vmatpush1.msra.mxu0 %v3661
  %3692 = vmatprep.subr.mxu0 0.0
  %3693 = vmatpush1.msra.mxu0 %v3662
  %3694 = vmatprep.subr.mxu0 0.0
  %3695 = vmatpush1.msra.mxu0 %v3663
  %3696 = vmatprep.subr.mxu0 0.0
  %3697 = vmatpush1.msra.mxu0 %v3664
  %3698 = vmatprep.subr.mxu0 0.0
  %3699 = vmatpush1.msra.mxu0 %v3665
  %3700 = vmatprep.subr.mxu0 0.0
  %3701 = vmatpush1.msra.mxu0 %v3666
  %3702 = vmatprep.subr.mxu0 0.0
  %3703 = vmatpush1.msra.mxu0 %v3667
  %3704 = vmatprep.subr.mxu0 0.0
  %3705 = vmatpush1.msra.mxu0 %v3668
  %3706 = vmatprep.subr.mxu0 0.0
  %3707 = vmatpush1.msra.mxu0 %v3669
  %3708 = vmatprep.subr.mxu0 0.0
  %3709 = vmatpush1.msra.mxu0 %v3670
  %3710 = vmatprep.subr.mxu0 0.0
  %3711 = vmatpush1.msra.mxu0 %v3671
  %3712 = vmatprep.subr.mxu0 0.0
  %3713 = vmatpush1.msra.mxu0 %v3672
  %3714 = vmatprep.subr.mxu0 0.0
  %3715 = vmatpush1.msra.mxu0 %v3673
  %3716 = vmatprep.subr.mxu0 0.0
  %3717 = vmatpush1.msra.mxu0 %v3674
  %3718 = vmatprep.subr.mxu0 0.0
  %3719 = vmatpush1.msra.mxu0 %v3675
  %3720 = vmatprep.subr.mxu0 0.0
  %3721 = vmatpush1.msra.mxu0 %v3676
  %3722 = vmatprep.subr.mxu0 0.0
  %3723 = vmatpush1.msra.mxu0 %v3677
  %3724 = vmatprep.subr.mxu0 0.0
  %3725 = vmatpush1.msra.mxu0 %v3678
  %3726 = vmatprep.subr.mxu0 0.0
  %3727 = vmatpush1.msra.mxu0 %v3679
  %3728 = vmatprep.subr.mxu0 0.0
  %3729 = vmatpush1.msra.mxu0 0.0
  %3730 = vmatprep.subr.mxu0 0.0
  %3731 = vmatpush1.msra.mxu0 0.0
  %3732 = vmatprep.subr.mxu0 0.0
  %3733 = vmatpush1.msra.mxu0 0.0
  %3734 = vmatprep.subr.mxu0 0.0
  %3735 = vmatpush1.msra.mxu0 0.0
  %3736 = vmatprep.subr.mxu0 0.0
  %3737 = vmatpush1.msra.mxu0 0.0
  %3738 = vmatprep.subr.mxu0 0.0
  %3739 = vmatpush1.msra.mxu0 0.0
  %3740 = vmatprep.subr.mxu0 0.0
  %3741 = vmatpush1.msra.mxu0 0.0
  %3742 = vmatprep.subr.mxu0 0.0
  %3743 = vmatpush1.msra.mxu0 0.0
  %3744 = vmatprep.mubr.f32.mxu0 %v1971
  %3745 = vmatmul.mubr.f32.gmra.mrb[0].mxu0 %v1921
  %v3746 = vpop.f32.mrb[0].mxu0
  %v3747 = vadd.f32 0.0, %v3746
  %v3748 = vpop.f32.mrb[0].mxu0
  %3749 = vmatprep.mubr.f32.mxu0 %v1974
  %3750 = vmatmul.mubr.f32.gmra.mrb[0].mxu0 %v1923
  %v3751 = vpop.f32.mrb[0].mxu0
  %v3752 = vadd.f32 0.0, %v3751
  %v3753 = vpop.f32.mrb[0].mxu0
  %3754 = vmatprep.mubr.f32.mxu0 %v1977
  %3755 = vmatmul.mubr.f32.gmra.mrb[0].mxu0 %v1925
  %v3756 = vpop.f32.mrb[0].mxu0
  %v3757 = vadd.f32 0.0, %v3756
  %v3758 = vpop.f32.mrb[0].mxu0
  %3759 = vmatprep.mubr.f32.mxu0 %v1980
  %3760 = vmatmul.mubr.f32.gmra.mrb[0].mxu0 %v1927
  %v3761 = vpop.f32.mrb[0].mxu0
  %v3762 = vadd.f32 0.0, %v3761
  %v3763 = vpop.f32.mrb[0].mxu0
  %3764 = vmatprep.mubr.f32.mxu0 %v1983
  %3765 = vmatmul.mubr.f32.gmra.mrb[0].mxu0 %v1929
  %v3766 = vpop.f32.mrb[0].mxu0
  %v3767 = vadd.f32 0.0, %v3766
  %v3768 = vpop.f32.mrb[0].mxu0
  %3769 = vmatprep.mubr.f32.mxu0 %v1986
  %3770 = vmatmul.mubr.f32.gmra.mrb[0].mxu0 %v1931
  %v3771 = vpop.f32.mrb[0].mxu0
  %v3772 = vadd.f32 0.0, %v3771
  %v3773 = vpop.f32.mrb[0].mxu0
  %3774 = vmatprep.mubr.f32.mxu0 %v1989
  %3775 = vmatmul.mubr.f32.gmra.mrb[0].mxu0 %v1933
  %v3776 = vpop.f32.mrb[0].mxu0
  %v3777 = vadd.f32 0.0, %v3776
  %v3778 = vpop.f32.mrb[0].mxu0
  %3779 = vmatprep.mubr.f32.mxu0 %v1992
  %3780 = vmatmul.mubr.f32.gmra.mrb[0].mxu0 %v1935
  %v3781 = vpop.f32.mrb[0].mxu0
  %v3782 = vadd.f32 0.0, %v3781
  %v3783 = vpop.f32.mrb[0].mxu0
  %3784 = vmatprep.mubr.f32.mxu0 %v1995
  %3785 = vmatmul.mubr.f32.gmra.mrb[0].mxu0 %v1937
  %v3786 = vpop.f32.mrb[0].mxu0
  %v3787 = vadd.f32 0.0, %v3786
  %v3788 = vpop.f32.mrb[0].mxu0
  %3789 = vmatprep.mubr.f32.mxu0 %v1998
  %3790 = vmatmul.mubr.f32.gmra.mrb[0].mxu0 %v1939
  %v3791 = vpop.f32.mrb[0].mxu0
  %v3792 = vadd.f32 0.0, %v3791
  %v3793 = vpop.f32.mrb[0].mxu0
  %3794 = vmatprep.mubr.f32.mxu0 %v2001
  %3795 = vmatmul.mubr.f32.gmra.mrb[0].mxu0 %v1941
  %v3796 = vpop.f32.mrb[0].mxu0
  %v3797 = vadd.f32 0.0, %v3796
  %v3798 = vpop.f32.mrb[0].mxu0
  %3799 = vmatprep.mubr.f32.mxu0 %v2004
  %3800 = vmatmul.mubr.f32.gmra.mrb[0].mxu0 %v1943
  %v3801 = vpop.f32.mrb[0].mxu0
  %v3802 = vadd.f32 0.0, %v3801
  %v3803 = vpop.f32.mrb[0].mxu0
  %3804 = vmatprep.mubr.f32.mxu0 %v2007
  %3805 = vmatmul.mubr.f32.gmra.mrb[0].mxu0 %v1945
  %v3806 = vpop.f32.mrb[0].mxu0
  %v3807 = vadd.f32 0.0, %v3806
  %v3808 = vpop.f32.mrb[0].mxu0
  %3809 = vmatprep.mubr.f32.mxu0 %v2010
  %3810 = vmatmul.mubr.f32.gmra.mrb[0].mxu0 %v1947
  %v3811 = vpop.f32.mrb[0].mxu0
  %v3812 = vadd.f32 0.0, %v3811
  %v3813 = vpop.f32.mrb[0].mxu0
  %3814 = vmatprep.mubr.f32.mxu0 %v2013
  %3815 = vmatmul.mubr.f32.gmra.mrb[0].mxu0 %v1949
  %v3816 = vpop.f32.mrb[0].mxu0
  %v3817 = vadd.f32 0.0, %v3816
  %v3818 = vpop.f32.mrb[0].mxu0
  %3819 = vmatprep.mubr.f32.mxu0 %v2016
  %3820 = vmatmul.mubr.f32.gmra.mrb[0].mxu0 %v1951
  %v3821 = vpop.f32.mrb[0].mxu0
  %v3822 = vadd.f32 0.0, %v3821
  %v3823 = vpop.f32.mrb[0].mxu0
  %3824 = vmatprep.mubr.f32.mxu0 %v2019
  %3825 = vmatmul.mubr.f32.gmra.mrb[0].mxu0 %v1953
  %v3826 = vpop.f32.mrb[0].mxu0
  %v3827 = vadd.f32 0.0, %v3826
  %v3828 = vpop.f32.mrb[0].mxu0
  %3829 = vmatprep.mubr.f32.mxu0 %v2022
  %3830 = vmatmul.mubr.f32.gmra.mrb[0].mxu0 %v1955
  %v3831 = vpop.f32.mrb[0].mxu0
  %v3832 = vadd.f32 0.0, %v3831
  %v3833 = vpop.f32.mrb[0].mxu0
  %3834 = vmatprep.mubr.f32.mxu0 %v2025
  %3835 = vmatmul.mubr.f32.gmra.mrb[0].mxu0 %v1957
  %v3836 = vpop.f32.mrb[0].mxu0
  %v3837 = vadd.f32 0.0, %v3836
  %v3838 = vpop.f32.mrb[0].mxu0
  %3839 = vmatprep.mubr.f32.mxu0 %v2028
  %3840 = vmatmul.mubr.f32.gmra.mrb[0].mxu0 %v1959
  %v3841 = vpop.f32.mrb[0].mxu0
  %v3842 = vadd.f32 0.0, %v3841
  %v3843 = vpop.f32.mrb[0].mxu0
  %3844 = vmatprep.mubr.f32.mxu0 %v2031
  %3845 = vmatmul.mubr.f32.gmra.mrb[0].mxu0 %v1961
  %v3846 = vpop.f32.mrb[0].mxu0
  %v3847 = vadd.f32 0.0, %v3846
  %v3848 = vpop.f32.mrb[0].mxu0
  %3849 = vmatprep.mubr.f32.mxu0 %v2034
  %3850 = vmatmul.mubr.f32.gmra.mrb[0].mxu0 %v1963
  %v3851 = vpop.f32.mrb[0].mxu0
  %v3852 = vadd.f32 0.0, %v3851
  %v3853 = vpop.f32.mrb[0].mxu0
  %3854 = vmatprep.mubr.f32.mxu0 %v2037
  %3855 = vmatmul.mubr.f32.gmra.mrb[0].mxu0 %v1965
  %v3856 = vpop.f32.mrb[0].mxu0
  %v3857 = vadd.f32 0.0, %v3856
  %v3858 = vpop.f32.mrb[0].mxu0
  %3859 = vmatprep.mubr.f32.mxu0 %v2040
  %3860 = vmatmul.mubr.f32.gmra.mrb[0].mxu0 %v1967
  %v3861 = vpop.f32.mrb[0].mxu0
  %v3862 = vadd.f32 0.0, %v3861
  %v3863 = vpop.f32.mrb[0].mxu0
  %3864 = vdwg.mxu0
  %s3865 = scalar_lea.vmem %s7, 256
  %v3866 = vld [vmem:[%s3865] sm:$0xff]
  %v3867 = vld [vmem:[%s3865 + $0x8] sm:$0xff]
  %v3868 = vld [vmem:[%s3865 + $0x10] sm:$0xff]
  %v3869 = vld [vmem:[%s3865 + $0x18] sm:$0xff]
  %v3870 = vld [vmem:[%s3865 + $0x20] sm:$0xff]
  %v3871 = vld [vmem:[%s3865 + $0x28] sm:$0xff]
  %v3872 = vld [vmem:[%s3865 + $0x30] sm:$0xff]
  %v3873 = vld [vmem:[%s3865 + $0x38] sm:$0xff]
  %v3874 = vld [vmem:[%s3865 + $0x40] sm:$0xff]
  %v3875 = vld [vmem:[%s3865 + $0x48] sm:$0xff]
  %v3876 = vld [vmem:[%s3865 + $0x50] sm:$0xff]
  %v3877 = vld [vmem:[%s3865 + $0x58] sm:$0xff]
  %v3878 = vld [vmem:[%s3865 + $0x60] sm:$0xff]
  %v3879 = vld [vmem:[%s3865 + $0x68] sm:$0xff]
  %v3880 = vld [vmem:[%s3865 + $0x70] sm:$0xff]
  %v3881 = vld [vmem:[%s3865 + $0x78] sm:$0xff]
  %v3883 = vsel %vm1969, %v3747, 0
  %v3886 = vsel %vm1969, %v3752, 0
  %v3889 = vsel %vm1969, %v3757, 0
  %v3892 = vsel %vm1969, %v3762, 0
  %v3895 = vsel %vm1969, %v3767, 0
  %v3898 = vsel %vm1969, %v3772, 0
  %v3901 = vsel %vm1969, %v3777, 0
  %v3904 = vsel %vm1969, %v3782, 0
  %v3907 = vsel %vm1969, %v3787, 0
  %v3910 = vsel %vm1969, %v3792, 0
  %v3913 = vsel %vm1969, %v3797, 0
  %v3916 = vsel %vm1969, %v3802, 0
  %v3919 = vsel %vm1969, %v3807, 0
  %v3922 = vsel %vm1969, %v3812, 0
  %v3925 = vsel %vm1969, %v3817, 0
  %v3928 = vsel %vm1969, %v3822, 0
  %v3931 = vsel %vm1969, %v3827, 0
  %v3934 = vsel %vm1969, %v3832, 0
  %v3937 = vsel %vm1969, %v3837, 0
  %v3940 = vsel %vm1969, %v3842, 0
  %v3943 = vsel %vm1969, %v3847, 0
  %v3946 = vsel %vm1969, %v3852, 0
  %v3949 = vsel %vm1969, %v3857, 0
  %v3952 = vsel %vm1969, %v3862, 0
  %3954 = vmatprep.subr.mxu0 0.0
  %3955 = vmatpush1.msra.mxu0 %v3874
  %3956 = vmatprep.subr.mxu0 0.0
  %3957 = vmatpush1.msra.mxu0 %v3875
  %3958 = vmatprep.subr.mxu0 0.0
  %3959 = vmatpush1.msra.mxu0 %v3876
  %3960 = vmatprep.subr.mxu0 0.0
  %3961 = vmatpush1.msra.mxu0 %v3877
  %3962 = vmatprep.subr.mxu0 0.0
  %3963 = vmatpush1.msra.mxu0 %v3878
  %3964 = vmatprep.subr.mxu0 0.0
  %3965 = vmatpush1.msra.mxu0 %v3879
  %3966 = vmatprep.subr.mxu0 0.0
  %3967 = vmatpush1.msra.mxu0 %v3880
  %3968 = vmatprep.subr.mxu0 0.0
  %3969 = vmatpush1.msra.mxu0 %v3881
  %3970 = vmatprep.subr.mxu0 0.0
  %3971 = vmatpush1.msra.mxu0 0.0
  %3972 = vmatprep.subr.mxu0 0.0
  %3973 = vmatpush1.msra.mxu0 0.0
  %3974 = vmatprep.subr.mxu0 0.0
  %3975 = vmatpush1.msra.mxu0 0.0
  %3976 = vmatprep.subr.mxu0 0.0
  %3977 = vmatpush1.msra.mxu0 0.0
  %3978 = vmatprep.subr.mxu0 0.0
  %3979 = vmatpush1.msra.mxu0 0.0
  %3980 = vmatprep.subr.mxu0 0.0
  %3981 = vmatpush1.msra.mxu0 0.0
  %3982 = vmatprep.subr.mxu0 0.0
  %3983 = vmatpush1.msra.mxu0 0.0
  %3984 = vmatprep.subr.mxu0 0.0
  %3985 = vmatpush1.msra.mxu0 0.0
  %3986 = vmatprep.subr.mxu0 0.0
  %3987 = vmatpush1.msra.mxu0 0.0
  %3988 = vmatprep.subr.mxu0 0.0
  %3989 = vmatpush1.msra.mxu0 0.0
  %3990 = vmatprep.subr.mxu0 0.0
  %3991 = vmatpush1.msra.mxu0 0.0
  %3992 = vmatprep.subr.mxu0 0.0
  %3993 = vmatpush1.msra.mxu0 0.0
  %3994 = vmatprep.subr.mxu0 0.0
  %3995 = vmatpush1.msra.mxu0 0.0
  %3996 = vmatprep.subr.mxu0 0.0
  %3997 = vmatpush1.msra.mxu0 0.0
  %3998 = vmatprep.subr.mxu0 0.0
  %3999 = vmatpush1.msra.mxu0 0.0
  %4000 = vmatprep.subr.mxu0 0.0
  %4001 = vmatpush1.msra.mxu0 0.0
  %4002 = vmatprep.subr.mxu0 0.0
  %4003 = vmatpush1.msra.mxu0 0.0
  %4004 = vmatprep.subr.mxu0 0.0
  %4005 = vmatpush1.msra.mxu0 0.0
  %4006 = vmatprep.subr.mxu0 0.0
  %4007 = vmatpush1.msra.mxu0 0.0
  %4008 = vmatprep.subr.mxu0 0.0
  %4009 = vmatpush1.msra.mxu0 0.0
  %4010 = vmatprep.subr.mxu0 0.0
  %4011 = vmatpush1.msra.mxu0 0.0
  %4012 = vmatprep.subr.mxu0 0.0
  %4013 = vmatpush1.msra.mxu0 0.0
  %4014 = vmatprep.subr.mxu0 0.0
  %4015 = vmatpush1.msra.mxu0 0.0
  %4016 = vmatprep.subr.mxu0 0.0
  %4017 = vmatpush1.msra.mxu0 0.0
  %4018 = vmatprep.mubr.f32.mxu0 0.0
  %4019 = vmatmul.mubr.f32.gmra.mrb[0].mxu0 %v3883
  %v4020 = vpop.f32.mrb[0].mxu0
  %v4021 = vadd.f32 0.0, %v4020
  %v4022 = vpop.f32.mrb[0].mxu0
  %4023 = vmatprep.mubr.f32.mxu0 0.0
  %4024 = vmatmul.mubr.f32.gmra.mrb[0].mxu0 %v3886
  %v4025 = vpop.f32.mrb[0].mxu0
  %v4026 = vadd.f32 0.0, %v4025
  %v4027 = vpop.f32.mrb[0].mxu0
  %4028 = vmatprep.mubr.f32.mxu0 0.0
  %4029 = vmatmul.mubr.f32.gmra.mrb[0].mxu0 %v3889
  %v4030 = vpop.f32.mrb[0].mxu0
  %v4031 = vadd.f32 0.0, %v4030
  %v4032 = vpop.f32.mrb[0].mxu0
  %4033 = vmatprep.mubr.f32.mxu0 0.0
  %4034 = vmatmul.mubr.f32.gmra.mrb[0].mxu0 %v3892
  %v4035 = vpop.f32.mrb[0].mxu0
  %v4036 = vadd.f32 0.0, %v4035
  %v4037 = vpop.f32.mrb[0].mxu0
  %4038 = vmatprep.mubr.f32.mxu0 0.0
  %4039 = vmatmul.mubr.f32.gmra.mrb[0].mxu0 %v3895
  %v4040 = vpop.f32.mrb[0].mxu0
  %v4041 = vadd.f32 0.0, %v4040
  %v4042 = vpop.f32.mrb[0].mxu0
  %4043 = vmatprep.mubr.f32.mxu0 0.0
  %4044 = vmatmul.mubr.f32.gmra.mrb[0].mxu0 %v3898
  %v4045 = vpop.f32.mrb[0].mxu0
  %v4046 = vadd.f32 0.0, %v4045
  %v4047 = vpop.f32.mrb[0].mxu0
  %4048 = vmatprep.mubr.f32.mxu0 0.0
  %4049 = vmatmul.mubr.f32.gmra.mrb[0].mxu0 %v3901
  %v4050 = vpop.f32.mrb[0].mxu0
  %v4051 = vadd.f32 0.0, %v4050
  %v4052 = vpop.f32.mrb[0].mxu0
  %4053 = vmatprep.mubr.f32.mxu0 0.0
  %4054 = vmatmul.mubr.f32.gmra.mrb[0].mxu0 %v3904
  %v4055 = vpop.f32.mrb[0].mxu0
  %v4056 = vadd.f32 0.0, %v4055
  %v4057 = vpop.f32.mrb[0].mxu0
  %4058 = vmatprep.mubr.f32.mxu0 0.0
  %4059 = vmatmul.mubr.f32.gmra.mrb[0].mxu0 %v3907
  %v4060 = vpop.f32.mrb[0].mxu0
  %v4061 = vadd.f32 0.0, %v4060
  %v4062 = vpop.f32.mrb[0].mxu0
  %4063 = vmatprep.mubr.f32.mxu0 0.0
  %4064 = vmatmul.mubr.f32.gmra.mrb[0].mxu0 %v3910
  %v4065 = vpop.f32.mrb[0].mxu0
  %v4066 = vadd.f32 0.0, %v4065
  %v4067 = vpop.f32.mrb[0].mxu0
  %4068 = vmatprep.mubr.f32.mxu0 0.0
  %4069 = vmatmul.mubr.f32.gmra.mrb[0].mxu0 %v3913
  %v4070 = vpop.f32.mrb[0].mxu0
  %v4071 = vadd.f32 0.0, %v4070
  %v4072 = vpop.f32.mrb[0].mxu0
  %4073 = vmatprep.mubr.f32.mxu0 0.0
  %4074 = vmatmul.mubr.f32.gmra.mrb[0].mxu0 %v3916
  %v4075 = vpop.f32.mrb[0].mxu0
  %v4076 = vadd.f32 0.0, %v4075
  %v4077 = vpop.f32.mrb[0].mxu0
  %4078 = vmatprep.mubr.f32.mxu0 0.0
  %4079 = vmatmul.mubr.f32.gmra.mrb[0].mxu0 %v3919
  %v4080 = vpop.f32.mrb[0].mxu0
  %v4081 = vadd.f32 0.0, %v4080
  %v4082 = vpop.f32.mrb[0].mxu0
  %4083 = vmatprep.mubr.f32.mxu0 0.0
  %4084 = vmatmul.mubr.f32.gmra.mrb[0].mxu0 %v3922
  %v4085 = vpop.f32.mrb[0].mxu0
  %v4086 = vadd.f32 0.0, %v4085
  %v4087 = vpop.f32.mrb[0].mxu0
  %4088 = vmatprep.mubr.f32.mxu0 0.0
  %4089 = vmatmul.mubr.f32.gmra.mrb[0].mxu0 %v3925
  %v4090 = vpop.f32.mrb[0].mxu0
  %v4091 = vadd.f32 0.0, %v4090
  %v4092 = vpop.f32.mrb[0].mxu0
  %4093 = vmatprep.mubr.f32.mxu0 0.0
  %4094 = vmatmul.mubr.f32.gmra.mrb[0].mxu0 %v3928
  %v4095 = vpop.f32.mrb[0].mxu0
  %v4096 = vadd.f32 0.0, %v4095
  %v4097 = vpop.f32.mrb[0].mxu0
  %4098 = vmatprep.mubr.f32.mxu0 0.0
  %4099 = vmatmul.mubr.f32.gmra.mrb[0].mxu0 %v3931
  %v4100 = vpop.f32.mrb[0].mxu0
  %v4101 = vadd.f32 0.0, %v4100
  %v4102 = vpop.f32.mrb[0].mxu0
  %4103 = vmatprep.mubr.f32.mxu0 0.0
  %4104 = vmatmul.mubr.f32.gmra.mrb[0].mxu0 %v3934
  %v4105 = vpop.f32.mrb[0].mxu0
  %v4106 = vadd.f32 0.0, %v4105
  %v4107 = vpop.f32.mrb[0].mxu0
  %4108 = vmatprep.mubr.f32.mxu0 0.0
  %4109 = vmatmul.mubr.f32.gmra.mrb[0].mxu0 %v3937
  %v4110 = vpop.f32.mrb[0].mxu0
  %v4111 = vadd.f32 0.0, %v4110
  %v4112 = vpop.f32.mrb[0].mxu0
  %4113 = vmatprep.mubr.f32.mxu0 0.0
  %4114 = vmatmul.mubr.f32.gmra.mrb[0].mxu0 %v3940
  %v4115 = vpop.f32.mrb[0].mxu0
  %v4116 = vadd.f32 0.0, %v4115
  %v4117 = vpop.f32.mrb[0].mxu0
  %4118 = vmatprep.mubr.f32.mxu0 0.0
  %4119 = vmatmul.mubr.f32.gmra.mrb[0].mxu0 %v3943
  %v4120 = vpop.f32.mrb[0].mxu0
  %v4121 = vadd.f32 0.0, %v4120
  %v4122 = vpop.f32.mrb[0].mxu0
  %4123 = vmatprep.mubr.f32.mxu0 0.0
  %4124 = vmatmul.mubr.f32.gmra.mrb[0].mxu0 %v3946
  %v4125 = vpop.f32.mrb[0].mxu0
  %v4126 = vadd.f32 0.0, %v4125
  %v4127 = vpop.f32.mrb[0].mxu0
  %4128 = vmatprep.mubr.f32.mxu0 0.0
  %4129 = vmatmul.mubr.f32.gmra.mrb[0].mxu0 %v3949
  %v4130 = vpop.f32.mrb[0].mxu0
  %v4131 = vadd.f32 0.0, %v4130
  %v4132 = vpop.f32.mrb[0].mxu0
  %4133 = vmatprep.mubr.f32.mxu0 0.0
  %4134 = vmatmul.mubr.f32.gmra.mrb[0].mxu0 %v3952
  %v4135 = vpop.f32.mrb[0].mxu0
  %v4136 = vadd.f32 0.0, %v4135
  %v4137 = vpop.f32.mrb[0].mxu0
  %4138 = vdwg.mxu0
  %v4140 = vsel %vm1969, %v3656, 0
  %v4143 = vsel %vm1969, %v3657, 0
  %v4146 = vsel %vm1969, %v3658, 0
  %v4149 = vsel %vm1969, %v3659, 0
  %v4152 = vsel %vm1969, %v3660, 0
  %v4155 = vsel %vm1969, %v3661, 0
  %v4158 = vsel %vm1969, %v3662, 0
  %v4161 = vsel %vm1969, %v3663, 0
  %v4164 = vsel %vm1969, %v3664, 0
  %v4167 = vsel %vm1969, %v3665, 0
  %v4170 = vsel %vm1969, %v3666, 0
  %v4173 = vsel %vm1969, %v3667, 0
  %v4176 = vsel %vm1969, %v3668, 0
  %v4179 = vsel %vm1969, %v3669, 0
  %v4182 = vsel %vm1969, %v3670, 0
  %v4185 = vsel %vm1969, %v3671, 0
  %v4188 = vsel %vm1969, %v3672, 0
  %v4191 = vsel %vm1969, %v3673, 0
  %v4194 = vsel %vm1969, %v3674, 0
  %v4197 = vsel %vm1969, %v3675, 0
  %v4200 = vsel %vm1969, %v3676, 0
  %v4203 = vsel %vm1969, %v3677, 0
  %v4206 = vsel %vm1969, %v3678, 0
  %v4209 = vsel %vm1969, %v3679, 0
  %4211 = vmatprep.subr.mxu0 0.0
  %4212 = vmatpush1.msra.mxu0 %v3866
  %4213 = vmatprep.subr.mxu0 0.0
  %4214 = vmatpush1.msra.mxu0 %v3867
  %4215 = vmatprep.subr.mxu0 0.0
  %4216 = vmatpush1.msra.mxu0 %v3868
  %4217 = vmatprep.subr.mxu0 0.0
  %4218 = vmatpush1.msra.mxu0 %v3869
  %4219 = vmatprep.subr.mxu0 0.0
  %4220 = vmatpush1.msra.mxu0 %v3870
  %4221 = vmatprep.subr.mxu0 0.0
  %4222 = vmatpush1.msra.mxu0 %v3871
  %4223 = vmatprep.subr.mxu0 0.0
  %4224 = vmatpush1.msra.mxu0 %v3872
  %4225 = vmatprep.subr.mxu0 0.0
  %4226 = vmatpush1.msra.mxu0 %v3873
  %4227 = vmatprep.subr.mxu0 0.0
  %4228 = vmatpush1.msra.mxu0 0.0
  %4229 = vmatprep.subr.mxu0 0.0
  %4230 = vmatpush1.msra.mxu0 0.0
  %4231 = vmatprep.subr.mxu0 0.0
  %4232 = vmatpush1.msra.mxu0 0.0
  %4233 = vmatprep.subr.mxu0 0.0
  %4234 = vmatpush1.msra.mxu0 0.0
  %4235 = vmatprep.subr.mxu0 0.0
  %4236 = vmatpush1.msra.mxu0 0.0
  %4237 = vmatprep.subr.mxu0 0.0
  %4238 = vmatpush1.msra.mxu0 0.0
  %4239 = vmatprep.subr.mxu0 0.0
  %4240 = vmatpush1.msra.mxu0 0.0
  %4241 = vmatprep.subr.mxu0 0.0
  %4242 = vmatpush1.msra.mxu0 0.0
  %4243 = vmatprep.subr.mxu0 0.0
  %4244 = vmatpush1.msra.mxu0 0.0
  %4245 = vmatprep.subr.mxu0 0.0
  %4246 = vmatpush1.msra.mxu0 0.0
  %4247 = vmatprep.subr.mxu0 0.0
  %4248 = vmatpush1.msra.mxu0 0.0
  %4249 = vmatprep.subr.mxu0 0.0
  %4250 = vmatpush1.msra.mxu0 0.0
  %4251 = vmatprep.subr.mxu0 0.0
  %4252 = vmatpush1.msra.mxu0 0.0
  %4253 = vmatprep.subr.mxu0 0.0
  %4254 = vmatpush1.msra.mxu0 0.0
  %4255 = vmatprep.subr.mxu0 0.0
  %4256 = vmatpush1.msra.mxu0 0.0
  %4257 = vmatprep.subr.mxu0 0.0
  %4258 = vmatpush1.msra.mxu0 0.0
  %4259 = vmatprep.subr.mxu0 0.0
  %4260 = vmatpush1.msra.mxu0 0.0
  %4261 = vmatprep.subr.mxu0 0.0
  %4262 = vmatpush1.msra.mxu0 0.0
  %4263 = vmatprep.subr.mxu0 0.0
  %4264 = vmatpush1.msra.mxu0 0.0
  %4265 = vmatprep.subr.mxu0 0.0
  %4266 = vmatpush1.msra.mxu0 0.0
  %4267 = vmatprep.subr.mxu0 0.0
  %4268 = vmatpush1.msra.mxu0 0.0
  %4269 = vmatprep.subr.mxu0 0.0
  %4270 = vmatpush1.msra.mxu0 0.0
  %4271 = vmatprep.subr.mxu0 0.0
  %4272 = vmatpush1.msra.mxu0 0.0
  %4273 = vmatprep.subr.mxu0 0.0
  %4274 = vmatpush1.msra.mxu0 0.0
  %4275 = vmatprep.mubr.f32.mxu0 0.0
  %4276 = vmatmul.mubr.f32.gmra.mrb[0].mxu0 %v4140
  %v4277 = vpop.f32.mrb[0].mxu0
  %v4278 = vadd.f32 %v4021, %v4277
  %v4279 = vpop.f32.mrb[0].mxu0
  %4280 = vmatprep.mubr.f32.mxu0 0.0
  %4281 = vmatmul.mubr.f32.gmra.mrb[0].mxu0 %v4143
  %v4282 = vpop.f32.mrb[0].mxu0
  %v4283 = vadd.f32 %v4026, %v4282
  %v4284 = vpop.f32.mrb[0].mxu0
  %4285 = vmatprep.mubr.f32.mxu0 0.0
  %4286 = vmatmul.mubr.f32.gmra.mrb[0].mxu0 %v4146
  %v4287 = vpop.f32.mrb[0].mxu0
  %v4288 = vadd.f32 %v4031, %v4287
  %v4289 = vpop.f32.mrb[0].mxu0
  %4290 = vmatprep.mubr.f32.mxu0 0.0
  %4291 = vmatmul.mubr.f32.gmra.mrb[0].mxu0 %v4149
  %v4292 = vpop.f32.mrb[0].mxu0
  %v4293 = vadd.f32 %v4036, %v4292
  %v4294 = vpop.f32.mrb[0].mxu0
  %4295 = vmatprep.mubr.f32.mxu0 0.0
  %4296 = vmatmul.mubr.f32.gmra.mrb[0].mxu0 %v4152
  %v4297 = vpop.f32.mrb[0].mxu0
  %v4298 = vadd.f32 %v4041, %v4297
  %v4299 = vpop.f32.mrb[0].mxu0
  %4300 = vmatprep.mubr.f32.mxu0 0.0
  %4301 = vmatmul.mubr.f32.gmra.mrb[0].mxu0 %v4155
  %v4302 = vpop.f32.mrb[0].mxu0
  %v4303 = vadd.f32 %v4046, %v4302
  %v4304 = vpop.f32.mrb[0].mxu0
  %4305 = vmatprep.mubr.f32.mxu0 0.0
  %4306 = vmatmul.mubr.f32.gmra.mrb[0].mxu0 %v4158
  %v4307 = vpop.f32.mrb[0].mxu0
  %v4308 = vadd.f32 %v4051, %v4307
  %v4309 = vpop.f32.mrb[0].mxu0
  %4310 = vmatprep.mubr.f32.mxu0 0.0
  %4311 = vmatmul.mubr.f32.gmra.mrb[0].mxu0 %v4161
  %v4312 = vpop.f32.mrb[0].mxu0
  %v4313 = vadd.f32 %v4056, %v4312
  %v4314 = vpop.f32.mrb[0].mxu0
  %4315 = vmatprep.mubr.f32.mxu0 0.0
  %4316 = vmatmul.mubr.f32.gmra.mrb[0].mxu0 %v4164
  %v4317 = vpop.f32.mrb[0].mxu0
  %v4318 = vadd.f32 %v4061, %v4317
  %v4319 = vpop.f32.mrb[0].mxu0
  %4320 = vmatprep.mubr.f32.mxu0 0.0
  %4321 = vmatmul.mubr.f32.gmra.mrb[0].mxu0 %v4167
  %v4322 = vpop.f32.mrb[0].mxu0
  %v4323 = vadd.f32 %v4066, %v4322
  %v4324 = vpop.f32.mrb[0].mxu0
  %4325 = vmatprep.mubr.f32.mxu0 0.0
  %4326 = vmatmul.mubr.f32.gmra.mrb[0].mxu0 %v4170
  %v4327 = vpop.f32.mrb[0].mxu0
  %v4328 = vadd.f32 %v4071, %v4327
  %v4329 = vpop.f32.mrb[0].mxu0
  %4330 = vmatprep.mubr.f32.mxu0 0.0
  %4331 = vmatmul.mubr.f32.gmra.mrb[0].mxu0 %v4173
  %v4332 = vpop.f32.mrb[0].mxu0
  %v4333 = vadd.f32 %v4076, %v4332
  %v4334 = vpop.f32.mrb[0].mxu0
  %4335 = vmatprep.mubr.f32.mxu0 0.0
  %4336 = vmatmul.mubr.f32.gmra.mrb[0].mxu0 %v4176
  %v4337 = vpop.f32.mrb[0].mxu0
  %v4338 = vadd.f32 %v4081, %v4337
  %v4339 = vpop.f32.mrb[0].mxu0
  %4340 = vmatprep.mubr.f32.mxu0 0.0
  %4341 = vmatmul.mubr.f32.gmra.mrb[0].mxu0 %v4179
  %v4342 = vpop.f32.mrb[0].mxu0
  %v4343 = vadd.f32 %v4086, %v4342
  %v4344 = vpop.f32.mrb[0].mxu0
  %4345 = vmatprep.mubr.f32.mxu0 0.0
  %4346 = vmatmul.mubr.f32.gmra.mrb[0].mxu0 %v4182
  %v4347 = vpop.f32.mrb[0].mxu0
  %v4348 = vadd.f32 %v4091, %v4347
  %v4349 = vpop.f32.mrb[0].mxu0
  %4350 = vmatprep.mubr.f32.mxu0 0.0
  %4351 = vmatmul.mubr.f32.gmra.mrb[0].mxu0 %v4185
  %v4352 = vpop.f32.mrb[0].mxu0
  %v4353 = vadd.f32 %v4096, %v4352
  %v4354 = vpop.f32.mrb[0].mxu0
  %4355 = vmatprep.mubr.f32.mxu0 0.0
  %4356 = vmatmul.mubr.f32.gmra.mrb[0].mxu0 %v4188
  %v4357 = vpop.f32.mrb[0].mxu0
  %v4358 = vadd.f32 %v4101, %v4357
  %v4359 = vpop.f32.mrb[0].mxu0
  %4360 = vmatprep.mubr.f32.mxu0 0.0
  %4361 = vmatmul.mubr.f32.gmra.mrb[0].mxu0 %v4191
  %v4362 = vpop.f32.mrb[0].mxu0
  %v4363 = vadd.f32 %v4106, %v4362
  %v4364 = vpop.f32.mrb[0].mxu0
  %4365 = vmatprep.mubr.f32.mxu0 0.0
  %4366 = vmatmul.mubr.f32.gmra.mrb[0].mxu0 %v4194
  %v4367 = vpop.f32.mrb[0].mxu0
  %v4368 = vadd.f32 %v4111, %v4367
  %v4369 = vpop.f32.mrb[0].mxu0
  %4370 = vmatprep.mubr.f32.mxu0 0.0
  %4371 = vmatmul.mubr.f32.gmra.mrb[0].mxu0 %v4197
  %v4372 = vpop.f32.mrb[0].mxu0
  %v4373 = vadd.f32 %v4116, %v4372
  %v4374 = vpop.f32.mrb[0].mxu0
  %4375 = vmatprep.mubr.f32.mxu0 0.0
  %4376 = vmatmul.mubr.f32.gmra.mrb[0].mxu0 %v4200
  %v4377 = vpop.f32.mrb[0].mxu0
  %v4378 = vadd.f32 %v4121, %v4377
  %v4379 = vpop.f32.mrb[0].mxu0
  %4380 = vmatprep.mubr.f32.mxu0 0.0
  %4381 = vmatmul.mubr.f32.gmra.mrb[0].mxu0 %v4203
  %v4382 = vpop.f32.mrb[0].mxu0
  %v4383 = vadd.f32 %v4126, %v4382
  %v4384 = vpop.f32.mrb[0].mxu0
  %4385 = vmatprep.mubr.f32.mxu0 0.0
  %4386 = vmatmul.mubr.f32.gmra.mrb[0].mxu0 %v4206
  %v4387 = vpop.f32.mrb[0].mxu0
  %v4388 = vadd.f32 %v4131, %v4387
  %v4389 = vpop.f32.mrb[0].mxu0
  %4390 = vmatprep.mubr.f32.mxu0 0.0
  %4391 = vmatmul.mubr.f32.gmra.mrb[0].mxu0 %v4209
  %v4392 = vpop.f32.mrb[0].mxu0
  %v4393 = vadd.f32 %v4136, %v4392
  %v4394 = vpop.f32.mrb[0].mxu0
  %4395 = vdwg.mxu0
  %s4396 = scalar_lea.vmem %s8, 2
  %v4397 = vld [vmem:[%s4396] sm:$0x1]
  %v4399 = vlaneseq
  %v4400 = vshrl.u32 %v4399, 7
  %v4401 = vsub.s32 0, %v4400
  %v4402 = vrot.slane %v4397, %v4401
  %v4404 = vadd.f32 %v4278, %v4402
  %v4405 = vadd.f32 %v4283, %v4402
  %v4406 = vadd.f32 %v4288, %v4402
  %v4407 = vadd.f32 %v4293, %v4402
  %v4408 = vadd.f32 %v4298, %v4402
  %v4409 = vadd.f32 %v4303, %v4402
  %v4410 = vadd.f32 %v4308, %v4402
  %v4411 = vadd.f32 %v4313, %v4402
  %v4412 = vadd.f32 %v4318, %v4402
  %v4413 = vadd.f32 %v4323, %v4402
  %v4414 = vadd.f32 %v4328, %v4402
  %v4415 = vadd.f32 %v4333, %v4402
  %v4416 = vadd.f32 %v4338, %v4402
  %v4417 = vadd.f32 %v4343, %v4402
  %v4418 = vadd.f32 %v4348, %v4402
  %v4419 = vadd.f32 %v4353, %v4402
  %v4420 = vadd.f32 %v4358, %v4402
  %v4421 = vadd.f32 %v4363, %v4402
  %v4422 = vadd.f32 %v4368, %v4402
  %v4423 = vadd.f32 %v4373, %v4402
  %v4424 = vadd.f32 %v4378, %v4402
  %v4425 = vadd.f32 %v4383, %v4402
  %v4426 = vadd.f32 %v4388, %v4402
  %v4427 = vadd.f32 %v4393, %v4402
  %v4428 = vmul.f32 %v4404, %v841
  %v4429 = vmul.f32 %v4405, %v842
  %v4430 = vmul.f32 %v4406, %v843
  %v4431 = vmul.f32 %v4407, %v844
  %v4432 = vmul.f32 %v4408, %v845
  %v4433 = vmul.f32 %v4409, %v846
  %v4434 = vmul.f32 %v4410, %v847
  %v4435 = vmul.f32 %v4411, %v848
  %v4436 = vmul.f32 %v4412, %v849
  %v4437 = vmul.f32 %v4413, %v850
  %v4438 = vmul.f32 %v4414, %v851
  %v4439 = vmul.f32 %v4415, %v852
  %v4440 = vmul.f32 %v4416, %v853
  %v4441 = vmul.f32 %v4417, %v854
  %v4442 = vmul.f32 %v4418, %v855
  %v4443 = vmul.f32 %v4419, %v856
  %v4444 = vmul.f32 %v4420, %v857
  %v4445 = vmul.f32 %v4421, %v858
  %v4446 = vmul.f32 %v4422, %v859
  %v4447 = vmul.f32 %v4423, %v860
  %v4448 = vmul.f32 %v4424, %v861
  %v4449 = vmul.f32 %v4425, %v862
  %v4450 = vmul.f32 %v4426, %v863
  %v4451 = vmul.f32 %v4427, %v864
  %v4452 = vadd.f32 %v3656, %v4428
  %v4453 = vadd.f32 %v3657, %v4429
  %v4454 = vadd.f32 %v3658, %v4430
  %v4455 = vadd.f32 %v3659, %v4431
  %v4456 = vadd.f32 %v3660, %v4432
  %v4457 = vadd.f32 %v3661, %v4433
  %v4458 = vadd.f32 %v3662, %v4434
  %v4459 = vadd.f32 %v3663, %v4435
  %v4460 = vadd.f32 %v3664, %v4436
  %v4461 = vadd.f32 %v3665, %v4437
  %v4462 = vadd.f32 %v3666, %v4438
  %v4463 = vadd.f32 %v3667, %v4439
  %v4464 = vadd.f32 %v3668, %v4440
  %v4465 = vadd.f32 %v3669, %v4441
  %v4466 = vadd.f32 %v3670, %v4442
  %v4467 = vadd.f32 %v3671, %v4443
  %v4468 = vadd.f32 %v3672, %v4444
  %v4469 = vadd.f32 %v3673, %v4445
  %v4470 = vadd.f32 %v3674, %v4446
  %v4471 = vadd.f32 %v3675, %v4447
  %v4472 = vadd.f32 %v3676, %v4448
  %v4473 = vadd.f32 %v3677, %v4449
  %v4474 = vadd.f32 %v3678, %v4450
  %v4475 = vadd.f32 %v3679, %v4451
  %v4476 = vmax.f32 %v4452, 0.0
  %v4477 = vmax.f32 %v4453, 0.0
  %v4478 = vmax.f32 %v4454, 0.0
  %v4479 = vmax.f32 %v4455, 0.0
  %v4480 = vmax.f32 %v4456, 0.0
  %v4481 = vmax.f32 %v4457, 0.0
  %v4482 = vmax.f32 %v4458, 0.0
  %v4483 = vmax.f32 %v4459, 0.0
  %v4484 = vmax.f32 %v4460, 0.0
  %v4485 = vmax.f32 %v4461, 0.0
  %v4486 = vmax.f32 %v4462, 0.0
  %v4487 = vmax.f32 %v4463, 0.0
  %v4488 = vmax.f32 %v4464, 0.0
  %v4489 = vmax.f32 %v4465, 0.0
  %v4490 = vmax.f32 %v4466, 0.0
  %v4491 = vmax.f32 %v4467, 0.0
  %v4492 = vmax.f32 %v4468, 0.0
  %v4493 = vmax.f32 %v4469, 0.0
  %v4494 = vmax.f32 %v4470, 0.0
  %v4495 = vmax.f32 %v4471, 0.0
  %v4496 = vmax.f32 %v4472, 0.0
  %v4497 = vmax.f32 %v4473, 0.0
  %v4498 = vmax.f32 %v4474, 0.0
  %v4499 = vmax.f32 %v4475, 0.0
  %v4500 = vld [vmem:[%s4] sm:$0xff]
  %v4501 = vld [vmem:[%s4 + $0x8] sm:$0xff]
  %v4502 = vld [vmem:[%s4 + $0x10] sm:$0xf]
  %v4503 = vld [vmem:[%s4 + $0x18] sm:$0xf]
  %v4505 = vsel %vm1969, %v4501, 0
  %v4508 = vsel %vm1969, %v4503, 0
  %4510 = vmatprep.subr.mxu0 0.0
  %4511 = vmatpush1.msra.mxu0 %v4476
  %4512 = vmatprep.subr.mxu0 0.0
  %4513 = vmatpush1.msra.mxu0 %v4477
  %4514 = vmatprep.subr.mxu0 0.0
  %4515 = vmatpush1.msra.mxu0 %v4478
  %4516 = vmatprep.subr.mxu0 0.0
  %4517 = vmatpush1.msra.mxu0 %v4479
  %4518 = vmatprep.subr.mxu0 0.0
  %4519 = vmatpush1.msra.mxu0 %v4480
  %4520 = vmatprep.subr.mxu0 0.0
  %4521 = vmatpush1.msra.mxu0 %v4481
  %4522 = vmatprep.subr.mxu0 0.0
  %4523 = vmatpush1.msra.mxu0 %v4482
  %4524 = vmatprep.subr.mxu0 0.0
  %4525 = vmatpush1.msra.mxu0 %v4483
  %4526 = vmatprep.subr.mxu0 0.0
  %4527 = vmatpush1.msra.mxu0 %v4484
  %4528 = vmatprep.subr.mxu0 0.0
  %4529 = vmatpush1.msra.mxu0 %v4485
  %4530 = vmatprep.subr.mxu0 0.0
  %4531 = vmatpush1.msra.mxu0 %v4486
  %4532 = vmatprep.subr.mxu0 0.0
  %4533 = vmatpush1.msra.mxu0 %v4487
  %4534 = vmatprep.subr.mxu0 0.0
  %4535 = vmatpush1.msra.mxu0 %v4488
  %4536 = vmatprep.subr.mxu0 0.0
  %4537 = vmatpush1.msra.mxu0 %v4489
  %4538 = vmatprep.subr.mxu0 0.0
  %4539 = vmatpush1.msra.mxu0 %v4490
  %4540 = vmatprep.subr.mxu0 0.0
  %4541 = vmatpush1.msra.mxu0 %v4491
  %4542 = vmatprep.subr.mxu0 0.0
  %4543 = vmatpush1.msra.mxu0 %v4492
  %4544 = vmatprep.subr.mxu0 0.0
  %4545 = vmatpush1.msra.mxu0 %v4493
  %4546 = vmatprep.subr.mxu0 0.0
  %4547 = vmatpush1.msra.mxu0 %v4494
  %4548 = vmatprep.subr.mxu0 0.0
  %4549 = vmatpush1.msra.mxu0 %v4495
  %4550 = vmatprep.subr.mxu0 0.0
  %4551 = vmatpush1.msra.mxu0 %v4496
  %4552 = vmatprep.subr.mxu0 0.0
  %4553 = vmatpush1.msra.mxu0 %v4497
  %4554 = vmatprep.subr.mxu0 0.0
  %4555 = vmatpush1.msra.mxu0 %v4498
  %4556 = vmatprep.subr.mxu0 0.0
  %4557 = vmatpush1.msra.mxu0 %v4499
  %4558 = vmatprep.subr.mxu0 0.0
  %4559 = vmatpush1.msra.mxu0 0.0
  %4560 = vmatprep.subr.mxu0 0.0
  %4561 = vmatpush1.msra.mxu0 0.0
  %4562 = vmatprep.subr.mxu0 0.0
  %4563 = vmatpush1.msra.mxu0 0.0
  %4564 = vmatprep.subr.mxu0 0.0
  %4565 = vmatpush1.msra.mxu0 0.0
  %4566 = vmatprep.subr.mxu0 0.0
  %4567 = vmatpush1.msra.mxu0 0.0
  %4568 = vmatprep.subr.mxu0 0.0
  %4569 = vmatpush1.msra.mxu0 0.0
  %4570 = vmatprep.subr.mxu0 0.0
  %4571 = vmatpush1.msra.mxu0 0.0
  %4572 = vmatprep.subr.mxu0 0.0
  %4573 = vmatpush1.msra.mxu0 0.0
  %4574 = vmatprep.mubr.f32.mxu0 %v4505
  %4575 = vmatmul.mubr.f32.gmra.mrb[0].mxu0 %v4500
  %v4576 = vpop.f32.mrb[0].mxu0
  %v4577 = vadd.f32 0.0, %v4576
  %v4578 = vpop.f32.mrb[0].mxu0
  %4579 = vmatprep.mubr.f32.mxu0 %v4508
  %4580 = vmatmul.mubr.f32.gmra.mrb[0].mxu0 %v4502
  %v4581 = vpop.f32.mrb[0].mxu0
  %v4582 = vadd.f32 0.0, %v4581
  %v4583 = vpop.f32.mrb[0].mxu0
  %4584 = vdwg.mxu0
  %v4585 = vld [vmem:[%s9] sm:$0xff]
  %v4586 = vld [vmem:[%s9 + $0x8] sm:$0xff]
  %v4587 = vld [vmem:[%s9 + $0x10] sm:$0xff]
  %v4588 = vld [vmem:[%s9 + $0x18] sm:$0xff]
  %v4589 = vld [vmem:[%s9 + $0x20] sm:$0xff]
  %v4590 = vld [vmem:[%s9 + $0x28] sm:$0xff]
  %v4591 = vld [vmem:[%s9 + $0x30] sm:$0xff]
  %v4592 = vld [vmem:[%s9 + $0x38] sm:$0xff]
  %v4593 = vld [vmem:[%s10] sm:$0x1]
  %v4595 = vlaneseq
  %v4596 = vshrl.u32 %v4595, 7
  %v4597 = vsub.s32 0, %v4596
  %v4598 = vrot.slane %v4593, %v4597
  %v4601 = vsel %vm1969, %v4577, 0
  %v4604 = vsel %vm1969, %v4582, 0
  %4606 = vmatprep.subr.mxu0 0.0
  %4607 = vmatpush1.msra.mxu0 %v4585
  %4608 = vmatprep.subr.mxu0 0.0
  %4609 = vmatpush1.msra.mxu0 %v4586
  %4610 = vmatprep.subr.mxu0 0.0
  %4611 = vmatpush1.msra.mxu0 %v4587
  %4612 = vmatprep.subr.mxu0 0.0
  %4613 = vmatpush1.msra.mxu0 %v4588
  %4614 = vmatprep.subr.mxu0 0.0
  %4615 = vmatpush1.msra.mxu0 %v4589
  %4616 = vmatprep.subr.mxu0 0.0
  %4617 = vmatpush1.msra.mxu0 %v4590
  %4618 = vmatprep.subr.mxu0 0.0
  %4619 = vmatpush1.msra.mxu0 %v4591
  %4620 = vmatprep.subr.mxu0 0.0
  %4621 = vmatpush1.msra.mxu0 %v4592
  %4622 = vmatprep.subr.mxu0 0.0
  %4623 = vmatpush1.msra.mxu0 0.0
  %4624 = vmatprep.subr.mxu0 0.0
  %4625 = vmatpush1.msra.mxu0 0.0
  %4626 = vmatprep.subr.mxu0 0.0
  %4627 = vmatpush1.msra.mxu0 0.0
  %4628 = vmatprep.subr.mxu0 0.0
  %4629 = vmatpush1.msra.mxu0 0.0
  %4630 = vmatprep.subr.mxu0 0.0
  %4631 = vmatpush1.msra.mxu0 0.0
  %4632 = vmatprep.subr.mxu0 0.0
  %4633 = vmatpush1.msra.mxu0 0.0
  %4634 = vmatprep.subr.mxu0 0.0
  %4635 = vmatpush1.msra.mxu0 0.0
  %4636 = vmatprep.subr.mxu0 0.0
  %4637 = vmatpush1.msra.mxu0 0.0
  %4638 = vmatprep.subr.mxu0 0.0
  %4639 = vmatpush1.msra.mxu0 0.0
  %4640 = vmatprep.subr.mxu0 0.0
  %4641 = vmatpush1.msra.mxu0 0.0
  %4642 = vmatprep.subr.mxu0 0.0
  %4643 = vmatpush1.msra.mxu0 0.0
  %4644 = vmatprep.subr.mxu0 0.0
  %4645 = vmatpush1.msra.mxu0 0.0
  %4646 = vmatprep.subr.mxu0 0.0
  %4647 = vmatpush1.msra.mxu0 0.0
  %4648 = vmatprep.subr.mxu0 0.0
  %4649 = vmatpush1.msra.mxu0 0.0
  %4650 = vmatprep.subr.mxu0 0.0
  %4651 = vmatpush1.msra.mxu0 0.0
  %4652 = vmatprep.subr.mxu0 0.0
  %4653 = vmatpush1.msra.mxu0 0.0
  %4654 = vmatprep.subr.mxu0 0.0
  %4655 = vmatpush1.msra.mxu0 0.0
  %4656 = vmatprep.subr.mxu0 0.0
  %4657 = vmatpush1.msra.mxu0 0.0
  %4658 = vmatprep.subr.mxu0 0.0
  %4659 = vmatpush1.msra.mxu0 0.0
  %4660 = vmatprep.subr.mxu0 0.0
  %4661 = vmatpush1.msra.mxu0 0.0
  %4662 = vmatprep.subr.mxu0 0.0
  %4663 = vmatpush1.msra.mxu0 0.0
  %4664 = vmatprep.subr.mxu0 0.0
  %4665 = vmatpush1.msra.mxu0 0.0
  %4666 = vmatprep.subr.mxu0 0.0
  %4667 = vmatpush1.msra.mxu0 0.0
  %4668 = vmatprep.subr.mxu0 0.0
  %4669 = vmatpush1.msra.mxu0 0.0
  %4670 = vmatprep.mubr.f32.mxu0 0.0
  %4671 = vmatmul.mubr.f32.gmra.mrb[0].mxu0 %v4601
  %v4672 = vpop.f32.mrb[0].mxu0
  %v4673 = vadd.f32 %v4598, %v4672
  %v4674 = vpop.f32.mrb[0].mxu0
  %4675 = vmatprep.mubr.f32.mxu0 0.0
  %4676 = vmatmul.mubr.f32.gmra.mrb[0].mxu0 %v4604
  %v4677 = vpop.f32.mrb[0].mxu0
  %v4678 = vadd.f32 %v4598, %v4677
  %v4679 = vpop.f32.mrb[0].mxu0
  %4680 = vdwg.mxu0
  %v4681 = vmax.f32 %v4673, 0.0
  %v4682 = vmax.f32 %v4678, 0.0
  %v4683 = vld [vmem:[%s11] sm:$0xff]
  %v4684 = vld [vmem:[%s11 + $0x8] sm:$0xff]
  %v4685 = vld [vmem:[%s11 + $0x10] sm:$0xff]
  %v4686 = vld [vmem:[%s11 + $0x18] sm:$0xff]
  %v4687 = vld [vmem:[%s11 + $0x20] sm:$0xff]
  %v4688 = vld [vmem:[%s11 + $0x28] sm:$0xff]
  %v4689 = vld [vmem:[%s11 + $0x30] sm:$0xff]
  %v4690 = vld [vmem:[%s11 + $0x38] sm:$0xff]
  %v4691 = vld [vmem:[#allocation2] sm:$0x1]
  %v4693 = vlaneseq
  %v4694 = vshrl.u32 %v4693, 7
  %v4695 = vsub.s32 0, %v4694
  %v4696 = vrot.slane %v4691, %v4695
  %v4699 = vsel %vm1969, %v4681, 0
  %v4702 = vsel %vm1969, %v4682, 0
  %4704 = vmatprep.subr.mxu0 0.0
  %4705 = vmatpush1.msra.mxu0 %v4683
  %4706 = vmatprep.subr.mxu0 0.0
  %4707 = vmatpush1.msra.mxu0 %v4684
  %4708 = vmatprep.subr.mxu0 0.0
  %4709 = vmatpush1.msra.mxu0 %v4685
  %4710 = vmatprep.subr.mxu0 0.0
  %4711 = vmatpush1.msra.mxu0 %v4686
  %4712 = vmatprep.subr.mxu0 0.0
  %4713 = vmatpush1.msra.mxu0 %v4687
  %4714 = vmatprep.subr.mxu0 0.0
  %4715 = vmatpush1.msra.mxu0 %v4688
  %4716 = vmatprep.subr.mxu0 0.0
  %4717 = vmatpush1.msra.mxu0 %v4689
  %4718 = vmatprep.subr.mxu0 0.0
  %4719 = vmatpush1.msra.mxu0 %v4690
  %4720 = vmatprep.subr.mxu0 0.0
  %4721 = vmatpush1.msra.mxu0 0.0
  %4722 = vmatprep.subr.mxu0 0.0
  %4723 = vmatpush1.msra.mxu0 0.0
  %4724 = vmatprep.subr.mxu0 0.0
  %4725 = vmatpush1.msra.mxu0 0.0
  %4726 = vmatprep.subr.mxu0 0.0
  %4727 = vmatpush1.msra.mxu0 0.0
  %4728 = vmatprep.subr.mxu0 0.0
  %4729 = vmatpush1.msra.mxu0 0.0
  %4730 = vmatprep.subr.mxu0 0.0
  %4731 = vmatpush1.msra.mxu0 0.0
  %4732 = vmatprep.subr.mxu0 0.0
  %4733 = vmatpush1.msra.mxu0 0.0
  %4734 = vmatprep.subr.mxu0 0.0
  %4735 = vmatpush1.msra.mxu0 0.0
  %4736 = vmatprep.subr.mxu0 0.0
  %4737 = vmatpush1.msra.mxu0 0.0
  %4738 = vmatprep.subr.mxu0 0.0
  %4739 = vmatpush1.msra.mxu0 0.0
  %4740 = vmatprep.subr.mxu0 0.0
  %4741 = vmatpush1.msra.mxu0 0.0
  %4742 = vmatprep.subr.mxu0 0.0
  %4743 = vmatpush1.msra.mxu0 0.0
  %4744 = vmatprep.subr.mxu0 0.0
  %4745 = vmatpush1.msra.mxu0 0.0
  %4746 = vmatprep.subr.mxu0 0.0
  %4747 = vmatpush1.msra.mxu0 0.0
  %4748 = vmatprep.subr.mxu0 0.0
  %4749 = vmatpush1.msra.mxu0 0.0
  %4750 = vmatprep.subr.mxu0 0.0
  %4751 = vmatpush1.msra.mxu0 0.0
  %4752 = vmatprep.subr.mxu0 0.0
  %4753 = vmatpush1.msra.mxu0 0.0
  %4754 = vmatprep.subr.mxu0 0.0
  %4755 = vmatpush1.msra.mxu0 0.0
  %4756 = vmatprep.subr.mxu0 0.0
  %4757 = vmatpush1.msra.mxu0 0.0
  %4758 = vmatprep.subr.mxu0 0.0
  %4759 = vmatpush1.msra.mxu0 0.0
  %4760 = vmatprep.subr.mxu0 0.0
  %4761 = vmatpush1.msra.mxu0 0.0
  %4762 = vmatprep.subr.mxu0 0.0
  %4763 = vmatpush1.msra.mxu0 0.0
  %4764 = vmatprep.subr.mxu0 0.0
  %4765 = vmatpush1.msra.mxu0 0.0
  %4766 = vmatprep.subr.mxu0 0.0
  %4767 = vmatpush1.msra.mxu0 0.0
  %4768 = vmatprep.mubr.f32.mxu0 0.0
  %4769 = vmatmul.mubr.f32.gmra.mrb[0].mxu0 %v4699
  %v4770 = vpop.f32.mrb[0].mxu0
  %v4771 = vadd.f32 %v4696, %v4770
  %v4772 = vpop.f32.mrb[0].mxu0
  %4773 = vmatprep.mubr.f32.mxu0 0.0
  %4774 = vmatmul.mubr.f32.gmra.mrb[0].mxu0 %v4702
  %v4775 = vpop.f32.mrb[0].mxu0
  %v4776 = vadd.f32 %v4696, %v4775
  %v4777 = vpop.f32.mrb[0].mxu0
  %4778 = vdwg.mxu0
  %vm4779 = vcmask 7168
  %4780 = vst.msk [vmem:[%s13] sm:$0xff] %vm4779, %v4771
  %vm4781 = vcmask 3072
  %4782 = vst.msk [vmem:[%s13 + $0x8] sm:$0xf] %vm4781, %v4776
  // Predicated region
  $region54: #{tpu_custom_call.1} parent=0 // pred_check
    _
  $region55: #{tpu_custom_call.1} parent=0 // pred_check_branch
    %4784 = sbr.rel (0) target = $region57
  $region56: #{tpu_custom_call.1} parent=0 // pred_region
    _
  $region57: #{tpu_custom_call.1} parent=0 // pred_fallthru
    _
  // Predicated region
  $region58: #{tpu_custom_call.1} parent=0 // pred_check
    _
  $region59: #{tpu_custom_call.1} parent=0 // pred_check_branch
    %4786 = sbr.rel (0) target = $region61
  $region60: #{tpu_custom_call.1} parent=0 // pred_region
    _
  $region61: #{tpu_custom_call.1} parent=0 // pred_fallthru
    _

</llo_original>
